<compile_context>
chip_gen: v7x
topology: tpu7x:2x2x1
jax: 0.10.0
libtpu: 0.0.40
codegen_flags: <defaults>
</compile_context>

<pallas_src>
import numpy as np
import jax
import jax.numpy as jnp
from jax.experimental import pallas as pl
from jax.experimental.pallas import tpu as pltpu

LOOK_BACK = 16      # sequence length (look_back)
LOOK_FORWARD = 3    # prediction horizon
C1 = 64             # conv1 out channels
C2 = 128            # conv2 out channels / LSTM input size
HID = 64            # LSTM hidden size
DEFAULT_TB = 256    # batch rows per grid block (fills 256-wide MXU on v6e/v7x)


def _round_up(n, m):
    return ((n + m - 1) // m) * m


def cnn_lstm_kernel(xt_ref, w1_ref, b1_ref, w2_ref, b2_ref,
                    wih_ref, whh_ref, bl_ref, wfc_ref, bfc_ref, out_ref):
    L, TB, _ = xt_ref.shape
    LT = L * TB

    # ---- conv1: in=1 -> C1, k=3, pad=1, as one im2col matmul (lane-dense C1) ----
    taps = xt_ref[...].reshape(LT, 3)                        # row index = t*TB + b
    out1 = jnp.dot(taps, w1_ref[...], preferred_element_type=jnp.float32)
    out1 = jnp.maximum(out1 + b1_ref[...], 0.0)              # (LT, C1), ReLU

    # ---- conv2: C1 -> C2, k=3, pad=1 (time-major, lane-dense C2 output) ------
    # Feed-forward matmuls run with bf16 inputs (w2 cast in wrapper), f32 acc.
    w2 = w2_ref[...]                                          # (3, C1, C2)
    out1_c = out1.astype(w2.dtype).reshape(L, TB, C1)
    zpad = jnp.zeros((1, TB, C1), w2.dtype)
    p1 = jnp.concatenate([zpad, out1_c, zpad], axis=0)        # (L+2, TB, C1)
    out2 = jnp.dot(p1[1:1 + L].reshape(LT, C1), w2[1],
                   preferred_element_type=jnp.float32)
    out2 = out2 + jnp.dot(p1[0:L].reshape(LT, C1), w2[0],
                          preferred_element_type=jnp.float32)
    out2 = out2 + jnp.dot(p1[2:2 + L].reshape(LT, C1), w2[2],
                          preferred_element_type=jnp.float32)
    out2 = jnp.maximum(out2 + b2_ref[...], 0.0)               # (LT, C2), ReLU, f32

    # ---- LSTM input projection hoisted out of the recurrence (one big matmul) --
    wih = wih_ref[...]                                        # (C2, 4*HID), bf16
    gates_x = (jnp.dot(out2.astype(wih.dtype), wih,
                       preferred_element_type=jnp.float32)
               + bl_ref[...]).reshape(L, TB, 4 * HID)         # f32

    # ---- LSTM recurrence (PyTorch gate order i, f, g, o), fully unrolled, f32 --
    whh = whh_ref[...]                                        # (HID, 4*HID), f32
    h = jnp.zeros((TB, HID), jnp.float32)
    c = jnp.zeros((TB, HID), jnp.float32)
    for t in range(L):                                        # static L -> full unroll
        g = gates_x[t] + jnp.dot(h, whh, preferred_element_type=jnp.float32)
        i_g = jax.nn.sigmoid(g[:, 0:HID])
        f_g = jax.nn.sigmoid(g[:, HID:2 * HID])
        g_g = jnp.tanh(g[:, 2 * HID:3 * HID])
        o_g = jax.nn.sigmoid(g[:, 3 * HID:4 * HID])
        c = f_g * c + i_g * g_g
        h = o_g * jnp.tanh(c)

    # ---- fc on the last time step's hidden state (tiny, f32) ----
    out_ref[...] = (jnp.dot(h, wfc_ref[...], preferred_element_type=jnp.float32)
                    + bfc_ref[...])                           # (TB, LOOK_FORWARD)


def cnn_lstm_forward(x, params, block_b=DEFAULT_TB, ff_dtype=jnp.bfloat16):
    B, L = x.shape
    x = x.astype(jnp.float32)
    w1, b1, w2, b2, wih, whh, bl, wfc, bfc = params

    # One-time weight casts for the bf16 feed-forward matmuls (f32 accumulate).
    w2c = w2.astype(ff_dtype)
    wihc = wih.astype(ff_dtype)

    TB = min(block_b, _round_up(B, 8))
    # Prefer >= 2 grid steps so both v7x TensorCores get work on the parallel axis.
    if TB > 128 and (B + TB - 1) // TB < 2 and (B + 127) // 128 >= 2:
        TB = 128
    B_pad = _round_up(B, TB)

    # Wrapper-side layout plumbing: pad batch, pad time (conv1 padding=1),
    # build im2col taps and go time-major:  x_taps[t, b, k] = xpad[b, t + k].
    xpad = jnp.pad(x, ((0, B_pad - B), (1, 1)))               # (B_pad, L+2)
    x_taps = jnp.stack([xpad[:, k:k + L] for k in range(3)], axis=-1)  # (B_pad, L, 3)
    x_taps = jnp.transpose(x_taps, (1, 0, 2))                 # (L, B_pad, 3)

    def full(a):
        nd = a.ndim
        return pl.BlockSpec(a.shape, lambda i, _nd=nd: (0,) * _nd)

    out = pl.pallas_call(
        cnn_lstm_kernel,
        out_shape=jax.ShapeDtypeStruct((B_pad, LOOK_FORWARD), jnp.float32),
        grid=(B_pad // TB,),
        in_specs=[pl.BlockSpec((L, TB, 3), lambda i: (0, i, 0)),
                  full(w1), full(b1), full(w2c), full(b2),
                  full(wihc), full(whh), full(bl), full(wfc), full(bfc)],
        out_specs=pl.BlockSpec((TB, LOOK_FORWARD), lambda i: (i, 0)),
        compiler_params=pltpu.CompilerParams(
            dimension_semantics=("parallel",),
            vmem_limit_bytes=32 * 1024 * 1024),
    )(x_taps, w1, b1, w2c, b2, wihc, whh, bl, wfc, bfc)
    return out[:B]


def init_params(key):
    # Deterministic synthetic weights with the shapes implied by the module
    # (stored pre-transposed for lane-dense matmuls).
    ks = jax.random.split(key, 9)
    s = 0.1
    w1 = jax.random.normal(ks[0], (3, C1), jnp.float32) * s          # conv1.weight (64,1,3) -> tap-major
    b1 = jax.random.normal(ks[1], (1, C1), jnp.float32) * s          # conv1.bias
    w2 = jax.random.normal(ks[2], (3, C1, C2), jnp.float32) * s      # conv2.weight (128,64,3) -> (k, in, out)
    b2 = jax.random.normal(ks[3], (1, C2), jnp.float32) * s          # conv2.bias
    wih = jax.random.normal(ks[4], (C2, 4 * HID), jnp.float32) * s   # lstm.weight_ih_l0.T
    whh = jax.random.normal(ks[5], (HID, 4 * HID), jnp.float32) * s  # lstm.weight_hh_l0.T
    bl = jax.random.normal(ks[6], (1, 4 * HID), jnp.float32) * s     # bias_ih + bias_hh
    wfc = jax.random.normal(ks[7], (HID, LOOK_FORWARD), jnp.float32) * s  # fc.weight.T
    bfc = jax.random.normal(ks[8], (1, LOOK_FORWARD), jnp.float32) * s    # fc.bias
    return (w1, b1, w2, b2, wih, whh, bl, wfc, bfc)


def reference_forward(x, params):
    # Pure-JAX f32 reference mirroring the PyTorch forward exactly.
    w1, b1, w2, b2, wih, whh, bl, wfc, bfc = params
    B, L = x.shape
    xp = jnp.pad(x, ((0, 0), (1, 1)))
    out1 = jnp.zeros((B, L, C1), jnp.float32)
    for k in range(3):
        out1 = out1 + xp[:, k:k + L, None] * w1[k][None, None, :]
    out1 = jax.nn.relu(out1 + b1.reshape(1, 1, C1))
    p1 = jnp.pad(out1, ((0, 0), (1, 1), (0, 0)))
    out2 = jnp.zeros((B, L, C2), jnp.float32)
    for k in range(3):
        out2 = out2 + jnp.einsum('btc,co->bto', p1[:, k:k + L, :], w2[k])
    out2 = jax.nn.relu(out2 + b2.reshape(1, 1, C2))
    h = jnp.zeros((B, HID), jnp.float32)
    c = jnp.zeros((B, HID), jnp.float32)
    for t in range(L):
        gates = out2[:, t, :] @ wih + h @ whh + bl
        i_g = jax.nn.sigmoid(gates[:, :HID])
        f_g = jax.nn.sigmoid(gates[:, HID:2 * HID])
        g_g = jnp.tanh(gates[:, 2 * HID:3 * HID])
        o_g = jax.nn.sigmoid(gates[:, 3 * HID:])
        c = f_g * c + i_g * g_g
        h = o_g * jnp.tanh(c)
    return h @ wfc + bfc


if __name__ == "__main__":
    key = jax.random.PRNGKey(0)
    pkey, xkey, xkey2 = jax.random.split(key, 3)
    params = init_params(pkey)

    # Small check (B=2 -> single TB=8 block).
    B = 2
    x = jax.random.normal(xkey, (B, LOOK_BACK), jnp.float32)
    ref = reference_forward(x, params)

    # Exact-semantics check: f32 feed-forward path against the f32 reference.
    out_f32 = jax.block_until_ready(
        cnn_lstm_forward(x, params, ff_dtype=jnp.float32))
    assert out_f32.shape == (B, LOOK_FORWARD)
    np.testing.assert_allclose(np.asarray(out_f32), np.asarray(ref),
                               rtol=1e-3, atol=1e-3)

    # Default (performance) path: bf16 MXU inputs with f32 accumulation;
    # tolerance reflects bf16 input rounding.
    out_bf = jax.block_until_ready(cnn_lstm_forward(x, params))
    np.testing.assert_allclose(np.asarray(out_bf), np.asarray(ref),
                               rtol=2e-2, atol=2e-2)

    # Multi-block check (exercises batch tiling + padded rows being dropped).
    B2 = 20
    x2 = jax.random.normal(xkey2, (B2, LOOK_BACK), jnp.float32)
    ref2 = reference_forward(x2, params)
    out2_f32 = jax.block_until_ready(
        cnn_lstm_forward(x2, params, block_b=8, ff_dtype=jnp.float32))
    np.testing.assert_allclose(np.asarray(out2_f32), np.asarray(ref2),
                               rtol=1e-3, atol=1e-3)
    out2_bf = jax.block_until_ready(cnn_lstm_forward(x2, params, block_b=8))
    np.testing.assert_allclose(np.asarray(out2_bf), np.asarray(ref2),
                               rtol=2e-2, atol=2e-2)

    print("KERNEL_OK")
</pallas_src>

<mosaic_0001>
module attributes {stable_mosaic.version = 11 : i64} {
  func.func @cnn_lstm_kernel(%arg0: i32, %arg1: memref<16x8x3xf32, #tpu.memory_space<vmem>>, %arg2: memref<3x64xf32, #tpu.memory_space<vmem>>, %arg3: memref<1x64xf32, #tpu.memory_space<vmem>>, %arg4: memref<3x64x128xf32, #tpu.memory_space<vmem>>, %arg5: memref<1x128xf32, #tpu.memory_space<vmem>>, %arg6: memref<128x256xf32, #tpu.memory_space<vmem>>, %arg7: memref<64x256xf32, #tpu.memory_space<vmem>>, %arg8: memref<1x256xf32, #tpu.memory_space<vmem>>, %arg9: memref<64x3xf32, #tpu.memory_space<vmem>>, %arg10: memref<1x3xf32, #tpu.memory_space<vmem>>, %arg11: memref<8x3xf32, #tpu.memory_space<vmem>>) attributes {dimension_semantics = [#tpu.dimension_semantics<parallel>], iteration_bounds = array<i64: 1>, scalar_prefetch = 0 : i64, scratch_operands = 0 : i64, tpu.core_type = #tpu.core_type<tc>, window_params = [{transform_indices = @transform_0, window_bounds = array<i64: 16, 8, 3>}, {pipeline_mode = #tpu.pipeline_mode<synchronous>, transform_indices = @transform_1, window_bounds = array<i64: 3, 64>}, {pipeline_mode = #tpu.pipeline_mode<synchronous>, transform_indices = @transform_2, window_bounds = array<i64: 1, 64>}, {pipeline_mode = #tpu.pipeline_mode<synchronous>, transform_indices = @transform_3, window_bounds = array<i64: 3, 64, 128>}, {pipeline_mode = #tpu.pipeline_mode<synchronous>, transform_indices = @transform_4, window_bounds = array<i64: 1, 128>}, {pipeline_mode = #tpu.pipeline_mode<synchronous>, transform_indices = @transform_5, window_bounds = array<i64: 128, 256>}, {pipeline_mode = #tpu.pipeline_mode<synchronous>, transform_indices = @transform_6, window_bounds = array<i64: 64, 256>}, {pipeline_mode = #tpu.pipeline_mode<synchronous>, transform_indices = @transform_7, window_bounds = array<i64: 1, 256>}, {pipeline_mode = #tpu.pipeline_mode<synchronous>, transform_indices = @transform_8, window_bounds = array<i64: 64, 3>}, {pipeline_mode = #tpu.pipeline_mode<synchronous>, transform_indices = @transform_9, window_bounds = array<i64: 1, 3>}, {transform_indices = @transform_10, window_bounds = array<i64: 8, 3>}]} {
    %c0 = arith.constant 0 : index
    %c0_0 = arith.constant 0 : index
    %c0_1 = arith.constant 0 : index
    %0 = vector.load %arg1[%c0, %c0_0, %c0_1] : memref<16x8x3xf32, #tpu.memory_space<vmem>>, vector<16x8x3xf32>
    %1 = vector.shape_cast %0 : vector<16x8x3xf32> to vector<128x3xf32>
    %c0_2 = arith.constant 0 : index
    %c0_3 = arith.constant 0 : index
    %2 = vector.load %arg2[%c0_2, %c0_3] : memref<3x64xf32, #tpu.memory_space<vmem>>, vector<3x64xf32>
    %cst = arith.constant dense<0.000000e+00> : vector<128x64xf32>
    %3 = tpu.matmul %1, %2, %cst {dimension_numbers = #tpu.dot_dimension_numbers<[1], [0], [0], [1], [0, 0, 1, 1], [], []>} : vector<128x3xf32>, vector<3x64xf32>, vector<128x64xf32> -> vector<128x64xf32>
    %c0_4 = arith.constant 0 : index
    %c0_5 = arith.constant 0 : index
    %4 = vector.load %arg3[%c0_4, %c0_5] : memref<1x64xf32, #tpu.memory_space<vmem>>, vector<1x64xf32>
    %5 = vector.broadcast %4 : vector<1x64xf32> to vector<128x64xf32>
    %6 = arith.addf %3, %5 : vector<128x64xf32>
    %cst_6 = arith.constant 0.000000e+00 : f32
    %7 = vector.broadcast %cst_6 : f32 to vector<128x64xf32>
    %8 = arith.maximumf %6, %7 : vector<128x64xf32>
    %c0_7 = arith.constant 0 : index
    %c0_8 = arith.constant 0 : index
    %c0_9 = arith.constant 0 : index
    %9 = vector.load %arg4[%c0_7, %c0_8, %c0_9] : memref<3x64x128xf32, #tpu.memory_space<vmem>>, vector<3x64x128xf32>
    %10 = vector.shape_cast %8 : vector<128x64xf32> to vector<16x8x64xf32>
    %cst_10 = arith.constant 0.000000e+00 : f32
    %11 = vector.broadcast %cst_10 : f32 to vector<1x8x64xf32>
    %12 = tpu.concatenate %11, %10, %11 in 0 : vector<1x8x64xf32>, vector<16x8x64xf32>, vector<1x8x64xf32> -> vector<18x8x64xf32>
    %13 = vector.extract_strided_slice %12 {offsets = [1, 0, 0], sizes = [16, 8, 64], strides = [1, 1, 1]} : vector<18x8x64xf32> to vector<16x8x64xf32>
    %14 = vector.shape_cast %13 : vector<16x8x64xf32> to vector<128x64xf32>
    %15 = vector.extract_strided_slice %9 {offsets = [1, 0, 0], sizes = [1, 64, 128], strides = [1, 1, 1]} : vector<3x64x128xf32> to vector<1x64x128xf32>
    %16 = vector.shape_cast %15 : vector<1x64x128xf32> to vector<64x128xf32>
    %cst_11 = arith.constant dense<0.000000e+00> : vector<128x128xf32>
    %17 = tpu.matmul %14, %16, %cst_11 {dimension_numbers = #tpu.dot_dimension_numbers<[1], [0], [0], [1], [0, 0, 1, 1], [], []>} : vector<128x64xf32>, vector<64x128xf32>, vector<128x128xf32> -> vector<128x128xf32>
    %18 = vector.extract_strided_slice %12 {offsets = [0, 0, 0], sizes = [16, 8, 64], strides = [1, 1, 1]} : vector<18x8x64xf32> to vector<16x8x64xf32>
    %19 = vector.shape_cast %18 : vector<16x8x64xf32> to vector<128x64xf32>
    %20 = vector.extract_strided_slice %9 {offsets = [0, 0, 0], sizes = [1, 64, 128], strides = [1, 1, 1]} : vector<3x64x128xf32> to vector<1x64x128xf32>
    %21 = vector.shape_cast %20 : vector<1x64x128xf32> to vector<64x128xf32>
    %cst_12 = arith.constant dense<0.000000e+00> : vector<128x128xf32>
    %22 = tpu.matmul %19, %21, %cst_12 {dimension_numbers = #tpu.dot_dimension_numbers<[1], [0], [0], [1], [0, 0, 1, 1], [], []>} : vector<128x64xf32>, vector<64x128xf32>, vector<128x128xf32> -> vector<128x128xf32>
    %23 = arith.addf %17, %22 : vector<128x128xf32>
    %24 = vector.extract_strided_slice %12 {offsets = [2, 0, 0], sizes = [16, 8, 64], strides = [1, 1, 1]} : vector<18x8x64xf32> to vector<16x8x64xf32>
    %25 = vector.shape_cast %24 : vector<16x8x64xf32> to vector<128x64xf32>
    %26 = vector.extract_strided_slice %9 {offsets = [2, 0, 0], sizes = [1, 64, 128], strides = [1, 1, 1]} : vector<3x64x128xf32> to vector<1x64x128xf32>
    %27 = vector.shape_cast %26 : vector<1x64x128xf32> to vector<64x128xf32>
    %cst_13 = arith.constant dense<0.000000e+00> : vector<128x128xf32>
    %28 = tpu.matmul %25, %27, %cst_13 {dimension_numbers = #tpu.dot_dimension_numbers<[1], [0], [0], [1], [0, 0, 1, 1], [], []>} : vector<128x64xf32>, vector<64x128xf32>, vector<128x128xf32> -> vector<128x128xf32>
    %29 = arith.addf %23, %28 : vector<128x128xf32>
    %c0_14 = arith.constant 0 : index
    %c0_15 = arith.constant 0 : index
    %30 = vector.load %arg5[%c0_14, %c0_15] : memref<1x128xf32, #tpu.memory_space<vmem>>, vector<1x128xf32>
    %31 = vector.broadcast %30 : vector<1x128xf32> to vector<128x128xf32>
    %32 = arith.addf %29, %31 : vector<128x128xf32>
    %cst_16 = arith.constant 0.000000e+00 : f32
    %33 = vector.broadcast %cst_16 : f32 to vector<128x128xf32>
    %34 = arith.maximumf %32, %33 : vector<128x128xf32>
    %c0_17 = arith.constant 0 : index
    %c0_18 = arith.constant 0 : index
    %35 = vector.load %arg6[%c0_17, %c0_18] : memref<128x256xf32, #tpu.memory_space<vmem>>, vector<128x256xf32>
    %cst_19 = arith.constant dense<0.000000e+00> : vector<128x256xf32>
    %36 = tpu.matmul %34, %35, %cst_19 {dimension_numbers = #tpu.dot_dimension_numbers<[1], [0], [0], [1], [0, 0, 1, 1], [], []>} : vector<128x128xf32>, vector<128x256xf32>, vector<128x256xf32> -> vector<128x256xf32>
    %c0_20 = arith.constant 0 : index
    %c0_21 = arith.constant 0 : index
    %37 = vector.load %arg8[%c0_20, %c0_21] : memref<1x256xf32, #tpu.memory_space<vmem>>, vector<1x256xf32>
    %38 = vector.broadcast %37 : vector<1x256xf32> to vector<128x256xf32>
    %39 = arith.addf %36, %38 : vector<128x256xf32>
    %40 = vector.shape_cast %39 : vector<128x256xf32> to vector<16x8x256xf32>
    %c0_22 = arith.constant 0 : index
    %c0_23 = arith.constant 0 : index
    %41 = vector.load %arg7[%c0_22, %c0_23] : memref<64x256xf32, #tpu.memory_space<vmem>>, vector<64x256xf32>
    %cst_24 = arith.constant 0.000000e+00 : f32
    %42 = vector.broadcast %cst_24 : f32 to vector<8x64xf32>
    %cst_25 = arith.constant 0.000000e+00 : f32
    %43 = vector.broadcast %cst_25 : f32 to vector<8x64xf32>
    %44 = vector.extract_strided_slice %40 {offsets = [0, 0, 0], sizes = [1, 8, 256], strides = [1, 1, 1]} : vector<16x8x256xf32> to vector<1x8x256xf32>
    %45 = vector.shape_cast %44 : vector<1x8x256xf32> to vector<8x256xf32>
    %cst_26 = arith.constant dense<0.000000e+00> : vector<8x256xf32>
    %46 = tpu.matmul %42, %41, %cst_26 {dimension_numbers = #tpu.dot_dimension_numbers<[1], [0], [0], [1], [0, 0, 1, 1], [], []>} : vector<8x64xf32>, vector<64x256xf32>, vector<8x256xf32> -> vector<8x256xf32>
    %47 = arith.addf %45, %46 : vector<8x256xf32>
    %48 = vector.extract_strided_slice %47 {offsets = [0, 0], sizes = [8, 64], strides = [1, 1]} : vector<8x256xf32> to vector<8x64xf32>
    %49 = arith.negf %48 : vector<8x64xf32>
    %50 = math.exp %49 : vector<8x64xf32>
    %cst_27 = arith.constant 1.000000e+00 : f32
    %51 = vector.broadcast %cst_27 : f32 to vector<8x64xf32>
    %52 = arith.addf %51, %50 : vector<8x64xf32>
    %53 = arith.divf %51, %52 : vector<8x64xf32>
    %54 = vector.extract_strided_slice %47 {offsets = [0, 64], sizes = [8, 64], strides = [1, 1]} : vector<8x256xf32> to vector<8x64xf32>
    %55 = arith.negf %54 : vector<8x64xf32>
    %56 = math.exp %55 : vector<8x64xf32>
    %cst_28 = arith.constant 1.000000e+00 : f32
    %57 = vector.broadcast %cst_28 : f32 to vector<8x64xf32>
    %58 = arith.addf %57, %56 : vector<8x64xf32>
    %59 = arith.divf %57, %58 : vector<8x64xf32>
    %60 = vector.extract_strided_slice %47 {offsets = [0, 128], sizes = [8, 64], strides = [1, 1]} : vector<8x256xf32> to vector<8x64xf32>
    %61 = math.tanh %60 : vector<8x64xf32>
    %62 = vector.extract_strided_slice %47 {offsets = [0, 192], sizes = [8, 64], strides = [1, 1]} : vector<8x256xf32> to vector<8x64xf32>
    %63 = arith.negf %62 : vector<8x64xf32>
    %64 = math.exp %63 : vector<8x64xf32>
    %cst_29 = arith.constant 1.000000e+00 : f32
    %65 = vector.broadcast %cst_29 : f32 to vector<8x64xf32>
    %66 = arith.addf %65, %64 : vector<8x64xf32>
    %67 = arith.divf %65, %66 : vector<8x64xf32>
    %68 = arith.mulf %59, %43 : vector<8x64xf32>
    %69 = arith.mulf %53, %61 : vector<8x64xf32>
    %70 = arith.addf %68, %69 : vector<8x64xf32>
    %71 = math.tanh %70 : vector<8x64xf32>
    %72 = arith.mulf %67, %71 : vector<8x64xf32>
    %73 = vector.extract_strided_slice %40 {offsets = [1, 0, 0], sizes = [1, 8, 256], strides = [1, 1, 1]} : vector<16x8x256xf32> to vector<1x8x256xf32>
    %74 = vector.shape_cast %73 : vector<1x8x256xf32> to vector<8x256xf32>
    %cst_30 = arith.constant dense<0.000000e+00> : vector<8x256xf32>
    %75 = tpu.matmul %72, %41, %cst_30 {dimension_numbers = #tpu.dot_dimension_numbers<[1], [0], [0], [1], [0, 0, 1, 1], [], []>} : vector<8x64xf32>, vector<64x256xf32>, vector<8x256xf32> -> vector<8x256xf32>
    %76 = arith.addf %74, %75 : vector<8x256xf32>
    %77 = vector.extract_strided_slice %76 {offsets = [0, 0], sizes = [8, 64], strides = [1, 1]} : vector<8x256xf32> to vector<8x64xf32>
    %78 = arith.negf %77 : vector<8x64xf32>
    %79 = math.exp %78 : vector<8x64xf32>
    %cst_31 = arith.constant 1.000000e+00 : f32
    %80 = vector.broadcast %cst_31 : f32 to vector<8x64xf32>
    %81 = arith.addf %80, %79 : vector<8x64xf32>
    %82 = arith.divf %80, %81 : vector<8x64xf32>
    %83 = vector.extract_strided_slice %76 {offsets = [0, 64], sizes = [8, 64], strides = [1, 1]} : vector<8x256xf32> to vector<8x64xf32>
    %84 = arith.negf %83 : vector<8x64xf32>
    %85 = math.exp %84 : vector<8x64xf32>
    %cst_32 = arith.constant 1.000000e+00 : f32
    %86 = vector.broadcast %cst_32 : f32 to vector<8x64xf32>
    %87 = arith.addf %86, %85 : vector<8x64xf32>
    %88 = arith.divf %86, %87 : vector<8x64xf32>
    %89 = vector.extract_strided_slice %76 {offsets = [0, 128], sizes = [8, 64], strides = [1, 1]} : vector<8x256xf32> to vector<8x64xf32>
    %90 = math.tanh %89 : vector<8x64xf32>
    %91 = vector.extract_strided_slice %76 {offsets = [0, 192], sizes = [8, 64], strides = [1, 1]} : vector<8x256xf32> to vector<8x64xf32>
    %92 = arith.negf %91 : vector<8x64xf32>
    %93 = math.exp %92 : vector<8x64xf32>
    %cst_33 = arith.constant 1.000000e+00 : f32
    %94 = vector.broadcast %cst_33 : f32 to vector<8x64xf32>
    %95 = arith.addf %94, %93 : vector<8x64xf32>
    %96 = arith.divf %94, %95 : vector<8x64xf32>
    %97 = arith.mulf %88, %70 : vector<8x64xf32>
    %98 = arith.mulf %82, %90 : vector<8x64xf32>
    %99 = arith.addf %97, %98 : vector<8x64xf32>
    %100 = math.tanh %99 : vector<8x64xf32>
    %101 = arith.mulf %96, %100 : vector<8x64xf32>
    %102 = vector.extract_strided_slice %40 {offsets = [2, 0, 0], sizes = [1, 8, 256], strides = [1, 1, 1]} : vector<16x8x256xf32> to vector<1x8x256xf32>
    %103 = vector.shape_cast %102 : vector<1x8x256xf32> to vector<8x256xf32>
    %cst_34 = arith.constant dense<0.000000e+00> : vector<8x256xf32>
    %104 = tpu.matmul %101, %41, %cst_34 {dimension_numbers = #tpu.dot_dimension_numbers<[1], [0], [0], [1], [0, 0, 1, 1], [], []>} : vector<8x64xf32>, vector<64x256xf32>, vector<8x256xf32> -> vector<8x256xf32>
    %105 = arith.addf %103, %104 : vector<8x256xf32>
    %106 = vector.extract_strided_slice %105 {offsets = [0, 0], sizes = [8, 64], strides = [1, 1]} : vector<8x256xf32> to vector<8x64xf32>
    %107 = arith.negf %106 : vector<8x64xf32>
    %108 = math.exp %107 : vector<8x64xf32>
    %cst_35 = arith.constant 1.000000e+00 : f32
    %109 = vector.broadcast %cst_35 : f32 to vector<8x64xf32>
    %110 = arith.addf %109, %108 : vector<8x64xf32>
    %111 = arith.divf %109, %110 : vector<8x64xf32>
    %112 = vector.extract_strided_slice %105 {offsets = [0, 64], sizes = [8, 64], strides = [1, 1]} : vector<8x256xf32> to vector<8x64xf32>
    %113 = arith.negf %112 : vector<8x64xf32>
    %114 = math.exp %113 : vector<8x64xf32>
    %cst_36 = arith.constant 1.000000e+00 : f32
    %115 = vector.broadcast %cst_36 : f32 to vector<8x64xf32>
    %116 = arith.addf %115, %114 : vector<8x64xf32>
    %117 = arith.divf %115, %116 : vector<8x64xf32>
    %118 = vector.extract_strided_slice %105 {offsets = [0, 128], sizes = [8, 64], strides = [1, 1]} : vector<8x256xf32> to vector<8x64xf32>
    %119 = math.tanh %118 : vector<8x64xf32>
    %120 = vector.extract_strided_slice %105 {offsets = [0, 192], sizes = [8, 64], strides = [1, 1]} : vector<8x256xf32> to vector<8x64xf32>
    %121 = arith.negf %120 : vector<8x64xf32>
    %122 = math.exp %121 : vector<8x64xf32>
    %cst_37 = arith.constant 1.000000e+00 : f32
    %123 = vector.broadcast %cst_37 : f32 to vector<8x64xf32>
    %124 = arith.addf %123, %122 : vector<8x64xf32>
    %125 = arith.divf %123, %124 : vector<8x64xf32>
    %126 = arith.mulf %117, %99 : vector<8x64xf32>
    %127 = arith.mulf %111, %119 : vector<8x64xf32>
    %128 = arith.addf %126, %127 : vector<8x64xf32>
    %129 = math.tanh %128 : vector<8x64xf32>
    %130 = arith.mulf %125, %129 : vector<8x64xf32>
    %131 = vector.extract_strided_slice %40 {offsets = [3, 0, 0], sizes = [1, 8, 256], strides = [1, 1, 1]} : vector<16x8x256xf32> to vector<1x8x256xf32>
    %132 = vector.shape_cast %131 : vector<1x8x256xf32> to vector<8x256xf32>
    %cst_38 = arith.constant dense<0.000000e+00> : vector<8x256xf32>
    %133 = tpu.matmul %130, %41, %cst_38 {dimension_numbers = #tpu.dot_dimension_numbers<[1], [0], [0], [1], [0, 0, 1, 1], [], []>} : vector<8x64xf32>, vector<64x256xf32>, vector<8x256xf32> -> vector<8x256xf32>
    %134 = arith.addf %132, %133 : vector<8x256xf32>
    %135 = vector.extract_strided_slice %134 {offsets = [0, 0], sizes = [8, 64], strides = [1, 1]} : vector<8x256xf32> to vector<8x64xf32>
    %136 = arith.negf %135 : vector<8x64xf32>
    %137 = math.exp %136 : vector<8x64xf32>
    %cst_39 = arith.constant 1.000000e+00 : f32
    %138 = vector.broadcast %cst_39 : f32 to vector<8x64xf32>
    %139 = arith.addf %138, %137 : vector<8x64xf32>
    %140 = arith.divf %138, %139 : vector<8x64xf32>
    %141 = vector.extract_strided_slice %134 {offsets = [0, 64], sizes = [8, 64], strides = [1, 1]} : vector<8x256xf32> to vector<8x64xf32>
    %142 = arith.negf %141 : vector<8x64xf32>
    %143 = math.exp %142 : vector<8x64xf32>
    %cst_40 = arith.constant 1.000000e+00 : f32
    %144 = vector.broadcast %cst_40 : f32 to vector<8x64xf32>
    %145 = arith.addf %144, %143 : vector<8x64xf32>
    %146 = arith.divf %144, %145 : vector<8x64xf32>
    %147 = vector.extract_strided_slice %134 {offsets = [0, 128], sizes = [8, 64], strides = [1, 1]} : vector<8x256xf32> to vector<8x64xf32>
    %148 = math.tanh %147 : vector<8x64xf32>
    %149 = vector.extract_strided_slice %134 {offsets = [0, 192], sizes = [8, 64], strides = [1, 1]} : vector<8x256xf32> to vector<8x64xf32>
    %150 = arith.negf %149 : vector<8x64xf32>
    %151 = math.exp %150 : vector<8x64xf32>
    %cst_41 = arith.constant 1.000000e+00 : f32
    %152 = vector.broadcast %cst_41 : f32 to vector<8x64xf32>
    %153 = arith.addf %152, %151 : vector<8x64xf32>
    %154 = arith.divf %152, %153 : vector<8x64xf32>
    %155 = arith.mulf %146, %128 : vector<8x64xf32>
    %156 = arith.mulf %140, %148 : vector<8x64xf32>
    %157 = arith.addf %155, %156 : vector<8x64xf32>
    %158 = math.tanh %157 : vector<8x64xf32>
    %159 = arith.mulf %154, %158 : vector<8x64xf32>
    %160 = vector.extract_strided_slice %40 {offsets = [4, 0, 0], sizes = [1, 8, 256], strides = [1, 1, 1]} : vector<16x8x256xf32> to vector<1x8x256xf32>
    %161 = vector.shape_cast %160 : vector<1x8x256xf32> to vector<8x256xf32>
    %cst_42 = arith.constant dense<0.000000e+00> : vector<8x256xf32>
    %162 = tpu.matmul %159, %41, %cst_42 {dimension_numbers = #tpu.dot_dimension_numbers<[1], [0], [0], [1], [0, 0, 1, 1], [], []>} : vector<8x64xf32>, vector<64x256xf32>, vector<8x256xf32> -> vector<8x256xf32>
    %163 = arith.addf %161, %162 : vector<8x256xf32>
    %164 = vector.extract_strided_slice %163 {offsets = [0, 0], sizes = [8, 64], strides = [1, 1]} : vector<8x256xf32> to vector<8x64xf32>
    %165 = arith.negf %164 : vector<8x64xf32>
    %166 = math.exp %165 : vector<8x64xf32>
    %cst_43 = arith.constant 1.000000e+00 : f32
    %167 = vector.broadcast %cst_43 : f32 to vector<8x64xf32>
    %168 = arith.addf %167, %166 : vector<8x64xf32>
    %169 = arith.divf %167, %168 : vector<8x64xf32>
    %170 = vector.extract_strided_slice %163 {offsets = [0, 64], sizes = [8, 64], strides = [1, 1]} : vector<8x256xf32> to vector<8x64xf32>
    %171 = arith.negf %170 : vector<8x64xf32>
    %172 = math.exp %171 : vector<8x64xf32>
    %cst_44 = arith.constant 1.000000e+00 : f32
    %173 = vector.broadcast %cst_44 : f32 to vector<8x64xf32>
    %174 = arith.addf %173, %172 : vector<8x64xf32>
    %175 = arith.divf %173, %174 : vector<8x64xf32>
    %176 = vector.extract_strided_slice %163 {offsets = [0, 128], sizes = [8, 64], strides = [1, 1]} : vector<8x256xf32> to vector<8x64xf32>
    %177 = math.tanh %176 : vector<8x64xf32>
    %178 = vector.extract_strided_slice %163 {offsets = [0, 192], sizes = [8, 64], strides = [1, 1]} : vector<8x256xf32> to vector<8x64xf32>
    %179 = arith.negf %178 : vector<8x64xf32>
    %180 = math.exp %179 : vector<8x64xf32>
    %cst_45 = arith.constant 1.000000e+00 : f32
    %181 = vector.broadcast %cst_45 : f32 to vector<8x64xf32>
    %182 = arith.addf %181, %180 : vector<8x64xf32>
    %183 = arith.divf %181, %182 : vector<8x64xf32>
    %184 = arith.mulf %175, %157 : vector<8x64xf32>
    %185 = arith.mulf %169, %177 : vector<8x64xf32>
    %186 = arith.addf %184, %185 : vector<8x64xf32>
    %187 = math.tanh %186 : vector<8x64xf32>
    %188 = arith.mulf %183, %187 : vector<8x64xf32>
    %189 = vector.extract_strided_slice %40 {offsets = [5, 0, 0], sizes = [1, 8, 256], strides = [1, 1, 1]} : vector<16x8x256xf32> to vector<1x8x256xf32>
    %190 = vector.shape_cast %189 : vector<1x8x256xf32> to vector<8x256xf32>
    %cst_46 = arith.constant dense<0.000000e+00> : vector<8x256xf32>
    %191 = tpu.matmul %188, %41, %cst_46 {dimension_numbers = #tpu.dot_dimension_numbers<[1], [0], [0], [1], [0, 0, 1, 1], [], []>} : vector<8x64xf32>, vector<64x256xf32>, vector<8x256xf32> -> vector<8x256xf32>
    %192 = arith.addf %190, %191 : vector<8x256xf32>
    %193 = vector.extract_strided_slice %192 {offsets = [0, 0], sizes = [8, 64], strides = [1, 1]} : vector<8x256xf32> to vector<8x64xf32>
    %194 = arith.negf %193 : vector<8x64xf32>
    %195 = math.exp %194 : vector<8x64xf32>
    %cst_47 = arith.constant 1.000000e+00 : f32
    %196 = vector.broadcast %cst_47 : f32 to vector<8x64xf32>
    %197 = arith.addf %196, %195 : vector<8x64xf32>
    %198 = arith.divf %196, %197 : vector<8x64xf32>
    %199 = vector.extract_strided_slice %192 {offsets = [0, 64], sizes = [8, 64], strides = [1, 1]} : vector<8x256xf32> to vector<8x64xf32>
    %200 = arith.negf %199 : vector<8x64xf32>
    %201 = math.exp %200 : vector<8x64xf32>
    %cst_48 = arith.constant 1.000000e+00 : f32
    %202 = vector.broadcast %cst_48 : f32 to vector<8x64xf32>
    %203 = arith.addf %202, %201 : vector<8x64xf32>
    %204 = arith.divf %202, %203 : vector<8x64xf32>
    %205 = vector.extract_strided_slice %192 {offsets = [0, 128], sizes = [8, 64], strides = [1, 1]} : vector<8x256xf32> to vector<8x64xf32>
    %206 = math.tanh %205 : vector<8x64xf32>
    %207 = vector.extract_strided_slice %192 {offsets = [0, 192], sizes = [8, 64], strides = [1, 1]} : vector<8x256xf32> to vector<8x64xf32>
    %208 = arith.negf %207 : vector<8x64xf32>
    %209 = math.exp %208 : vector<8x64xf32>
    %cst_49 = arith.constant 1.000000e+00 : f32
    %210 = vector.broadcast %cst_49 : f32 to vector<8x64xf32>
    %211 = arith.addf %210, %209 : vector<8x64xf32>
    %212 = arith.divf %210, %211 : vector<8x64xf32>
    %213 = arith.mulf %204, %186 : vector<8x64xf32>
    %214 = arith.mulf %198, %206 : vector<8x64xf32>
    %215 = arith.addf %213, %214 : vector<8x64xf32>
    %216 = math.tanh %215 : vector<8x64xf32>
    %217 = arith.mulf %212, %216 : vector<8x64xf32>
    %218 = vector.extract_strided_slice %40 {offsets = [6, 0, 0], sizes = [1, 8, 256], strides = [1, 1, 1]} : vector<16x8x256xf32> to vector<1x8x256xf32>
    %219 = vector.shape_cast %218 : vector<1x8x256xf32> to vector<8x256xf32>
    %cst_50 = arith.constant dense<0.000000e+00> : vector<8x256xf32>
    %220 = tpu.matmul %217, %41, %cst_50 {dimension_numbers = #tpu.dot_dimension_numbers<[1], [0], [0], [1], [0, 0, 1, 1], [], []>} : vector<8x64xf32>, vector<64x256xf32>, vector<8x256xf32> -> vector<8x256xf32>
    %221 = arith.addf %219, %220 : vector<8x256xf32>
    %222 = vector.extract_strided_slice %221 {offsets = [0, 0], sizes = [8, 64], strides = [1, 1]} : vector<8x256xf32> to vector<8x64xf32>
    %223 = arith.negf %222 : vector<8x64xf32>
    %224 = math.exp %223 : vector<8x64xf32>
    %cst_51 = arith.constant 1.000000e+00 : f32
    %225 = vector.broadcast %cst_51 : f32 to vector<8x64xf32>
    %226 = arith.addf %225, %224 : vector<8x64xf32>
    %227 = arith.divf %225, %226 : vector<8x64xf32>
    %228 = vector.extract_strided_slice %221 {offsets = [0, 64], sizes = [8, 64], strides = [1, 1]} : vector<8x256xf32> to vector<8x64xf32>
    %229 = arith.negf %228 : vector<8x64xf32>
    %230 = math.exp %229 : vector<8x64xf32>
    %cst_52 = arith.constant 1.000000e+00 : f32
    %231 = vector.broadcast %cst_52 : f32 to vector<8x64xf32>
    %232 = arith.addf %231, %230 : vector<8x64xf32>
    %233 = arith.divf %231, %232 : vector<8x64xf32>
    %234 = vector.extract_strided_slice %221 {offsets = [0, 128], sizes = [8, 64], strides = [1, 1]} : vector<8x256xf32> to vector<8x64xf32>
    %235 = math.tanh %234 : vector<8x64xf32>
    %236 = vector.extract_strided_slice %221 {offsets = [0, 192], sizes = [8, 64], strides = [1, 1]} : vector<8x256xf32> to vector<8x64xf32>
    %237 = arith.negf %236 : vector<8x64xf32>
    %238 = math.exp %237 : vector<8x64xf32>
    %cst_53 = arith.constant 1.000000e+00 : f32
    %239 = vector.broadcast %cst_53 : f32 to vector<8x64xf32>
    %240 = arith.addf %239, %238 : vector<8x64xf32>
    %241 = arith.divf %239, %240 : vector<8x64xf32>
    %242 = arith.mulf %233, %215 : vector<8x64xf32>
    %243 = arith.mulf %227, %235 : vector<8x64xf32>
    %244 = arith.addf %242, %243 : vector<8x64xf32>
    %245 = math.tanh %244 : vector<8x64xf32>
    %246 = arith.mulf %241, %245 : vector<8x64xf32>
    %247 = vector.extract_strided_slice %40 {offsets = [7, 0, 0], sizes = [1, 8, 256], strides = [1, 1, 1]} : vector<16x8x256xf32> to vector<1x8x256xf32>
    %248 = vector.shape_cast %247 : vector<1x8x256xf32> to vector<8x256xf32>
    %cst_54 = arith.constant dense<0.000000e+00> : vector<8x256xf32>
    %249 = tpu.matmul %246, %41, %cst_54 {dimension_numbers = #tpu.dot_dimension_numbers<[1], [0], [0], [1], [0, 0, 1, 1], [], []>} : vector<8x64xf32>, vector<64x256xf32>, vector<8x256xf32> -> vector<8x256xf32>
    %250 = arith.addf %248, %249 : vector<8x256xf32>
    %251 = vector.extract_strided_slice %250 {offsets = [0, 0], sizes = [8, 64], strides = [1, 1]} : vector<8x256xf32> to vector<8x64xf32>
    %252 = arith.negf %251 : vector<8x64xf32>
    %253 = math.exp %252 : vector<8x64xf32>
    %cst_55 = arith.constant 1.000000e+00 : f32
    %254 = vector.broadcast %cst_55 : f32 to vector<8x64xf32>
    %255 = arith.addf %254, %253 : vector<8x64xf32>
    %256 = arith.divf %254, %255 : vector<8x64xf32>
    %257 = vector.extract_strided_slice %250 {offsets = [0, 64], sizes = [8, 64], strides = [1, 1]} : vector<8x256xf32> to vector<8x64xf32>
    %258 = arith.negf %257 : vector<8x64xf32>
    %259 = math.exp %258 : vector<8x64xf32>
    %cst_56 = arith.constant 1.000000e+00 : f32
    %260 = vector.broadcast %cst_56 : f32 to vector<8x64xf32>
    %261 = arith.addf %260, %259 : vector<8x64xf32>
    %262 = arith.divf %260, %261 : vector<8x64xf32>
    %263 = vector.extract_strided_slice %250 {offsets = [0, 128], sizes = [8, 64], strides = [1, 1]} : vector<8x256xf32> to vector<8x64xf32>
    %264 = math.tanh %263 : vector<8x64xf32>
    %265 = vector.extract_strided_slice %250 {offsets = [0, 192], sizes = [8, 64], strides = [1, 1]} : vector<8x256xf32> to vector<8x64xf32>
    %266 = arith.negf %265 : vector<8x64xf32>
    %267 = math.exp %266 : vector<8x64xf32>
    %cst_57 = arith.constant 1.000000e+00 : f32
    %268 = vector.broadcast %cst_57 : f32 to vector<8x64xf32>
    %269 = arith.addf %268, %267 : vector<8x64xf32>
    %270 = arith.divf %268, %269 : vector<8x64xf32>
    %271 = arith.mulf %262, %244 : vector<8x64xf32>
    %272 = arith.mulf %256, %264 : vector<8x64xf32>
    %273 = arith.addf %271, %272 : vector<8x64xf32>
    %274 = math.tanh %273 : vector<8x64xf32>
    %275 = arith.mulf %270, %274 : vector<8x64xf32>
    %276 = vector.extract_strided_slice %40 {offsets = [8, 0, 0], sizes = [1, 8, 256], strides = [1, 1, 1]} : vector<16x8x256xf32> to vector<1x8x256xf32>
    %277 = vector.shape_cast %276 : vector<1x8x256xf32> to vector<8x256xf32>
    %cst_58 = arith.constant dense<0.000000e+00> : vector<8x256xf32>
    %278 = tpu.matmul %275, %41, %cst_58 {dimension_numbers = #tpu.dot_dimension_numbers<[1], [0], [0], [1], [0, 0, 1, 1], [], []>} : vector<8x64xf32>, vector<64x256xf32>, vector<8x256xf32> -> vector<8x256xf32>
    %279 = arith.addf %277, %278 : vector<8x256xf32>
    %280 = vector.extract_strided_slice %279 {offsets = [0, 0], sizes = [8, 64], strides = [1, 1]} : vector<8x256xf32> to vector<8x64xf32>
    %281 = arith.negf %280 : vector<8x64xf32>
    %282 = math.exp %281 : vector<8x64xf32>
    %cst_59 = arith.constant 1.000000e+00 : f32
    %283 = vector.broadcast %cst_59 : f32 to vector<8x64xf32>
    %284 = arith.addf %283, %282 : vector<8x64xf32>
    %285 = arith.divf %283, %284 : vector<8x64xf32>
    %286 = vector.extract_strided_slice %279 {offsets = [0, 64], sizes = [8, 64], strides = [1, 1]} : vector<8x256xf32> to vector<8x64xf32>
    %287 = arith.negf %286 : vector<8x64xf32>
    %288 = math.exp %287 : vector<8x64xf32>
    %cst_60 = arith.constant 1.000000e+00 : f32
    %289 = vector.broadcast %cst_60 : f32 to vector<8x64xf32>
    %290 = arith.addf %289, %288 : vector<8x64xf32>
    %291 = arith.divf %289, %290 : vector<8x64xf32>
    %292 = vector.extract_strided_slice %279 {offsets = [0, 128], sizes = [8, 64], strides = [1, 1]} : vector<8x256xf32> to vector<8x64xf32>
    %293 = math.tanh %292 : vector<8x64xf32>
    %294 = vector.extract_strided_slice %279 {offsets = [0, 192], sizes = [8, 64], strides = [1, 1]} : vector<8x256xf32> to vector<8x64xf32>
    %295 = arith.negf %294 : vector<8x64xf32>
    %296 = math.exp %295 : vector<8x64xf32>
    %cst_61 = arith.constant 1.000000e+00 : f32
    %297 = vector.broadcast %cst_61 : f32 to vector<8x64xf32>
    %298 = arith.addf %297, %296 : vector<8x64xf32>
    %299 = arith.divf %297, %298 : vector<8x64xf32>
    %300 = arith.mulf %291, %273 : vector<8x64xf32>
    %301 = arith.mulf %285, %293 : vector<8x64xf32>
    %302 = arith.addf %300, %301 : vector<8x64xf32>
    %303 = math.tanh %302 : vector<8x64xf32>
    %304 = arith.mulf %299, %303 : vector<8x64xf32>
    %305 = vector.extract_strided_slice %40 {offsets = [9, 0, 0], sizes = [1, 8, 256], strides = [1, 1, 1]} : vector<16x8x256xf32> to vector<1x8x256xf32>
    %306 = vector.shape_cast %305 : vector<1x8x256xf32> to vector<8x256xf32>
    %cst_62 = arith.constant dense<0.000000e+00> : vector<8x256xf32>
    %307 = tpu.matmul %304, %41, %cst_62 {dimension_numbers = #tpu.dot_dimension_numbers<[1], [0], [0], [1], [0, 0, 1, 1], [], []>} : vector<8x64xf32>, vector<64x256xf32>, vector<8x256xf32> -> vector<8x256xf32>
    %308 = arith.addf %306, %307 : vector<8x256xf32>
    %309 = vector.extract_strided_slice %308 {offsets = [0, 0], sizes = [8, 64], strides = [1, 1]} : vector<8x256xf32> to vector<8x64xf32>
    %310 = arith.negf %309 : vector<8x64xf32>
    %311 = math.exp %310 : vector<8x64xf32>
    %cst_63 = arith.constant 1.000000e+00 : f32
    %312 = vector.broadcast %cst_63 : f32 to vector<8x64xf32>
    %313 = arith.addf %312, %311 : vector<8x64xf32>
    %314 = arith.divf %312, %313 : vector<8x64xf32>
    %315 = vector.extract_strided_slice %308 {offsets = [0, 64], sizes = [8, 64], strides = [1, 1]} : vector<8x256xf32> to vector<8x64xf32>
    %316 = arith.negf %315 : vector<8x64xf32>
    %317 = math.exp %316 : vector<8x64xf32>
    %cst_64 = arith.constant 1.000000e+00 : f32
    %318 = vector.broadcast %cst_64 : f32 to vector<8x64xf32>
    %319 = arith.addf %318, %317 : vector<8x64xf32>
    %320 = arith.divf %318, %319 : vector<8x64xf32>
    %321 = vector.extract_strided_slice %308 {offsets = [0, 128], sizes = [8, 64], strides = [1, 1]} : vector<8x256xf32> to vector<8x64xf32>
    %322 = math.tanh %321 : vector<8x64xf32>
    %323 = vector.extract_strided_slice %308 {offsets = [0, 192], sizes = [8, 64], strides = [1, 1]} : vector<8x256xf32> to vector<8x64xf32>
    %324 = arith.negf %323 : vector<8x64xf32>
    %325 = math.exp %324 : vector<8x64xf32>
    %cst_65 = arith.constant 1.000000e+00 : f32
    %326 = vector.broadcast %cst_65 : f32 to vector<8x64xf32>
    %327 = arith.addf %326, %325 : vector<8x64xf32>
    %328 = arith.divf %326, %327 : vector<8x64xf32>
    %329 = arith.mulf %320, %302 : vector<8x64xf32>
    %330 = arith.mulf %314, %322 : vector<8x64xf32>
    %331 = arith.addf %329, %330 : vector<8x64xf32>
    %332 = math.tanh %331 : vector<8x64xf32>
    %333 = arith.mulf %328, %332 : vector<8x64xf32>
    %334 = vector.extract_strided_slice %40 {offsets = [10, 0, 0], sizes = [1, 8, 256], strides = [1, 1, 1]} : vector<16x8x256xf32> to vector<1x8x256xf32>
    %335 = vector.shape_cast %334 : vector<1x8x256xf32> to vector<8x256xf32>
    %cst_66 = arith.constant dense<0.000000e+00> : vector<8x256xf32>
    %336 = tpu.matmul %333, %41, %cst_66 {dimension_numbers = #tpu.dot_dimension_numbers<[1], [0], [0], [1], [0, 0, 1, 1], [], []>} : vector<8x64xf32>, vector<64x256xf32>, vector<8x256xf32> -> vector<8x256xf32>
    %337 = arith.addf %335, %336 : vector<8x256xf32>
    %338 = vector.extract_strided_slice %337 {offsets = [0, 0], sizes = [8, 64], strides = [1, 1]} : vector<8x256xf32> to vector<8x64xf32>
    %339 = arith.negf %338 : vector<8x64xf32>
    %340 = math.exp %339 : vector<8x64xf32>
    %cst_67 = arith.constant 1.000000e+00 : f32
    %341 = vector.broadcast %cst_67 : f32 to vector<8x64xf32>
    %342 = arith.addf %341, %340 : vector<8x64xf32>
    %343 = arith.divf %341, %342 : vector<8x64xf32>
    %344 = vector.extract_strided_slice %337 {offsets = [0, 64], sizes = [8, 64], strides = [1, 1]} : vector<8x256xf32> to vector<8x64xf32>
    %345 = arith.negf %344 : vector<8x64xf32>
    %346 = math.exp %345 : vector<8x64xf32>
    %cst_68 = arith.constant 1.000000e+00 : f32
    %347 = vector.broadcast %cst_68 : f32 to vector<8x64xf32>
    %348 = arith.addf %347, %346 : vector<8x64xf32>
    %349 = arith.divf %347, %348 : vector<8x64xf32>
    %350 = vector.extract_strided_slice %337 {offsets = [0, 128], sizes = [8, 64], strides = [1, 1]} : vector<8x256xf32> to vector<8x64xf32>
    %351 = math.tanh %350 : vector<8x64xf32>
    %352 = vector.extract_strided_slice %337 {offsets = [0, 192], sizes = [8, 64], strides = [1, 1]} : vector<8x256xf32> to vector<8x64xf32>
    %353 = arith.negf %352 : vector<8x64xf32>
    %354 = math.exp %353 : vector<8x64xf32>
    %cst_69 = arith.constant 1.000000e+00 : f32
    %355 = vector.broadcast %cst_69 : f32 to vector<8x64xf32>
    %356 = arith.addf %355, %354 : vector<8x64xf32>
    %357 = arith.divf %355, %356 : vector<8x64xf32>
    %358 = arith.mulf %349, %331 : vector<8x64xf32>
    %359 = arith.mulf %343, %351 : vector<8x64xf32>
    %360 = arith.addf %358, %359 : vector<8x64xf32>
    %361 = math.tanh %360 : vector<8x64xf32>
    %362 = arith.mulf %357, %361 : vector<8x64xf32>
    %363 = vector.extract_strided_slice %40 {offsets = [11, 0, 0], sizes = [1, 8, 256], strides = [1, 1, 1]} : vector<16x8x256xf32> to vector<1x8x256xf32>
    %364 = vector.shape_cast %363 : vector<1x8x256xf32> to vector<8x256xf32>
    %cst_70 = arith.constant dense<0.000000e+00> : vector<8x256xf32>
    %365 = tpu.matmul %362, %41, %cst_70 {dimension_numbers = #tpu.dot_dimension_numbers<[1], [0], [0], [1], [0, 0, 1, 1], [], []>} : vector<8x64xf32>, vector<64x256xf32>, vector<8x256xf32> -> vector<8x256xf32>
    %366 = arith.addf %364, %365 : vector<8x256xf32>
    %367 = vector.extract_strided_slice %366 {offsets = [0, 0], sizes = [8, 64], strides = [1, 1]} : vector<8x256xf32> to vector<8x64xf32>
    %368 = arith.negf %367 : vector<8x64xf32>
    %369 = math.exp %368 : vector<8x64xf32>
    %cst_71 = arith.constant 1.000000e+00 : f32
    %370 = vector.broadcast %cst_71 : f32 to vector<8x64xf32>
    %371 = arith.addf %370, %369 : vector<8x64xf32>
    %372 = arith.divf %370, %371 : vector<8x64xf32>
    %373 = vector.extract_strided_slice %366 {offsets = [0, 64], sizes = [8, 64], strides = [1, 1]} : vector<8x256xf32> to vector<8x64xf32>
    %374 = arith.negf %373 : vector<8x64xf32>
    %375 = math.exp %374 : vector<8x64xf32>
    %cst_72 = arith.constant 1.000000e+00 : f32
    %376 = vector.broadcast %cst_72 : f32 to vector<8x64xf32>
    %377 = arith.addf %376, %375 : vector<8x64xf32>
    %378 = arith.divf %376, %377 : vector<8x64xf32>
    %379 = vector.extract_strided_slice %366 {offsets = [0, 128], sizes = [8, 64], strides = [1, 1]} : vector<8x256xf32> to vector<8x64xf32>
    %380 = math.tanh %379 : vector<8x64xf32>
    %381 = vector.extract_strided_slice %366 {offsets = [0, 192], sizes = [8, 64], strides = [1, 1]} : vector<8x256xf32> to vector<8x64xf32>
    %382 = arith.negf %381 : vector<8x64xf32>
    %383 = math.exp %382 : vector<8x64xf32>
    %cst_73 = arith.constant 1.000000e+00 : f32
    %384 = vector.broadcast %cst_73 : f32 to vector<8x64xf32>
    %385 = arith.addf %384, %383 : vector<8x64xf32>
    %386 = arith.divf %384, %385 : vector<8x64xf32>
    %387 = arith.mulf %378, %360 : vector<8x64xf32>
    %388 = arith.mulf %372, %380 : vector<8x64xf32>
    %389 = arith.addf %387, %388 : vector<8x64xf32>
    %390 = math.tanh %389 : vector<8x64xf32>
    %391 = arith.mulf %386, %390 : vector<8x64xf32>
    %392 = vector.extract_strided_slice %40 {offsets = [12, 0, 0], sizes = [1, 8, 256], strides = [1, 1, 1]} : vector<16x8x256xf32> to vector<1x8x256xf32>
    %393 = vector.shape_cast %392 : vector<1x8x256xf32> to vector<8x256xf32>
    %cst_74 = arith.constant dense<0.000000e+00> : vector<8x256xf32>
    %394 = tpu.matmul %391, %41, %cst_74 {dimension_numbers = #tpu.dot_dimension_numbers<[1], [0], [0], [1], [0, 0, 1, 1], [], []>} : vector<8x64xf32>, vector<64x256xf32>, vector<8x256xf32> -> vector<8x256xf32>
    %395 = arith.addf %393, %394 : vector<8x256xf32>
    %396 = vector.extract_strided_slice %395 {offsets = [0, 0], sizes = [8, 64], strides = [1, 1]} : vector<8x256xf32> to vector<8x64xf32>
    %397 = arith.negf %396 : vector<8x64xf32>
    %398 = math.exp %397 : vector<8x64xf32>
    %cst_75 = arith.constant 1.000000e+00 : f32
    %399 = vector.broadcast %cst_75 : f32 to vector<8x64xf32>
    %400 = arith.addf %399, %398 : vector<8x64xf32>
    %401 = arith.divf %399, %400 : vector<8x64xf32>
    %402 = vector.extract_strided_slice %395 {offsets = [0, 64], sizes = [8, 64], strides = [1, 1]} : vector<8x256xf32> to vector<8x64xf32>
    %403 = arith.negf %402 : vector<8x64xf32>
    %404 = math.exp %403 : vector<8x64xf32>
    %cst_76 = arith.constant 1.000000e+00 : f32
    %405 = vector.broadcast %cst_76 : f32 to vector<8x64xf32>
    %406 = arith.addf %405, %404 : vector<8x64xf32>
    %407 = arith.divf %405, %406 : vector<8x64xf32>
    %408 = vector.extract_strided_slice %395 {offsets = [0, 128], sizes = [8, 64], strides = [1, 1]} : vector<8x256xf32> to vector<8x64xf32>
    %409 = math.tanh %408 : vector<8x64xf32>
    %410 = vector.extract_strided_slice %395 {offsets = [0, 192], sizes = [8, 64], strides = [1, 1]} : vector<8x256xf32> to vector<8x64xf32>
    %411 = arith.negf %410 : vector<8x64xf32>
    %412 = math.exp %411 : vector<8x64xf32>
    %cst_77 = arith.constant 1.000000e+00 : f32
    %413 = vector.broadcast %cst_77 : f32 to vector<8x64xf32>
    %414 = arith.addf %413, %412 : vector<8x64xf32>
    %415 = arith.divf %413, %414 : vector<8x64xf32>
    %416 = arith.mulf %407, %389 : vector<8x64xf32>
    %417 = arith.mulf %401, %409 : vector<8x64xf32>
    %418 = arith.addf %416, %417 : vector<8x64xf32>
    %419 = math.tanh %418 : vector<8x64xf32>
    %420 = arith.mulf %415, %419 : vector<8x64xf32>
    %421 = vector.extract_strided_slice %40 {offsets = [13, 0, 0], sizes = [1, 8, 256], strides = [1, 1, 1]} : vector<16x8x256xf32> to vector<1x8x256xf32>
    %422 = vector.shape_cast %421 : vector<1x8x256xf32> to vector<8x256xf32>
    %cst_78 = arith.constant dense<0.000000e+00> : vector<8x256xf32>
    %423 = tpu.matmul %420, %41, %cst_78 {dimension_numbers = #tpu.dot_dimension_numbers<[1], [0], [0], [1], [0, 0, 1, 1], [], []>} : vector<8x64xf32>, vector<64x256xf32>, vector<8x256xf32> -> vector<8x256xf32>
    %424 = arith.addf %422, %423 : vector<8x256xf32>
    %425 = vector.extract_strided_slice %424 {offsets = [0, 0], sizes = [8, 64], strides = [1, 1]} : vector<8x256xf32> to vector<8x64xf32>
    %426 = arith.negf %425 : vector<8x64xf32>
    %427 = math.exp %426 : vector<8x64xf32>
    %cst_79 = arith.constant 1.000000e+00 : f32
    %428 = vector.broadcast %cst_79 : f32 to vector<8x64xf32>
    %429 = arith.addf %428, %427 : vector<8x64xf32>
    %430 = arith.divf %428, %429 : vector<8x64xf32>
    %431 = vector.extract_strided_slice %424 {offsets = [0, 64], sizes = [8, 64], strides = [1, 1]} : vector<8x256xf32> to vector<8x64xf32>
    %432 = arith.negf %431 : vector<8x64xf32>
    %433 = math.exp %432 : vector<8x64xf32>
    %cst_80 = arith.constant 1.000000e+00 : f32
    %434 = vector.broadcast %cst_80 : f32 to vector<8x64xf32>
    %435 = arith.addf %434, %433 : vector<8x64xf32>
    %436 = arith.divf %434, %435 : vector<8x64xf32>
    %437 = vector.extract_strided_slice %424 {offsets = [0, 128], sizes = [8, 64], strides = [1, 1]} : vector<8x256xf32> to vector<8x64xf32>
    %438 = math.tanh %437 : vector<8x64xf32>
    %439 = vector.extract_strided_slice %424 {offsets = [0, 192], sizes = [8, 64], strides = [1, 1]} : vector<8x256xf32> to vector<8x64xf32>
    %440 = arith.negf %439 : vector<8x64xf32>
    %441 = math.exp %440 : vector<8x64xf32>
    %cst_81 = arith.constant 1.000000e+00 : f32
    %442 = vector.broadcast %cst_81 : f32 to vector<8x64xf32>
    %443 = arith.addf %442, %441 : vector<8x64xf32>
    %444 = arith.divf %442, %443 : vector<8x64xf32>
    %445 = arith.mulf %436, %418 : vector<8x64xf32>
    %446 = arith.mulf %430, %438 : vector<8x64xf32>
    %447 = arith.addf %445, %446 : vector<8x64xf32>
    %448 = math.tanh %447 : vector<8x64xf32>
    %449 = arith.mulf %444, %448 : vector<8x64xf32>
    %450 = vector.extract_strided_slice %40 {offsets = [14, 0, 0], sizes = [1, 8, 256], strides = [1, 1, 1]} : vector<16x8x256xf32> to vector<1x8x256xf32>
    %451 = vector.shape_cast %450 : vector<1x8x256xf32> to vector<8x256xf32>
    %cst_82 = arith.constant dense<0.000000e+00> : vector<8x256xf32>
    %452 = tpu.matmul %449, %41, %cst_82 {dimension_numbers = #tpu.dot_dimension_numbers<[1], [0], [0], [1], [0, 0, 1, 1], [], []>} : vector<8x64xf32>, vector<64x256xf32>, vector<8x256xf32> -> vector<8x256xf32>
    %453 = arith.addf %451, %452 : vector<8x256xf32>
    %454 = vector.extract_strided_slice %453 {offsets = [0, 0], sizes = [8, 64], strides = [1, 1]} : vector<8x256xf32> to vector<8x64xf32>
    %455 = arith.negf %454 : vector<8x64xf32>
    %456 = math.exp %455 : vector<8x64xf32>
    %cst_83 = arith.constant 1.000000e+00 : f32
    %457 = vector.broadcast %cst_83 : f32 to vector<8x64xf32>
    %458 = arith.addf %457, %456 : vector<8x64xf32>
    %459 = arith.divf %457, %458 : vector<8x64xf32>
    %460 = vector.extract_strided_slice %453 {offsets = [0, 64], sizes = [8, 64], strides = [1, 1]} : vector<8x256xf32> to vector<8x64xf32>
    %461 = arith.negf %460 : vector<8x64xf32>
    %462 = math.exp %461 : vector<8x64xf32>
    %cst_84 = arith.constant 1.000000e+00 : f32
    %463 = vector.broadcast %cst_84 : f32 to vector<8x64xf32>
    %464 = arith.addf %463, %462 : vector<8x64xf32>
    %465 = arith.divf %463, %464 : vector<8x64xf32>
    %466 = vector.extract_strided_slice %453 {offsets = [0, 128], sizes = [8, 64], strides = [1, 1]} : vector<8x256xf32> to vector<8x64xf32>
    %467 = math.tanh %466 : vector<8x64xf32>
    %468 = vector.extract_strided_slice %453 {offsets = [0, 192], sizes = [8, 64], strides = [1, 1]} : vector<8x256xf32> to vector<8x64xf32>
    %469 = arith.negf %468 : vector<8x64xf32>
    %470 = math.exp %469 : vector<8x64xf32>
    %cst_85 = arith.constant 1.000000e+00 : f32
    %471 = vector.broadcast %cst_85 : f32 to vector<8x64xf32>
    %472 = arith.addf %471, %470 : vector<8x64xf32>
    %473 = arith.divf %471, %472 : vector<8x64xf32>
    %474 = arith.mulf %465, %447 : vector<8x64xf32>
    %475 = arith.mulf %459, %467 : vector<8x64xf32>
    %476 = arith.addf %474, %475 : vector<8x64xf32>
    %477 = math.tanh %476 : vector<8x64xf32>
    %478 = arith.mulf %473, %477 : vector<8x64xf32>
    %479 = vector.extract_strided_slice %40 {offsets = [15, 0, 0], sizes = [1, 8, 256], strides = [1, 1, 1]} : vector<16x8x256xf32> to vector<1x8x256xf32>
    %480 = vector.shape_cast %479 : vector<1x8x256xf32> to vector<8x256xf32>
    %cst_86 = arith.constant dense<0.000000e+00> : vector<8x256xf32>
    %481 = tpu.matmul %478, %41, %cst_86 {dimension_numbers = #tpu.dot_dimension_numbers<[1], [0], [0], [1], [0, 0, 1, 1], [], []>} : vector<8x64xf32>, vector<64x256xf32>, vector<8x256xf32> -> vector<8x256xf32>
    %482 = arith.addf %480, %481 : vector<8x256xf32>
    %483 = vector.extract_strided_slice %482 {offsets = [0, 0], sizes = [8, 64], strides = [1, 1]} : vector<8x256xf32> to vector<8x64xf32>
    %484 = arith.negf %483 : vector<8x64xf32>
    %485 = math.exp %484 : vector<8x64xf32>
    %cst_87 = arith.constant 1.000000e+00 : f32
    %486 = vector.broadcast %cst_87 : f32 to vector<8x64xf32>
    %487 = arith.addf %486, %485 : vector<8x64xf32>
    %488 = arith.divf %486, %487 : vector<8x64xf32>
    %489 = vector.extract_strided_slice %482 {offsets = [0, 64], sizes = [8, 64], strides = [1, 1]} : vector<8x256xf32> to vector<8x64xf32>
    %490 = arith.negf %489 : vector<8x64xf32>
    %491 = math.exp %490 : vector<8x64xf32>
    %cst_88 = arith.constant 1.000000e+00 : f32
    %492 = vector.broadcast %cst_88 : f32 to vector<8x64xf32>
    %493 = arith.addf %492, %491 : vector<8x64xf32>
    %494 = arith.divf %492, %493 : vector<8x64xf32>
    %495 = vector.extract_strided_slice %482 {offsets = [0, 128], sizes = [8, 64], strides = [1, 1]} : vector<8x256xf32> to vector<8x64xf32>
    %496 = math.tanh %495 : vector<8x64xf32>
    %497 = vector.extract_strided_slice %482 {offsets = [0, 192], sizes = [8, 64], strides = [1, 1]} : vector<8x256xf32> to vector<8x64xf32>
    %498 = arith.negf %497 : vector<8x64xf32>
    %499 = math.exp %498 : vector<8x64xf32>
    %cst_89 = arith.constant 1.000000e+00 : f32
    %500 = vector.broadcast %cst_89 : f32 to vector<8x64xf32>
    %501 = arith.addf %500, %499 : vector<8x64xf32>
    %502 = arith.divf %500, %501 : vector<8x64xf32>
    %503 = arith.mulf %494, %476 : vector<8x64xf32>
    %504 = arith.mulf %488, %496 : vector<8x64xf32>
    %505 = arith.addf %503, %504 : vector<8x64xf32>
    %506 = math.tanh %505 : vector<8x64xf32>
    %507 = arith.mulf %502, %506 : vector<8x64xf32>
    %c0_90 = arith.constant 0 : index
    %c0_91 = arith.constant 0 : index
    %508 = vector.load %arg9[%c0_90, %c0_91] : memref<64x3xf32, #tpu.memory_space<vmem>>, vector<64x3xf32>
    %cst_92 = arith.constant dense<0.000000e+00> : vector<8x3xf32>
    %509 = tpu.matmul %507, %508, %cst_92 {dimension_numbers = #tpu.dot_dimension_numbers<[1], [0], [0], [1], [0, 0, 1, 1], [], []>} : vector<8x64xf32>, vector<64x3xf32>, vector<8x3xf32> -> vector<8x3xf32>
    %c0_93 = arith.constant 0 : index
    %c0_94 = arith.constant 0 : index
    %510 = vector.load %arg10[%c0_93, %c0_94] : memref<1x3xf32, #tpu.memory_space<vmem>>, vector<1x3xf32>
    %511 = vector.broadcast %510 : vector<1x3xf32> to vector<8x3xf32>
    %512 = arith.addf %509, %511 : vector<8x3xf32>
    %c0_95 = arith.constant 0 : index
    %c0_96 = arith.constant 0 : index
    %513 = vector.load %arg11[%c0_95, %c0_96] : memref<8x3xf32, #tpu.memory_space<vmem>>, vector<8x3xf32>
    tpu.vector_store %arg11[%c0_95, %c0_96], %512 {strides = array<i32>} : memref<8x3xf32, #tpu.memory_space<vmem>>, vector<8x3xf32>,
    return
  }
  func.func @transform_0(%arg0: i32) -> (i32, i32, i32) {
    %c0_i32 = arith.constant 0 : i32
    %c0_i32_0 = arith.constant 0 : i32
    %c0_i32_1 = arith.constant 0 : i32
    return %c0_i32, %arg0, %c0_i32_0 : i32, i32, i32
  }
  func.func @transform_1(%arg0: i32) -> (i32, i32) {
    %c0_i32 = arith.constant 0 : i32
    %c0_i32_0 = arith.constant 0 : i32
    %c0_i32_1 = arith.constant 0 : i32
    return %c0_i32, %c0_i32_0 : i32, i32
  }
  func.func @transform_2(%arg0: i32) -> (i32, i32) {
    %c0_i32 = arith.constant 0 : i32
    %c0_i32_0 = arith.constant 0 : i32
    %c0_i32_1 = arith.constant 0 : i32
    return %c0_i32, %c0_i32_0 : i32, i32
  }
  func.func @transform_3(%arg0: i32) -> (i32, i32, i32) {
    %c0_i32 = arith.constant 0 : i32
    %c0_i32_0 = arith.constant 0 : i32
    %c0_i32_1 = arith.constant 0 : i32
    %c0_i32_2 = arith.constant 0 : i32
    return %c0_i32, %c0_i32_0, %c0_i32_1 : i32, i32, i32
  }
  func.func @transform_4(%arg0: i32) -> (i32, i32) {
    %c0_i32 = arith.constant 0 : i32
    %c0_i32_0 = arith.constant 0 : i32
    %c0_i32_1 = arith.constant 0 : i32
    return %c0_i32, %c0_i32_0 : i32, i32
  }
  func.func @transform_5(%arg0: i32) -> (i32, i32) {
    %c0_i32 = arith.constant 0 : i32
    %c0_i32_0 = arith.constant 0 : i32
    %c0_i32_1 = arith.constant 0 : i32
    return %c0_i32, %c0_i32_0 : i32, i32
  }
  func.func @transform_6(%arg0: i32) -> (i32, i32) {
    %c0_i32 = arith.constant 0 : i32
    %c0_i32_0 = arith.constant 0 : i32
    %c0_i32_1 = arith.constant 0 : i32
    return %c0_i32, %c0_i32_0 : i32, i32
  }
  func.func @transform_7(%arg0: i32) -> (i32, i32) {
    %c0_i32 = arith.constant 0 : i32
    %c0_i32_0 = arith.constant 0 : i32
    %c0_i32_1 = arith.constant 0 : i32
    return %c0_i32, %c0_i32_0 : i32, i32
  }
  func.func @transform_8(%arg0: i32) -> (i32, i32) {
    %c0_i32 = arith.constant 0 : i32
    %c0_i32_0 = arith.constant 0 : i32
    %c0_i32_1 = arith.constant 0 : i32
    return %c0_i32, %c0_i32_0 : i32, i32
  }
  func.func @transform_9(%arg0: i32) -> (i32, i32) {
    %c0_i32 = arith.constant 0 : i32
    %c0_i32_0 = arith.constant 0 : i32
    %c0_i32_1 = arith.constant 0 : i32
    return %c0_i32, %c0_i32_0 : i32, i32
  }
  func.func @transform_10(%arg0: i32) -> (i32, i32) {
    %c0_i32 = arith.constant 0 : i32
    %c0_i32_0 = arith.constant 0 : i32
    return %arg0, %c0_i32 : i32, i32
  }
}

</mosaic_0001>

<llo_original>
// kernel: tpu_custom_call.1
$region0: #{tpu_custom_call.1}
  #allocation0 [shape = 'u32[]', space=smem, size = 0x4, offset = 0x4, fixed_abs, tag = 'smem constant byte address 0x4 - core index']
  #allocation1 [shape = 'u32[144,128]{1,0:T(1,128)}', space=vmem, size = 0x12000, scoped, tag = 'internal scratch']
  %s0 = inlined_call_operand.vmem [shape: f32[16,8,3], index: 0, kind: input, shape index: {}]
  %s1 = inlined_call_operand.vmem [shape: f32[3,64], index: 1, kind: input, shape index: {}]
  %s2 = inlined_call_operand.vmem [shape: f32[1,64], index: 2, kind: input, shape index: {}]
  %s3 = inlined_call_operand.vmem [shape: f32[3,64,128], index: 3, kind: input, shape index: {}]
  %s4 = inlined_call_operand.vmem [shape: f32[1,128], index: 4, kind: input, shape index: {}]
  %s5 = inlined_call_operand.hbm [shape: f32[128,256], index: 5, kind: input, shape index: {}]
  %s6 = inlined_call_operand.hbm [shape: f32[64,256], index: 6, kind: input, shape index: {}]
  %s7 = inlined_call_operand.vmem [shape: f32[1,256], index: 7, kind: input, shape index: {}]
  %s8 = inlined_call_operand.vmem [shape: f32[64,3], index: 8, kind: input, shape index: {}]
  %s9 = inlined_call_operand.vmem [shape: f32[1,3], index: 9, kind: input, shape index: {}]
  %s10 = inlined_call_operand.vmem [shape: f32[8,3], index: 10, kind: output, shape index: {}]
  %s11 = sld [smem:[#allocation0]]
  $region58: #{tpu_custom_call.1} parent=0
    _
  %s13 = ssub.s32 1, %s11
  %s14 = scalar_select 0, %s13, %s11
  $region1: #{tpu_custom_call.1} parent=0
    #allocation2 [shape = 'u8[131072]{0}', space=vmem, size = 0x20000, scoped, tag = 'input window, operand 5, single buffered']
    #allocation3 [shape = 's32[1]{0}', space=sflag, size = 0x4, scoped, tag = 'scoped memory for tpu_custom_call.1']
    #allocation4 [shape = 'u8[65536]{0}', space=vmem, size = 0x10000, scoped, tag = 'input window, operand 6, single buffered']
    #allocation5 [shape = 's32[1]{0}', space=sflag, size = 0x4, scoped, tag = 'scoped memory for tpu_custom_call.1']
    %15 = vsyncpa [#allocation3], 0
    %16 = vsyncpa [#allocation5], 0
    // Predicated region
    $region2: #{tpu_custom_call.1} parent=1 // pred_check
      _
    $region3: #{tpu_custom_call.1} parent=1 // pred_check_branch
      %18 = sbr.rel (0) target = $region5
    $region4: #{tpu_custom_call.1} parent=1 // pred_region
      _
    $region5: #{tpu_custom_call.1} parent=1 // pred_fallthru
      _
    // Predicated region
    $region6: #{tpu_custom_call.1} parent=1 // pred_check
      _
    $region7: #{tpu_custom_call.1} parent=1 // pred_check_branch
      %20 = sbr.rel (0) target = $region9
    $region8: #{tpu_custom_call.1} parent=1 // pred_region
      _
    $region9: #{tpu_custom_call.1} parent=1 // pred_fallthru
      _
    // Predicated region
    $region10: #{tpu_custom_call.1} parent=1 // pred_check
      _
    $region11: #{tpu_custom_call.1} parent=1 // pred_check_branch
      %22 = sbr.rel (0) target = $region13
    $region12: #{tpu_custom_call.1} parent=1 // pred_region
      _
    $region13: #{tpu_custom_call.1} parent=1 // pred_fallthru
      _
    // Predicated region
    $region14: #{tpu_custom_call.1} parent=1 // pred_check
      _
    $region15: #{tpu_custom_call.1} parent=1 // pred_check_branch
      %24 = sbr.rel (0) target = $region17
    $region16: #{tpu_custom_call.1} parent=1 // pred_region
      _
    $region17: #{tpu_custom_call.1} parent=1 // pred_fallthru
      _
    // Predicated region
    $region18: #{tpu_custom_call.1} parent=1 // pred_check
      _
    $region19: #{tpu_custom_call.1} parent=1 // pred_check_branch
      %26 = sbr.rel (0) target = $region21
    $region20: #{tpu_custom_call.1} parent=1 // pred_region
      _
    $region21: #{tpu_custom_call.1} parent=1 // pred_fallthru
      _
    // Predicated region
    $region22: #{tpu_custom_call.1} parent=1 // pred_check
      _
    $region23: #{tpu_custom_call.1} parent=1 // pred_check_branch
      %28 = sbr.rel (0) target = $region25
    $region24: #{tpu_custom_call.1} parent=1 // pred_region
      %s30 = ssub.s32 4096, 4096
      %31 = vsyncadd [#allocation3], %s30
      %s32 = sshll.u32 [#allocation2], 4
      %s33 = int_to_ptr.vmem [resolvable:$true] %s32
      %38 = dma.hbm_to_vmem [thread:$0]  %s5, 4096, %s33, [#allocation3], 256, 256, 16
    $region25: #{tpu_custom_call.1} parent=1 // pred_fallthru
      _
    // Predicated region
    $region26: #{tpu_custom_call.1} parent=1 // pred_check
      _
    $region27: #{tpu_custom_call.1} parent=1 // pred_check_branch
      %40 = sbr.rel (0) target = $region29
    $region28: #{tpu_custom_call.1} parent=1 // pred_region
      %s42 = ssub.s32 2048, 2048
      %43 = vsyncadd [#allocation5], %s42
      %s44 = sshll.u32 [#allocation4], 4
      %s45 = int_to_ptr.vmem [resolvable:$true] %s44
      %50 = dma.hbm_to_vmem [thread:$0]  %s6, 2048, %s45, [#allocation5], 256, 256, 16
    $region29: #{tpu_custom_call.1} parent=1 // pred_fallthru
      _
    // Predicated region
    $region30: #{tpu_custom_call.1} parent=1 // pred_check
      _
    $region31: #{tpu_custom_call.1} parent=1 // pred_check_branch
      %52 = sbr.rel (0) target = $region33
    $region32: #{tpu_custom_call.1} parent=1 // pred_region
      _
    $region33: #{tpu_custom_call.1} parent=1 // pred_fallthru
      _
    // Predicated region
    $region34: #{tpu_custom_call.1} parent=1 // pred_check
      _
    $region35: #{tpu_custom_call.1} parent=1 // pred_check_branch
      %54 = sbr.rel (0) target = $region37
    $region36: #{tpu_custom_call.1} parent=1 // pred_region
      _
    $region37: #{tpu_custom_call.1} parent=1 // pred_fallthru
      _
    // Predicated region
    $region38: #{tpu_custom_call.1} parent=1 // pred_check
      _
    $region39: #{tpu_custom_call.1} parent=1 // pred_check_branch
      %56 = sbr.rel (0) target = $region41
    $region40: #{tpu_custom_call.1} parent=1 // pred_region
      _
    $region41: #{tpu_custom_call.1} parent=1 // pred_fallthru
      _
    // Predicated region
    $region42: #{tpu_custom_call.1} parent=1 // pred_check
      _
    $region43: #{tpu_custom_call.1} parent=1 // pred_check_branch
      %58 = sbr.rel (0) target = $region45
    $region44: #{tpu_custom_call.1} parent=1 // pred_region
      %59 = dma.done [#allocation3], 4096
    $region45: #{tpu_custom_call.1} parent=1 // pred_fallthru
      _
    // Predicated region
    $region46: #{tpu_custom_call.1} parent=1 // pred_check
      _
    $region47: #{tpu_custom_call.1} parent=1 // pred_check_branch
      %61 = sbr.rel (0) target = $region49
    $region48: #{tpu_custom_call.1} parent=1 // pred_region
      %62 = dma.done [#allocation5], 2048
    $region49: #{tpu_custom_call.1} parent=1 // pred_fallthru
      _
    %v63 = vld [vmem:[%s0] sm:$0xff]
    %v64 = vld [vmem:[%s0 + $0x8] sm:$0xff]
    %v65 = vld [vmem:[%s0 + $0x10] sm:$0xff]
    %v66 = vld [vmem:[%s0 + $0x18] sm:$0xff]
    %v67 = vld [vmem:[%s0 + $0x20] sm:$0xff]
    %v68 = vld [vmem:[%s0 + $0x28] sm:$0xff]
    %v69 = vld [vmem:[%s0 + $0x30] sm:$0xff]
    %v70 = vld [vmem:[%s0 + $0x38] sm:$0xff]
    %v71 = vld [vmem:[%s0 + $0x40] sm:$0xff]
    %v72 = vld [vmem:[%s0 + $0x48] sm:$0xff]
    %v73 = vld [vmem:[%s0 + $0x50] sm:$0xff]
    %v74 = vld [vmem:[%s0 + $0x58] sm:$0xff]
    %v75 = vld [vmem:[%s0 + $0x60] sm:$0xff]
    %v76 = vld [vmem:[%s0 + $0x68] sm:$0xff]
    %v77 = vld [vmem:[%s0 + $0x70] sm:$0xff]
    %v78 = vld [vmem:[%s0 + $0x78] sm:$0xff]
    %v79 = vld [vmem:[%s1] sm:$0x7]
    %v80 = vld [vmem:[%s2] sm:$0x1]
    %v82 = vlaneseq
    %v83 = vshrl.u32 %v82, 7
    %v84 = vsub.s32 0, %v83
    %v85 = vrot.slane %v80, %v84
    %vm87 = vcmask 23552
    %v89 = vsel %vm87, %v63, 0
    %v92 = vsel %vm87, %v64, 0
    %v95 = vsel %vm87, %v65, 0
    %v98 = vsel %vm87, %v66, 0
    %v101 = vsel %vm87, %v67, 0
    %v104 = vsel %vm87, %v68, 0
    %v107 = vsel %vm87, %v69, 0
    %v110 = vsel %vm87, %v70, 0
    %v113 = vsel %vm87, %v71, 0
    %v116 = vsel %vm87, %v72, 0
    %v119 = vsel %vm87, %v73, 0
    %v122 = vsel %vm87, %v74, 0
    %v125 = vsel %vm87, %v75, 0
    %v128 = vsel %vm87, %v76, 0
    %v131 = vsel %vm87, %v77, 0
    %v134 = vsel %vm87, %v78, 0
    %vm136 = vcmask 1042432
    %v138 = vsel %vm136, %v79, 0
    %140 = vmatprep.subr.mxu0 0.0
    %141 = vmatpush1.msra.mxu0 %v138
    %142 = vmatprep.subr.mxu0 0.0
    %143 = vmatpush1.msra.mxu0 0.0
    %144 = vmatprep.subr.mxu0 0.0
    %145 = vmatpush1.msra.mxu0 0.0
    %146 = vmatprep.subr.mxu0 0.0
    %147 = vmatpush1.msra.mxu0 0.0
    %148 = vmatprep.subr.mxu0 0.0
    %149 = vmatpush1.msra.mxu0 0.0
    %150 = vmatprep.subr.mxu0 0.0
    %151 = vmatpush1.msra.mxu0 0.0
    %152 = vmatprep.subr.mxu0 0.0
    %153 = vmatpush1.msra.mxu0 0.0
    %154 = vmatprep.subr.mxu0 0.0
    %155 = vmatpush1.msra.mxu0 0.0
    %156 = vmatprep.subr.mxu0 0.0
    %157 = vmatpush1.msra.mxu0 0.0
    %158 = vmatprep.subr.mxu0 0.0
    %159 = vmatpush1.msra.mxu0 0.0
    %160 = vmatprep.subr.mxu0 0.0
    %161 = vmatpush1.msra.mxu0 0.0
    %162 = vmatprep.subr.mxu0 0.0
    %163 = vmatpush1.msra.mxu0 0.0
    %164 = vmatprep.subr.mxu0 0.0
    %165 = vmatpush1.msra.mxu0 0.0
    %166 = vmatprep.subr.mxu0 0.0
    %167 = vmatpush1.msra.mxu0 0.0
    %168 = vmatprep.subr.mxu0 0.0
    %169 = vmatpush1.msra.mxu0 0.0
    %170 = vmatprep.subr.mxu0 0.0
    %171 = vmatpush1.msra.mxu0 0.0
    %172 = vmatprep.subr.mxu0 0.0
    %173 = vmatpush1.msra.mxu0 0.0
    %174 = vmatprep.subr.mxu0 0.0
    %175 = vmatpush1.msra.mxu0 0.0
    %176 = vmatprep.subr.mxu0 0.0
    %177 = vmatpush1.msra.mxu0 0.0
    %178 = vmatprep.subr.mxu0 0.0
    %179 = vmatpush1.msra.mxu0 0.0
    %180 = vmatprep.subr.mxu0 0.0
    %181 = vmatpush1.msra.mxu0 0.0
    %182 = vmatprep.subr.mxu0 0.0
    %183 = vmatpush1.msra.mxu0 0.0
    %184 = vmatprep.subr.mxu0 0.0
    %185 = vmatpush1.msra.mxu0 0.0
    %186 = vmatprep.subr.mxu0 0.0
    %187 = vmatpush1.msra.mxu0 0.0
    %188 = vmatprep.subr.mxu0 0.0
    %189 = vmatpush1.msra.mxu0 0.0
    %190 = vmatprep.subr.mxu0 0.0
    %191 = vmatpush1.msra.mxu0 0.0
    %192 = vmatprep.subr.mxu0 0.0
    %193 = vmatpush1.msra.mxu0 0.0
    %194 = vmatprep.subr.mxu0 0.0
    %195 = vmatpush1.msra.mxu0 0.0
    %196 = vmatprep.subr.mxu0 0.0
    %197 = vmatpush1.msra.mxu0 0.0
    %198 = vmatprep.subr.mxu0 0.0
    %199 = vmatpush1.msra.mxu0 0.0
    %200 = vmatprep.subr.mxu0 0.0
    %201 = vmatpush1.msra.mxu0 0.0
    %202 = vmatprep.subr.mxu0 0.0
    %203 = vmatpush1.msra.mxu0 0.0
    %204 = vmatprep.mubr.f32.mxu0 0.0
    %205 = vmatmul.mubr.f32.gmra.mrb[0].mxu0 %v89
    %v206 = vpop.f32.mrb[0].mxu0
    %v207 = vadd.f32 %v85, %v206
    %v208 = vpop.f32.mrb[0].mxu0
    %209 = vmatprep.mubr.f32.mxu0 0.0
    %210 = vmatmul.mubr.f32.gmra.mrb[0].mxu0 %v92
    %v211 = vpop.f32.mrb[0].mxu0
    %v212 = vadd.f32 %v85, %v211
    %v213 = vpop.f32.mrb[0].mxu0
    %214 = vmatprep.mubr.f32.mxu0 0.0
    %215 = vmatmul.mubr.f32.gmra.mrb[0].mxu0 %v95
    %v216 = vpop.f32.mrb[0].mxu0
    %v217 = vadd.f32 %v85, %v216
    %v218 = vpop.f32.mrb[0].mxu0
    %219 = vmatprep.mubr.f32.mxu0 0.0
    %220 = vmatmul.mubr.f32.gmra.mrb[0].mxu0 %v98
    %v221 = vpop.f32.mrb[0].mxu0
    %v222 = vadd.f32 %v85, %v221
    %v223 = vpop.f32.mrb[0].mxu0
    %224 = vmatprep.mubr.f32.mxu0 0.0
    %225 = vmatmul.mubr.f32.gmra.mrb[0].mxu0 %v101
    %v226 = vpop.f32.mrb[0].mxu0
    %v227 = vadd.f32 %v85, %v226
    %v228 = vpop.f32.mrb[0].mxu0
    %229 = vmatprep.mubr.f32.mxu0 0.0
    %230 = vmatmul.mubr.f32.gmra.mrb[0].mxu0 %v104
    %v231 = vpop.f32.mrb[0].mxu0
    %v232 = vadd.f32 %v85, %v231
    %v233 = vpop.f32.mrb[0].mxu0
    %234 = vmatprep.mubr.f32.mxu0 0.0
    %235 = vmatmul.mubr.f32.gmra.mrb[0].mxu0 %v107
    %v236 = vpop.f32.mrb[0].mxu0
    %v237 = vadd.f32 %v85, %v236
    %v238 = vpop.f32.mrb[0].mxu0
    %239 = vmatprep.mubr.f32.mxu0 0.0
    %240 = vmatmul.mubr.f32.gmra.mrb[0].mxu0 %v110
    %v241 = vpop.f32.mrb[0].mxu0
    %v242 = vadd.f32 %v85, %v241
    %v243 = vpop.f32.mrb[0].mxu0
    %244 = vmatprep.mubr.f32.mxu0 0.0
    %245 = vmatmul.mubr.f32.gmra.mrb[0].mxu0 %v113
    %v246 = vpop.f32.mrb[0].mxu0
    %v247 = vadd.f32 %v85, %v246
    %v248 = vpop.f32.mrb[0].mxu0
    %249 = vmatprep.mubr.f32.mxu0 0.0
    %250 = vmatmul.mubr.f32.gmra.mrb[0].mxu0 %v116
    %v251 = vpop.f32.mrb[0].mxu0
    %v252 = vadd.f32 %v85, %v251
    %v253 = vpop.f32.mrb[0].mxu0
    %254 = vmatprep.mubr.f32.mxu0 0.0
    %255 = vmatmul.mubr.f32.gmra.mrb[0].mxu0 %v119
    %v256 = vpop.f32.mrb[0].mxu0
    %v257 = vadd.f32 %v85, %v256
    %v258 = vpop.f32.mrb[0].mxu0
    %259 = vmatprep.mubr.f32.mxu0 0.0
    %260 = vmatmul.mubr.f32.gmra.mrb[0].mxu0 %v122
    %v261 = vpop.f32.mrb[0].mxu0
    %v262 = vadd.f32 %v85, %v261
    %v263 = vpop.f32.mrb[0].mxu0
    %264 = vmatprep.mubr.f32.mxu0 0.0
    %265 = vmatmul.mubr.f32.gmra.mrb[0].mxu0 %v125
    %v266 = vpop.f32.mrb[0].mxu0
    %v267 = vadd.f32 %v85, %v266
    %v268 = vpop.f32.mrb[0].mxu0
    %269 = vmatprep.mubr.f32.mxu0 0.0
    %270 = vmatmul.mubr.f32.gmra.mrb[0].mxu0 %v128
    %v271 = vpop.f32.mrb[0].mxu0
    %v272 = vadd.f32 %v85, %v271
    %v273 = vpop.f32.mrb[0].mxu0
    %274 = vmatprep.mubr.f32.mxu0 0.0
    %275 = vmatmul.mubr.f32.gmra.mrb[0].mxu0 %v131
    %v276 = vpop.f32.mrb[0].mxu0
    %v277 = vadd.f32 %v85, %v276
    %v278 = vpop.f32.mrb[0].mxu0
    %279 = vmatprep.mubr.f32.mxu0 0.0
    %280 = vmatmul.mubr.f32.gmra.mrb[0].mxu0 %v134
    %v281 = vpop.f32.mrb[0].mxu0
    %v282 = vadd.f32 %v85, %v281
    %v283 = vpop.f32.mrb[0].mxu0
    %284 = vdwg.mxu0
    %v285 = vmax.f32 %v207, 0.0
    %v286 = vmax.f32 %v212, 0.0
    %v287 = vmax.f32 %v217, 0.0
    %v288 = vmax.f32 %v222, 0.0
    %v289 = vmax.f32 %v227, 0.0
    %v290 = vmax.f32 %v232, 0.0
    %v291 = vmax.f32 %v237, 0.0
    %v292 = vmax.f32 %v242, 0.0
    %v293 = vmax.f32 %v247, 0.0
    %v294 = vmax.f32 %v252, 0.0
    %v295 = vmax.f32 %v257, 0.0
    %v296 = vmax.f32 %v262, 0.0
    %v297 = vmax.f32 %v267, 0.0
    %v298 = vmax.f32 %v272, 0.0
    %v299 = vmax.f32 %v277, 0.0
    %v300 = vmax.f32 %v282, 0.0
    %v301 = vld [vmem:[%s3] sm:$0xff]
    %v302 = vld [vmem:[%s3 + $0x8] sm:$0xff]
    %v303 = vld [vmem:[%s3 + $0x10] sm:$0xff]
    %v304 = vld [vmem:[%s3 + $0x18] sm:$0xff]
    %v305 = vld [vmem:[%s3 + $0x20] sm:$0xff]
    %v306 = vld [vmem:[%s3 + $0x28] sm:$0xff]
    %v307 = vld [vmem:[%s3 + $0x30] sm:$0xff]
    %v308 = vld [vmem:[%s3 + $0x38] sm:$0xff]
    %v309 = vld [vmem:[%s3 + $0x40] sm:$0xff]
    %v310 = vld [vmem:[%s3 + $0x48] sm:$0xff]
    %v311 = vld [vmem:[%s3 + $0x50] sm:$0xff]
    %v312 = vld [vmem:[%s3 + $0x58] sm:$0xff]
    %v313 = vld [vmem:[%s3 + $0x60] sm:$0xff]
    %v314 = vld [vmem:[%s3 + $0x68] sm:$0xff]
    %v315 = vld [vmem:[%s3 + $0x70] sm:$0xff]
    %v316 = vld [vmem:[%s3 + $0x78] sm:$0xff]
    %v317 = vld [vmem:[%s3 + $0x80] sm:$0xff]
    %v318 = vld [vmem:[%s3 + $0x88] sm:$0xff]
    %v319 = vld [vmem:[%s3 + $0x90] sm:$0xff]
    %v320 = vld [vmem:[%s3 + $0x98] sm:$0xff]
    %v321 = vld [vmem:[%s3 + $0xa0] sm:$0xff]
    %v322 = vld [vmem:[%s3 + $0xa8] sm:$0xff]
    %v323 = vld [vmem:[%s3 + $0xb0] sm:$0xff]
    %v324 = vld [vmem:[%s3 + $0xb8] sm:$0xff]
    %vm325 = vcmask 523264
    %v327 = vsel %vm325, 0.0, 0
    %v330 = vsel %vm325, %v285, 0
    %v333 = vsel %vm325, %v286, 0
    %v336 = vsel %vm325, %v287, 0
    %v339 = vsel %vm325, %v288, 0
    %v342 = vsel %vm325, %v289, 0
    %v345 = vsel %vm325, %v290, 0
    %v348 = vsel %vm325, %v291, 0
    %v351 = vsel %vm325, %v292, 0
    %v354 = vsel %vm325, %v293, 0
    %v357 = vsel %vm325, %v294, 0
    %v360 = vsel %vm325, %v295, 0
    %v363 = vsel %vm325, %v296, 0
    %v366 = vsel %vm325, %v297, 0
    %v369 = vsel %vm325, %v298, 0
    %v372 = vsel %vm325, %v299, 0
    %374 = vmatprep.subr.mxu0 0.0
    %375 = vmatpush1.msra.mxu0 %v301
    %376 = vmatprep.subr.mxu0 0.0
    %377 = vmatpush1.msra.mxu0 %v302
    %378 = vmatprep.subr.mxu0 0.0
    %379 = vmatpush1.msra.mxu0 %v303
    %380 = vmatprep.subr.mxu0 0.0
    %381 = vmatpush1.msra.mxu0 %v304
    %382 = vmatprep.subr.mxu0 0.0
    %383 = vmatpush1.msra.mxu0 %v305
    %384 = vmatprep.subr.mxu0 0.0
    %385 = vmatpush1.msra.mxu0 %v306
    %386 = vmatprep.subr.mxu0 0.0
    %387 = vmatpush1.msra.mxu0 %v307
    %388 = vmatprep.subr.mxu0 0.0
    %389 = vmatpush1.msra.mxu0 %v308
    %390 = vmatprep.subr.mxu0 0.0
    %391 = vmatpush1.msra.mxu0 0.0
    %392 = vmatprep.subr.mxu0 0.0
    %393 = vmatpush1.msra.mxu0 0.0
    %394 = vmatprep.subr.mxu0 0.0
    %395 = vmatpush1.msra.mxu0 0.0
    %396 = vmatprep.subr.mxu0 0.0
    %397 = vmatpush1.msra.mxu0 0.0
    %398 = vmatprep.subr.mxu0 0.0
    %399 = vmatpush1.msra.mxu0 0.0
    %400 = vmatprep.subr.mxu0 0.0
    %401 = vmatpush1.msra.mxu0 0.0
    %402 = vmatprep.subr.mxu0 0.0
    %403 = vmatpush1.msra.mxu0 0.0
    %404 = vmatprep.subr.mxu0 0.0
    %405 = vmatpush1.msra.mxu0 0.0
    %406 = vmatprep.subr.mxu0 0.0
    %407 = vmatpush1.msra.mxu0 0.0
    %408 = vmatprep.subr.mxu0 0.0
    %409 = vmatpush1.msra.mxu0 0.0
    %410 = vmatprep.subr.mxu0 0.0
    %411 = vmatpush1.msra.mxu0 0.0
    %412 = vmatprep.subr.mxu0 0.0
    %413 = vmatpush1.msra.mxu0 0.0
    %414 = vmatprep.subr.mxu0 0.0
    %415 = vmatpush1.msra.mxu0 0.0
    %416 = vmatprep.subr.mxu0 0.0
    %417 = vmatpush1.msra.mxu0 0.0
    %418 = vmatprep.subr.mxu0 0.0
    %419 = vmatpush1.msra.mxu0 0.0
    %420 = vmatprep.subr.mxu0 0.0
    %421 = vmatpush1.msra.mxu0 0.0
    %422 = vmatprep.subr.mxu0 0.0
    %423 = vmatpush1.msra.mxu0 0.0
    %424 = vmatprep.subr.mxu0 0.0
    %425 = vmatpush1.msra.mxu0 0.0
    %426 = vmatprep.subr.mxu0 0.0
    %427 = vmatpush1.msra.mxu0 0.0
    %428 = vmatprep.subr.mxu0 0.0
    %429 = vmatpush1.msra.mxu0 0.0
    %430 = vmatprep.subr.mxu0 0.0
    %431 = vmatpush1.msra.mxu0 0.0
    %432 = vmatprep.subr.mxu0 0.0
    %433 = vmatpush1.msra.mxu0 0.0
    %434 = vmatprep.subr.mxu0 0.0
    %435 = vmatpush1.msra.mxu0 0.0
    %436 = vmatprep.subr.mxu0 0.0
    %437 = vmatpush1.msra.mxu0 0.0
    %438 = vmatprep.mubr.f32.mxu0 0.0
    %439 = vmatmul.mubr.f32.gmra.mrb[0].mxu0 %v327
    %v440 = vpop.f32.mrb[0].mxu0
    %v441 = vadd.f32 0.0, %v440
    %v442 = vpop.f32.mrb[0].mxu0
    %443 = vmatprep.mubr.f32.mxu0 0.0
    %444 = vmatmul.mubr.f32.gmra.mrb[0].mxu0 %v330
    %v445 = vpop.f32.mrb[0].mxu0
    %v446 = vadd.f32 0.0, %v445
    %v447 = vpop.f32.mrb[0].mxu0
    %448 = vmatprep.mubr.f32.mxu0 0.0
    %449 = vmatmul.mubr.f32.gmra.mrb[0].mxu0 %v333
    %v450 = vpop.f32.mrb[0].mxu0
    %v451 = vadd.f32 0.0, %v450
    %v452 = vpop.f32.mrb[0].mxu0
    %453 = vmatprep.mubr.f32.mxu0 0.0
    %454 = vmatmul.mubr.f32.gmra.mrb[0].mxu0 %v336
    %v455 = vpop.f32.mrb[0].mxu0
    %v456 = vadd.f32 0.0, %v455
    %v457 = vpop.f32.mrb[0].mxu0
    %458 = vmatprep.mubr.f32.mxu0 0.0
    %459 = vmatmul.mubr.f32.gmra.mrb[0].mxu0 %v339
    %v460 = vpop.f32.mrb[0].mxu0
    %v461 = vadd.f32 0.0, %v460
    %v462 = vpop.f32.mrb[0].mxu0
    %463 = vmatprep.mubr.f32.mxu0 0.0
    %464 = vmatmul.mubr.f32.gmra.mrb[0].mxu0 %v342
    %v465 = vpop.f32.mrb[0].mxu0
    %v466 = vadd.f32 0.0, %v465
    %v467 = vpop.f32.mrb[0].mxu0
    %468 = vmatprep.mubr.f32.mxu0 0.0
    %469 = vmatmul.mubr.f32.gmra.mrb[0].mxu0 %v345
    %v470 = vpop.f32.mrb[0].mxu0
    %v471 = vadd.f32 0.0, %v470
    %v472 = vpop.f32.mrb[0].mxu0
    %473 = vmatprep.mubr.f32.mxu0 0.0
    %474 = vmatmul.mubr.f32.gmra.mrb[0].mxu0 %v348
    %v475 = vpop.f32.mrb[0].mxu0
    %v476 = vadd.f32 0.0, %v475
    %v477 = vpop.f32.mrb[0].mxu0
    %478 = vmatprep.mubr.f32.mxu0 0.0
    %479 = vmatmul.mubr.f32.gmra.mrb[0].mxu0 %v351
    %v480 = vpop.f32.mrb[0].mxu0
    %v481 = vadd.f32 0.0, %v480
    %v482 = vpop.f32.mrb[0].mxu0
    %483 = vmatprep.mubr.f32.mxu0 0.0
    %484 = vmatmul.mubr.f32.gmra.mrb[0].mxu0 %v354
    %v485 = vpop.f32.mrb[0].mxu0
    %v486 = vadd.f32 0.0, %v485
    %v487 = vpop.f32.mrb[0].mxu0
    %488 = vmatprep.mubr.f32.mxu0 0.0
    %489 = vmatmul.mubr.f32.gmra.mrb[0].mxu0 %v357
    %v490 = vpop.f32.mrb[0].mxu0
    %v491 = vadd.f32 0.0, %v490
    %v492 = vpop.f32.mrb[0].mxu0
    %493 = vmatprep.mubr.f32.mxu0 0.0
    %494 = vmatmul.mubr.f32.gmra.mrb[0].mxu0 %v360
    %v495 = vpop.f32.mrb[0].mxu0
    %v496 = vadd.f32 0.0, %v495
    %v497 = vpop.f32.mrb[0].mxu0
    %498 = vmatprep.mubr.f32.mxu0 0.0
    %499 = vmatmul.mubr.f32.gmra.mrb[0].mxu0 %v363
    %v500 = vpop.f32.mrb[0].mxu0
    %v501 = vadd.f32 0.0, %v500
    %v502 = vpop.f32.mrb[0].mxu0
    %503 = vmatprep.mubr.f32.mxu0 0.0
    %504 = vmatmul.mubr.f32.gmra.mrb[0].mxu0 %v366
    %v505 = vpop.f32.mrb[0].mxu0
    %v506 = vadd.f32 0.0, %v505
    %v507 = vpop.f32.mrb[0].mxu0
    %508 = vmatprep.mubr.f32.mxu0 0.0
    %509 = vmatmul.mubr.f32.gmra.mrb[0].mxu0 %v369
    %v510 = vpop.f32.mrb[0].mxu0
    %v511 = vadd.f32 0.0, %v510
    %v512 = vpop.f32.mrb[0].mxu0
    %513 = vmatprep.mubr.f32.mxu0 0.0
    %514 = vmatmul.mubr.f32.gmra.mrb[0].mxu0 %v372
    %v515 = vpop.f32.mrb[0].mxu0
    %v516 = vadd.f32 0.0, %v515
    %v517 = vpop.f32.mrb[0].mxu0
    %518 = vdwg.mxu0
    %v520 = vsel %vm325, %v300, 0
    %522 = vmatprep.subr.mxu0 0.0
    %523 = vmatpush1.msra.mxu0 %v309
    %524 = vmatprep.subr.mxu0 0.0
    %525 = vmatpush1.msra.mxu0 %v310
    %526 = vmatprep.subr.mxu0 0.0
    %527 = vmatpush1.msra.mxu0 %v311
    %528 = vmatprep.subr.mxu0 0.0
    %529 = vmatpush1.msra.mxu0 %v312
    %530 = vmatprep.subr.mxu0 0.0
    %531 = vmatpush1.msra.mxu0 %v313
    %532 = vmatprep.subr.mxu0 0.0
    %533 = vmatpush1.msra.mxu0 %v314
    %534 = vmatprep.subr.mxu0 0.0
    %535 = vmatpush1.msra.mxu0 %v315
    %536 = vmatprep.subr.mxu0 0.0
    %537 = vmatpush1.msra.mxu0 %v316
    %538 = vmatprep.subr.mxu0 0.0
    %539 = vmatpush1.msra.mxu0 0.0
    %540 = vmatprep.subr.mxu0 0.0
    %541 = vmatpush1.msra.mxu0 0.0
    %542 = vmatprep.subr.mxu0 0.0
    %543 = vmatpush1.msra.mxu0 0.0
    %544 = vmatprep.subr.mxu0 0.0
    %545 = vmatpush1.msra.mxu0 0.0
    %546 = vmatprep.subr.mxu0 0.0
    %547 = vmatpush1.msra.mxu0 0.0
    %548 = vmatprep.subr.mxu0 0.0
    %549 = vmatpush1.msra.mxu0 0.0
    %550 = vmatprep.subr.mxu0 0.0
    %551 = vmatpush1.msra.mxu0 0.0
    %552 = vmatprep.subr.mxu0 0.0
    %553 = vmatpush1.msra.mxu0 0.0
    %554 = vmatprep.subr.mxu0 0.0
    %555 = vmatpush1.msra.mxu0 0.0
    %556 = vmatprep.subr.mxu0 0.0
    %557 = vmatpush1.msra.mxu0 0.0
    %558 = vmatprep.subr.mxu0 0.0
    %559 = vmatpush1.msra.mxu0 0.0
    %560 = vmatprep.subr.mxu0 0.0
    %561 = vmatpush1.msra.mxu0 0.0
    %562 = vmatprep.subr.mxu0 0.0
    %563 = vmatpush1.msra.mxu0 0.0
    %564 = vmatprep.subr.mxu0 0.0
    %565 = vmatpush1.msra.mxu0 0.0
    %566 = vmatprep.subr.mxu0 0.0
    %567 = vmatpush1.msra.mxu0 0.0
    %568 = vmatprep.subr.mxu0 0.0
    %569 = vmatpush1.msra.mxu0 0.0
    %570 = vmatprep.subr.mxu0 0.0
    %571 = vmatpush1.msra.mxu0 0.0
    %572 = vmatprep.subr.mxu0 0.0
    %573 = vmatpush1.msra.mxu0 0.0
    %574 = vmatprep.subr.mxu0 0.0
    %575 = vmatpush1.msra.mxu0 0.0
    %576 = vmatprep.subr.mxu0 0.0
    %577 = vmatpush1.msra.mxu0 0.0
    %578 = vmatprep.subr.mxu0 0.0
    %579 = vmatpush1.msra.mxu0 0.0
    %580 = vmatprep.subr.mxu0 0.0
    %581 = vmatpush1.msra.mxu0 0.0
    %582 = vmatprep.subr.mxu0 0.0
    %583 = vmatpush1.msra.mxu0 0.0
    %584 = vmatprep.subr.mxu0 0.0
    %585 = vmatpush1.msra.mxu0 0.0
    %586 = vmatprep.mubr.f32.mxu0 0.0
    %587 = vmatmul.mubr.f32.gmra.mrb[0].mxu0 %v330
    %v588 = vpop.f32.mrb[0].mxu0
    %v589 = vadd.f32 %v441, %v588
    %v590 = vpop.f32.mrb[0].mxu0
    %591 = vmatprep.mubr.f32.mxu0 0.0
    %592 = vmatmul.mubr.f32.gmra.mrb[0].mxu0 %v333
    %v593 = vpop.f32.mrb[0].mxu0
    %v594 = vadd.f32 %v446, %v593
    %v595 = vpop.f32.mrb[0].mxu0
    %596 = vmatprep.mubr.f32.mxu0 0.0
    %597 = vmatmul.mubr.f32.gmra.mrb[0].mxu0 %v336
    %v598 = vpop.f32.mrb[0].mxu0
    %v599 = vadd.f32 %v451, %v598
    %v600 = vpop.f32.mrb[0].mxu0
    %601 = vmatprep.mubr.f32.mxu0 0.0
    %602 = vmatmul.mubr.f32.gmra.mrb[0].mxu0 %v339
    %v603 = vpop.f32.mrb[0].mxu0
    %v604 = vadd.f32 %v456, %v603
    %v605 = vpop.f32.mrb[0].mxu0
    %606 = vmatprep.mubr.f32.mxu0 0.0
    %607 = vmatmul.mubr.f32.gmra.mrb[0].mxu0 %v342
    %v608 = vpop.f32.mrb[0].mxu0
    %v609 = vadd.f32 %v461, %v608
    %v610 = vpop.f32.mrb[0].mxu0
    %611 = vmatprep.mubr.f32.mxu0 0.0
    %612 = vmatmul.mubr.f32.gmra.mrb[0].mxu0 %v345
    %v613 = vpop.f32.mrb[0].mxu0
    %v614 = vadd.f32 %v466, %v613
    %v615 = vpop.f32.mrb[0].mxu0
    %616 = vmatprep.mubr.f32.mxu0 0.0
    %617 = vmatmul.mubr.f32.gmra.mrb[0].mxu0 %v348
    %v618 = vpop.f32.mrb[0].mxu0
    %v619 = vadd.f32 %v471, %v618
    %v620 = vpop.f32.mrb[0].mxu0
    %621 = vmatprep.mubr.f32.mxu0 0.0
    %622 = vmatmul.mubr.f32.gmra.mrb[0].mxu0 %v351
    %v623 = vpop.f32.mrb[0].mxu0
    %v624 = vadd.f32 %v476, %v623
    %v625 = vpop.f32.mrb[0].mxu0
    %626 = vmatprep.mubr.f32.mxu0 0.0
    %627 = vmatmul.mubr.f32.gmra.mrb[0].mxu0 %v354
    %v628 = vpop.f32.mrb[0].mxu0
    %v629 = vadd.f32 %v481, %v628
    %v630 = vpop.f32.mrb[0].mxu0
    %631 = vmatprep.mubr.f32.mxu0 0.0
    %632 = vmatmul.mubr.f32.gmra.mrb[0].mxu0 %v357
    %v633 = vpop.f32.mrb[0].mxu0
    %v634 = vadd.f32 %v486, %v633
    %v635 = vpop.f32.mrb[0].mxu0
    %636 = vmatprep.mubr.f32.mxu0 0.0
    %637 = vmatmul.mubr.f32.gmra.mrb[0].mxu0 %v360
    %v638 = vpop.f32.mrb[0].mxu0
    %v639 = vadd.f32 %v491, %v638
    %v640 = vpop.f32.mrb[0].mxu0
    %641 = vmatprep.mubr.f32.mxu0 0.0
    %642 = vmatmul.mubr.f32.gmra.mrb[0].mxu0 %v363
    %v643 = vpop.f32.mrb[0].mxu0
    %v644 = vadd.f32 %v496, %v643
    %v645 = vpop.f32.mrb[0].mxu0
    %646 = vmatprep.mubr.f32.mxu0 0.0
    %647 = vmatmul.mubr.f32.gmra.mrb[0].mxu0 %v366
    %v648 = vpop.f32.mrb[0].mxu0
    %v649 = vadd.f32 %v501, %v648
    %v650 = vpop.f32.mrb[0].mxu0
    %651 = vmatprep.mubr.f32.mxu0 0.0
    %652 = vmatmul.mubr.f32.gmra.mrb[0].mxu0 %v369
    %v653 = vpop.f32.mrb[0].mxu0
    %v654 = vadd.f32 %v506, %v653
    %v655 = vpop.f32.mrb[0].mxu0
    %656 = vmatprep.mubr.f32.mxu0 0.0
    %657 = vmatmul.mubr.f32.gmra.mrb[0].mxu0 %v372
    %v658 = vpop.f32.mrb[0].mxu0
    %v659 = vadd.f32 %v511, %v658
    %v660 = vpop.f32.mrb[0].mxu0
    %661 = vmatprep.mubr.f32.mxu0 0.0
    %662 = vmatmul.mubr.f32.gmra.mrb[0].mxu0 %v520
    %v663 = vpop.f32.mrb[0].mxu0
    %v664 = vadd.f32 %v516, %v663
    %v665 = vpop.f32.mrb[0].mxu0
    %666 = vdwg.mxu0
    %667 = vmatprep.subr.mxu0 0.0
    %668 = vmatpush1.msra.mxu0 %v317
    %669 = vmatprep.subr.mxu0 0.0
    %670 = vmatpush1.msra.mxu0 %v318
    %671 = vmatprep.subr.mxu0 0.0
    %672 = vmatpush1.msra.mxu0 %v319
    %673 = vmatprep.subr.mxu0 0.0
    %674 = vmatpush1.msra.mxu0 %v320
    %675 = vmatprep.subr.mxu0 0.0
    %676 = vmatpush1.msra.mxu0 %v321
    %677 = vmatprep.subr.mxu0 0.0
    %678 = vmatpush1.msra.mxu0 %v322
    %679 = vmatprep.subr.mxu0 0.0
    %680 = vmatpush1.msra.mxu0 %v323
    %681 = vmatprep.subr.mxu0 0.0
    %682 = vmatpush1.msra.mxu0 %v324
    %683 = vmatprep.subr.mxu0 0.0
    %684 = vmatpush1.msra.mxu0 0.0
    %685 = vmatprep.subr.mxu0 0.0
    %686 = vmatpush1.msra.mxu0 0.0
    %687 = vmatprep.subr.mxu0 0.0
    %688 = vmatpush1.msra.mxu0 0.0
    %689 = vmatprep.subr.mxu0 0.0
    %690 = vmatpush1.msra.mxu0 0.0
    %691 = vmatprep.subr.mxu0 0.0
    %692 = vmatpush1.msra.mxu0 0.0
    %693 = vmatprep.subr.mxu0 0.0
    %694 = vmatpush1.msra.mxu0 0.0
    %695 = vmatprep.subr.mxu0 0.0
    %696 = vmatpush1.msra.mxu0 0.0
    %697 = vmatprep.subr.mxu0 0.0
    %698 = vmatpush1.msra.mxu0 0.0
    %699 = vmatprep.subr.mxu0 0.0
    %700 = vmatpush1.msra.mxu0 0.0
    %701 = vmatprep.subr.mxu0 0.0
    %702 = vmatpush1.msra.mxu0 0.0
    %703 = vmatprep.subr.mxu0 0.0
    %704 = vmatpush1.msra.mxu0 0.0
    %705 = vmatprep.subr.mxu0 0.0
    %706 = vmatpush1.msra.mxu0 0.0
    %707 = vmatprep.subr.mxu0 0.0
    %708 = vmatpush1.msra.mxu0 0.0
    %709 = vmatprep.subr.mxu0 0.0
    %710 = vmatpush1.msra.mxu0 0.0
    %711 = vmatprep.subr.mxu0 0.0
    %712 = vmatpush1.msra.mxu0 0.0
    %713 = vmatprep.subr.mxu0 0.0
    %714 = vmatpush1.msra.mxu0 0.0
    %715 = vmatprep.subr.mxu0 0.0
    %716 = vmatpush1.msra.mxu0 0.0
    %717 = vmatprep.subr.mxu0 0.0
    %718 = vmatpush1.msra.mxu0 0.0
    %719 = vmatprep.subr.mxu0 0.0
    %720 = vmatpush1.msra.mxu0 0.0
    %721 = vmatprep.subr.mxu0 0.0
    %722 = vmatpush1.msra.mxu0 0.0
    %723 = vmatprep.subr.mxu0 0.0
    %724 = vmatpush1.msra.mxu0 0.0
    %725 = vmatprep.subr.mxu0 0.0
    %726 = vmatpush1.msra.mxu0 0.0
    %727 = vmatprep.subr.mxu0 0.0
    %728 = vmatpush1.msra.mxu0 0.0
    %729 = vmatprep.subr.mxu0 0.0
    %730 = vmatpush1.msra.mxu0 0.0
    %731 = vmatprep.mubr.f32.mxu0 0.0
    %732 = vmatmul.mubr.f32.gmra.mrb[0].mxu0 %v333
    %v733 = vpop.f32.mrb[0].mxu0
    %v734 = vadd.f32 0.0, %v733
    %v735 = vpop.f32.mrb[0].mxu0
    %736 = vmatprep.mubr.f32.mxu0 0.0
    %737 = vmatmul.mubr.f32.gmra.mrb[0].mxu0 %v336
    %v738 = vpop.f32.mrb[0].mxu0
    %v739 = vadd.f32 0.0, %v738
    %v740 = vpop.f32.mrb[0].mxu0
    %741 = vmatprep.mubr.f32.mxu0 0.0
    %742 = vmatmul.mubr.f32.gmra.mrb[0].mxu0 %v339
    %v743 = vpop.f32.mrb[0].mxu0
    %v744 = vadd.f32 0.0, %v743
    %v745 = vpop.f32.mrb[0].mxu0
    %746 = vmatprep.mubr.f32.mxu0 0.0
    %747 = vmatmul.mubr.f32.gmra.mrb[0].mxu0 %v342
    %v748 = vpop.f32.mrb[0].mxu0
    %v749 = vadd.f32 0.0, %v748
    %v750 = vpop.f32.mrb[0].mxu0
    %751 = vmatprep.mubr.f32.mxu0 0.0
    %752 = vmatmul.mubr.f32.gmra.mrb[0].mxu0 %v345
    %v753 = vpop.f32.mrb[0].mxu0
    %v754 = vadd.f32 0.0, %v753
    %v755 = vpop.f32.mrb[0].mxu0
    %756 = vmatprep.mubr.f32.mxu0 0.0
    %757 = vmatmul.mubr.f32.gmra.mrb[0].mxu0 %v348
    %v758 = vpop.f32.mrb[0].mxu0
    %v759 = vadd.f32 0.0, %v758
    %v760 = vpop.f32.mrb[0].mxu0
    %761 = vmatprep.mubr.f32.mxu0 0.0
    %762 = vmatmul.mubr.f32.gmra.mrb[0].mxu0 %v351
    %v763 = vpop.f32.mrb[0].mxu0
    %v764 = vadd.f32 0.0, %v763
    %v765 = vpop.f32.mrb[0].mxu0
    %766 = vmatprep.mubr.f32.mxu0 0.0
    %767 = vmatmul.mubr.f32.gmra.mrb[0].mxu0 %v354
    %v768 = vpop.f32.mrb[0].mxu0
    %v769 = vadd.f32 0.0, %v768
    %v770 = vpop.f32.mrb[0].mxu0
    %771 = vmatprep.mubr.f32.mxu0 0.0
    %772 = vmatmul.mubr.f32.gmra.mrb[0].mxu0 %v357
    %v773 = vpop.f32.mrb[0].mxu0
    %v774 = vadd.f32 0.0, %v773
    %v775 = vpop.f32.mrb[0].mxu0
    %776 = vmatprep.mubr.f32.mxu0 0.0
    %777 = vmatmul.mubr.f32.gmra.mrb[0].mxu0 %v360
    %v778 = vpop.f32.mrb[0].mxu0
    %v779 = vadd.f32 0.0, %v778
    %v780 = vpop.f32.mrb[0].mxu0
    %781 = vmatprep.mubr.f32.mxu0 0.0
    %782 = vmatmul.mubr.f32.gmra.mrb[0].mxu0 %v363
    %v783 = vpop.f32.mrb[0].mxu0
    %v784 = vadd.f32 0.0, %v783
    %v785 = vpop.f32.mrb[0].mxu0
    %786 = vmatprep.mubr.f32.mxu0 0.0
    %787 = vmatmul.mubr.f32.gmra.mrb[0].mxu0 %v366
    %v788 = vpop.f32.mrb[0].mxu0
    %v789 = vadd.f32 0.0, %v788
    %v790 = vpop.f32.mrb[0].mxu0
    %791 = vmatprep.mubr.f32.mxu0 0.0
    %792 = vmatmul.mubr.f32.gmra.mrb[0].mxu0 %v369
    %v793 = vpop.f32.mrb[0].mxu0
    %v794 = vadd.f32 0.0, %v793
    %v795 = vpop.f32.mrb[0].mxu0
    %796 = vmatprep.mubr.f32.mxu0 0.0
    %797 = vmatmul.mubr.f32.gmra.mrb[0].mxu0 %v372
    %v798 = vpop.f32.mrb[0].mxu0
    %v799 = vadd.f32 0.0, %v798
    %v800 = vpop.f32.mrb[0].mxu0
    %801 = vmatprep.mubr.f32.mxu0 0.0
    %802 = vmatmul.mubr.f32.gmra.mrb[0].mxu0 %v520
    %v803 = vpop.f32.mrb[0].mxu0
    %v804 = vadd.f32 0.0, %v803
    %v805 = vpop.f32.mrb[0].mxu0
    %806 = vmatprep.mubr.f32.mxu0 0.0
    %807 = vmatmul.mubr.f32.gmra.mrb[0].mxu0 %v327
    %v808 = vpop.f32.mrb[0].mxu0
    %v809 = vadd.f32 0.0, %v808
    %v810 = vpop.f32.mrb[0].mxu0
    %811 = vdwg.mxu0
    %v812 = vadd.f32 %v589, %v734
    %v813 = vadd.f32 %v594, %v739
    %v814 = vadd.f32 %v599, %v744
    %v815 = vadd.f32 %v604, %v749
    %v816 = vadd.f32 %v609, %v754
    %v817 = vadd.f32 %v614, %v759
    %v818 = vadd.f32 %v619, %v764
    %v819 = vadd.f32 %v624, %v769
    %v820 = vadd.f32 %v629, %v774
    %v821 = vadd.f32 %v634, %v779
    %v822 = vadd.f32 %v639, %v784
    %v823 = vadd.f32 %v644, %v789
    %v824 = vadd.f32 %v649, %v794
    %v825 = vadd.f32 %v654, %v799
    %v826 = vadd.f32 %v659, %v804
    %v827 = vadd.f32 %v664, %v809
    %v828 = vld [vmem:[%s4] sm:$0x1]
    %v830 = vlaneseq
    %v831 = vshrl.u32 %v830, 7
    %v832 = vsub.s32 0, %v831
    %v833 = vrot.slane %v828, %v832
    %v835 = vadd.f32 %v812, %v833
    %v836 = vadd.f32 %v813, %v833
    %v837 = vadd.f32 %v814, %v833
    %v838 = vadd.f32 %v815, %v833
    %v839 = vadd.f32 %v816, %v833
    %v840 = vadd.f32 %v817, %v833
    %v841 = vadd.f32 %v818, %v833
    %v842 = vadd.f32 %v819, %v833
    %v843 = vadd.f32 %v820, %v833
    %v844 = vadd.f32 %v821, %v833
    %v845 = vadd.f32 %v822, %v833
    %v846 = vadd.f32 %v823, %v833
    %v847 = vadd.f32 %v824, %v833
    %v848 = vadd.f32 %v825, %v833
    %v849 = vadd.f32 %v826, %v833
    %v850 = vadd.f32 %v827, %v833
    %v851 = vmax.f32 %v835, 0.0
    %v852 = vmax.f32 %v836, 0.0
    %v853 = vmax.f32 %v837, 0.0
    %v854 = vmax.f32 %v838, 0.0
    %v855 = vmax.f32 %v839, 0.0
    %v856 = vmax.f32 %v840, 0.0
    %v857 = vmax.f32 %v841, 0.0
    %v858 = vmax.f32 %v842, 0.0
    %v859 = vmax.f32 %v843, 0.0
    %v860 = vmax.f32 %v844, 0.0
    %v861 = vmax.f32 %v845, 0.0
    %v862 = vmax.f32 %v846, 0.0
    %v863 = vmax.f32 %v847, 0.0
    %v864 = vmax.f32 %v848, 0.0
    %v865 = vmax.f32 %v849, 0.0
    %v866 = vmax.f32 %v850, 0.0
    %v867 = vld [vmem:[#allocation2] sm:$0xff]
    %v868 = vld [vmem:[#allocation2 + $0x8] sm:$0xff]
    %v869 = vld [vmem:[#allocation2 + $0x10] sm:$0xff]
    %v870 = vld [vmem:[#allocation2 + $0x18] sm:$0xff]
    %v871 = vld [vmem:[#allocation2 + $0x20] sm:$0xff]
    %v872 = vld [vmem:[#allocation2 + $0x28] sm:$0xff]
    %v873 = vld [vmem:[#allocation2 + $0x30] sm:$0xff]
    %v874 = vld [vmem:[#allocation2 + $0x38] sm:$0xff]
    %v875 = vld [vmem:[#allocation2 + $0x40] sm:$0xff]
    %v876 = vld [vmem:[#allocation2 + $0x48] sm:$0xff]
    %v877 = vld [vmem:[#allocation2 + $0x50] sm:$0xff]
    %v878 = vld [vmem:[#allocation2 + $0x58] sm:$0xff]
    %v879 = vld [vmem:[#allocation2 + $0x60] sm:$0xff]
    %v880 = vld [vmem:[#allocation2 + $0x68] sm:$0xff]
    %v881 = vld [vmem:[#allocation2 + $0x70] sm:$0xff]
    %v882 = vld [vmem:[#allocation2 + $0x78] sm:$0xff]
    %v883 = vld [vmem:[#allocation2 + $0x80] sm:$0xff]
    %v884 = vld [vmem:[#allocation2 + $0x88] sm:$0xff]
    %v885 = vld [vmem:[#allocation2 + $0x90] sm:$0xff]
    %v886 = vld [vmem:[#allocation2 + $0x98] sm:$0xff]
    %v887 = vld [vmem:[#allocation2 + $0xa0] sm:$0xff]
    %v888 = vld [vmem:[#allocation2 + $0xa8] sm:$0xff]
    %v889 = vld [vmem:[#allocation2 + $0xb0] sm:$0xff]
    %v890 = vld [vmem:[#allocation2 + $0xb8] sm:$0xff]
    %v891 = vld [vmem:[#allocation2 + $0xc0] sm:$0xff]
    %v892 = vld [vmem:[#allocation2 + $0xc8] sm:$0xff]
    %v893 = vld [vmem:[#allocation2 + $0xd0] sm:$0xff]
    %v894 = vld [vmem:[#allocation2 + $0xd8] sm:$0xff]
    %v895 = vld [vmem:[#allocation2 + $0xe0] sm:$0xff]
    %v896 = vld [vmem:[#allocation2 + $0xe8] sm:$0xff]
    %v897 = vld [vmem:[#allocation2 + $0xf0] sm:$0xff]
    %v898 = vld [vmem:[#allocation2 + $0xf8] sm:$0xff]
    %v899 = vld [vmem:[%s7] sm:$0x3]
    %v901 = vlaneseq
    %v902 = vshrl.u32 %v901, 7
    %v903 = vsub.s32 0, %v902
    %v904 = vrot.slane %v899, %v903
    %v905 = vlaneseq
    %v906 = vshrl.u32 %v905, 7
    %v907 = vsub.s32 1, %v906
    %v908 = vrot.slane %v899, %v907
    %911 = vmatprep.subr.mxu0 %v868
    %912 = vmatpush1.msra.mxu0 %v867
    %913 = vmatprep.subr.mxu0 %v870
    %914 = vmatpush1.msra.mxu0 %v869
    %915 = vmatprep.subr.mxu0 %v872
    %916 = vmatpush1.msra.mxu0 %v871
    %917 = vmatprep.subr.mxu0 %v874
    %918 = vmatpush1.msra.mxu0 %v873
    %919 = vmatprep.subr.mxu0 %v876
    %920 = vmatpush1.msra.mxu0 %v875
    %921 = vmatprep.subr.mxu0 %v878
    %922 = vmatpush1.msra.mxu0 %v877
    %923 = vmatprep.subr.mxu0 %v880
    %924 = vmatpush1.msra.mxu0 %v879
    %925 = vmatprep.subr.mxu0 %v882
    %926 = vmatpush1.msra.mxu0 %v881
    %927 = vmatprep.subr.mxu0 %v884
    %928 = vmatpush1.msra.mxu0 %v883
    %929 = vmatprep.subr.mxu0 %v886
    %930 = vmatpush1.msra.mxu0 %v885
    %931 = vmatprep.subr.mxu0 %v888
    %932 = vmatpush1.msra.mxu0 %v887
    %933 = vmatprep.subr.mxu0 %v890
    %934 = vmatpush1.msra.mxu0 %v889
    %935 = vmatprep.subr.mxu0 %v892
    %936 = vmatpush1.msra.mxu0 %v891
    %937 = vmatprep.subr.mxu0 %v894
    %938 = vmatpush1.msra.mxu0 %v893
    %939 = vmatprep.subr.mxu0 %v896
    %940 = vmatpush1.msra.mxu0 %v895
    %941 = vmatprep.subr.mxu0 %v898
    %942 = vmatpush1.msra.mxu0 %v897
    %943 = vmatprep.subr.mxu0 0.0
    %944 = vmatpush1.msra.mxu0 0.0
    %945 = vmatprep.subr.mxu0 0.0
    %946 = vmatpush1.msra.mxu0 0.0
    %947 = vmatprep.subr.mxu0 0.0
    %948 = vmatpush1.msra.mxu0 0.0
    %949 = vmatprep.subr.mxu0 0.0
    %950 = vmatpush1.msra.mxu0 0.0
    %951 = vmatprep.subr.mxu0 0.0
    %952 = vmatpush1.msra.mxu0 0.0
    %953 = vmatprep.subr.mxu0 0.0
    %954 = vmatpush1.msra.mxu0 0.0
    %955 = vmatprep.subr.mxu0 0.0
    %956 = vmatpush1.msra.mxu0 0.0
    %957 = vmatprep.subr.mxu0 0.0
    %958 = vmatpush1.msra.mxu0 0.0
    %959 = vmatprep.subr.mxu0 0.0
    %960 = vmatpush1.msra.mxu0 0.0
    %961 = vmatprep.subr.mxu0 0.0
    %962 = vmatpush1.msra.mxu0 0.0
    %963 = vmatprep.subr.mxu0 0.0
    %964 = vmatpush1.msra.mxu0 0.0
    %965 = vmatprep.subr.mxu0 0.0
    %966 = vmatpush1.msra.mxu0 0.0
    %967 = vmatprep.subr.mxu0 0.0
    %968 = vmatpush1.msra.mxu0 0.0
    %969 = vmatprep.subr.mxu0 0.0
    %970 = vmatpush1.msra.mxu0 0.0
    %971 = vmatprep.subr.mxu0 0.0
    %972 = vmatpush1.msra.mxu0 0.0
    %973 = vmatprep.subr.mxu0 0.0
    %974 = vmatpush1.msra.mxu0 0.0
    %975 = vmatprep.mubr.f32.mxu0 0.0
    %976 = vmatmul.mubr.f32.gmra.mrb[0].mxu0 %v851
    %v977 = vpop.f32.mrb[0].mxu0
    %v978 = vadd.f32 %v904, %v977
    %v979 = vpop.f32.mrb[0].mxu0
    %v980 = vadd.f32 %v908, %v979
    %981 = vmatprep.mubr.f32.mxu0 0.0
    %982 = vmatmul.mubr.f32.gmra.mrb[0].mxu0 %v852
    %v983 = vpop.f32.mrb[0].mxu0
    %v984 = vadd.f32 %v904, %v983
    %v985 = vpop.f32.mrb[0].mxu0
    %v986 = vadd.f32 %v908, %v985
    %987 = vmatprep.mubr.f32.mxu0 0.0
    %988 = vmatmul.mubr.f32.gmra.mrb[0].mxu0 %v853
    %v989 = vpop.f32.mrb[0].mxu0
    %v990 = vadd.f32 %v904, %v989
    %v991 = vpop.f32.mrb[0].mxu0
    %v992 = vadd.f32 %v908, %v991
    %993 = vmatprep.mubr.f32.mxu0 0.0
    %994 = vmatmul.mubr.f32.gmra.mrb[0].mxu0 %v854
    %v995 = vpop.f32.mrb[0].mxu0
    %v996 = vadd.f32 %v904, %v995
    %v997 = vpop.f32.mrb[0].mxu0
    %v998 = vadd.f32 %v908, %v997
    %999 = vmatprep.mubr.f32.mxu0 0.0
    %1000 = vmatmul.mubr.f32.gmra.mrb[0].mxu0 %v855
    %v1001 = vpop.f32.mrb[0].mxu0
    %v1002 = vadd.f32 %v904, %v1001
    %v1003 = vpop.f32.mrb[0].mxu0
    %v1004 = vadd.f32 %v908, %v1003
    %1005 = vmatprep.mubr.f32.mxu0 0.0
    %1006 = vmatmul.mubr.f32.gmra.mrb[0].mxu0 %v856
    %v1007 = vpop.f32.mrb[0].mxu0
    %v1008 = vadd.f32 %v904, %v1007
    %v1009 = vpop.f32.mrb[0].mxu0
    %v1010 = vadd.f32 %v908, %v1009
    %1011 = vmatprep.mubr.f32.mxu0 0.0
    %1012 = vmatmul.mubr.f32.gmra.mrb[0].mxu0 %v857
    %v1013 = vpop.f32.mrb[0].mxu0
    %v1014 = vadd.f32 %v904, %v1013
    %v1015 = vpop.f32.mrb[0].mxu0
    %v1016 = vadd.f32 %v908, %v1015
    %1017 = vmatprep.mubr.f32.mxu0 0.0
    %1018 = vmatmul.mubr.f32.gmra.mrb[0].mxu0 %v858
    %v1019 = vpop.f32.mrb[0].mxu0
    %v1020 = vadd.f32 %v904, %v1019
    %v1021 = vpop.f32.mrb[0].mxu0
    %v1022 = vadd.f32 %v908, %v1021
    %1023 = vmatprep.mubr.f32.mxu0 0.0
    %1024 = vmatmul.mubr.f32.gmra.mrb[0].mxu0 %v859
    %v1025 = vpop.f32.mrb[0].mxu0
    %v1026 = vadd.f32 %v904, %v1025
    %v1027 = vpop.f32.mrb[0].mxu0
    %v1028 = vadd.f32 %v908, %v1027
    %1029 = vmatprep.mubr.f32.mxu0 0.0
    %1030 = vmatmul.mubr.f32.gmra.mrb[0].mxu0 %v860
    %v1031 = vpop.f32.mrb[0].mxu0
    %v1032 = vadd.f32 %v904, %v1031
    %v1033 = vpop.f32.mrb[0].mxu0
    %v1034 = vadd.f32 %v908, %v1033
    %1035 = vmatprep.mubr.f32.mxu0 0.0
    %1036 = vmatmul.mubr.f32.gmra.mrb[0].mxu0 %v861
    %v1037 = vpop.f32.mrb[0].mxu0
    %v1038 = vadd.f32 %v904, %v1037
    %v1039 = vpop.f32.mrb[0].mxu0
    %v1040 = vadd.f32 %v908, %v1039
    %1041 = vmatprep.mubr.f32.mxu0 0.0
    %1042 = vmatmul.mubr.f32.gmra.mrb[0].mxu0 %v862
    %v1043 = vpop.f32.mrb[0].mxu0
    %v1044 = vadd.f32 %v904, %v1043
    %v1045 = vpop.f32.mrb[0].mxu0
    %v1046 = vadd.f32 %v908, %v1045
    %1047 = vmatprep.mubr.f32.mxu0 0.0
    %1048 = vmatmul.mubr.f32.gmra.mrb[0].mxu0 %v863
    %v1049 = vpop.f32.mrb[0].mxu0
    %v1050 = vadd.f32 %v904, %v1049
    %v1051 = vpop.f32.mrb[0].mxu0
    %v1052 = vadd.f32 %v908, %v1051
    %1053 = vmatprep.mubr.f32.mxu0 0.0
    %1054 = vmatmul.mubr.f32.gmra.mrb[0].mxu0 %v864
    %v1055 = vpop.f32.mrb[0].mxu0
    %v1056 = vadd.f32 %v904, %v1055
    %v1057 = vpop.f32.mrb[0].mxu0
    %v1058 = vadd.f32 %v908, %v1057
    %1059 = vmatprep.mubr.f32.mxu0 0.0
    %1060 = vmatmul.mubr.f32.gmra.mrb[0].mxu0 %v865
    %v1061 = vpop.f32.mrb[0].mxu0
    %v1062 = vadd.f32 %v904, %v1061
    %v1063 = vpop.f32.mrb[0].mxu0
    %v1064 = vadd.f32 %v908, %v1063
    %1065 = vmatprep.mubr.f32.mxu0 0.0
    %1066 = vmatmul.mubr.f32.gmra.mrb[0].mxu0 %v866
    %v1067 = vpop.f32.mrb[0].mxu0
    %v1068 = vadd.f32 %v904, %v1067
    %v1069 = vpop.f32.mrb[0].mxu0
    %v1070 = vadd.f32 %v908, %v1069
    %1071 = vdwg.mxu0
    %v1072 = vld [vmem:[#allocation4] sm:$0xff]
    %v1073 = vld [vmem:[#allocation4 + $0x8] sm:$0xff]
    %v1074 = vld [vmem:[#allocation4 + $0x10] sm:$0xff]
    %v1075 = vld [vmem:[#allocation4 + $0x18] sm:$0xff]
    %v1076 = vld [vmem:[#allocation4 + $0x20] sm:$0xff]
    %v1077 = vld [vmem:[#allocation4 + $0x28] sm:$0xff]
    %v1078 = vld [vmem:[#allocation4 + $0x30] sm:$0xff]
    %v1079 = vld [vmem:[#allocation4 + $0x38] sm:$0xff]
    %v1080 = vld [vmem:[#allocation4 + $0x40] sm:$0xff]
    %v1081 = vld [vmem:[#allocation4 + $0x48] sm:$0xff]
    %v1082 = vld [vmem:[#allocation4 + $0x50] sm:$0xff]
    %v1083 = vld [vmem:[#allocation4 + $0x58] sm:$0xff]
    %v1084 = vld [vmem:[#allocation4 + $0x60] sm:$0xff]
    %v1085 = vld [vmem:[#allocation4 + $0x68] sm:$0xff]
    %v1086 = vld [vmem:[#allocation4 + $0x70] sm:$0xff]
    %v1087 = vld [vmem:[#allocation4 + $0x78] sm:$0xff]
    %1088 = vmatprep.subr.mxu0 %v1073
    %1089 = vmatpush1.msra.mxu0 %v1072
    %1090 = vmatprep.subr.mxu0 %v1075
    %1091 = vmatpush1.msra.mxu0 %v1074
    %1092 = vmatprep.subr.mxu0 %v1077
    %1093 = vmatpush1.msra.mxu0 %v1076
    %1094 = vmatprep.subr.mxu0 %v1079
    %1095 = vmatpush1.msra.mxu0 %v1078
    %1096 = vmatprep.subr.mxu0 %v1081
    %1097 = vmatpush1.msra.mxu0 %v1080
    %1098 = vmatprep.subr.mxu0 %v1083
    %1099 = vmatpush1.msra.mxu0 %v1082
    %1100 = vmatprep.subr.mxu0 %v1085
    %1101 = vmatpush1.msra.mxu0 %v1084
    %1102 = vmatprep.subr.mxu0 %v1087
    %1103 = vmatpush1.msra.mxu0 %v1086
    %1104 = vmatprep.subr.mxu0 0.0
    %1105 = vmatpush1.msra.mxu0 0.0
    %1106 = vmatprep.subr.mxu0 0.0
    %1107 = vmatpush1.msra.mxu0 0.0
    %1108 = vmatprep.subr.mxu0 0.0
    %1109 = vmatpush1.msra.mxu0 0.0
    %1110 = vmatprep.subr.mxu0 0.0
    %1111 = vmatpush1.msra.mxu0 0.0
    %1112 = vmatprep.subr.mxu0 0.0
    %1113 = vmatpush1.msra.mxu0 0.0
    %1114 = vmatprep.subr.mxu0 0.0
    %1115 = vmatpush1.msra.mxu0 0.0
    %1116 = vmatprep.subr.mxu0 0.0
    %1117 = vmatpush1.msra.mxu0 0.0
    %1118 = vmatprep.subr.mxu0 0.0
    %1119 = vmatpush1.msra.mxu0 0.0
    %1120 = vmatprep.subr.mxu0 0.0
    %1121 = vmatpush1.msra.mxu0 0.0
    %1122 = vmatprep.subr.mxu0 0.0
    %1123 = vmatpush1.msra.mxu0 0.0
    %1124 = vmatprep.subr.mxu0 0.0
    %1125 = vmatpush1.msra.mxu0 0.0
    %1126 = vmatprep.subr.mxu0 0.0
    %1127 = vmatpush1.msra.mxu0 0.0
    %1128 = vmatprep.subr.mxu0 0.0
    %1129 = vmatpush1.msra.mxu0 0.0
    %1130 = vmatprep.subr.mxu0 0.0
    %1131 = vmatpush1.msra.mxu0 0.0
    %1132 = vmatprep.subr.mxu0 0.0
    %1133 = vmatpush1.msra.mxu0 0.0
    %1134 = vmatprep.subr.mxu0 0.0
    %1135 = vmatpush1.msra.mxu0 0.0
    %1136 = vmatprep.subr.mxu0 0.0
    %1137 = vmatpush1.msra.mxu0 0.0
    %1138 = vmatprep.subr.mxu0 0.0
    %1139 = vmatpush1.msra.mxu0 0.0
    %1140 = vmatprep.subr.mxu0 0.0
    %1141 = vmatpush1.msra.mxu0 0.0
    %1142 = vmatprep.subr.mxu0 0.0
    %1143 = vmatpush1.msra.mxu0 0.0
    %1144 = vmatprep.subr.mxu0 0.0
    %1145 = vmatpush1.msra.mxu0 0.0
    %1146 = vmatprep.subr.mxu0 0.0
    %1147 = vmatpush1.msra.mxu0 0.0
    %1148 = vmatprep.subr.mxu0 0.0
    %1149 = vmatpush1.msra.mxu0 0.0
    %1150 = vmatprep.subr.mxu0 0.0
    %1151 = vmatpush1.msra.mxu0 0.0
    %1152 = vmatprep.mubr.f32.mxu0 0.0
    %1153 = vmatmul.mubr.f32.gmra.mrb[0].mxu0 %v327
    %v1154 = vpop.f32.mrb[0].mxu0
    %v1155 = vadd.f32 0.0, %v1154
    %v1156 = vpop.f32.mrb[0].mxu0
    %v1157 = vadd.f32 0.0, %v1156
    %1158 = vdwg.mxu0
    %v1159 = vadd.f32 %v978, %v1155
    %v1160 = vadd.f32 %v980, %v1157
    %v1161 = vxor.u32 %v1159, 2147483648
    %v1162 = vmul.f32 %v1161, 1.442695
    %v1163 = vpow.pop %v1162
    %v1164 = vadd.f32 %v1163, 1.0
    %v1165 = vrcp.pop %v1164
    %v1166 = vmul.f32 1.0, %v1165
    %v1167 = vtanh.pop %v1160
    %v1168 = vxor.u32 %v1160, 2147483648
    %v1169 = vmul.f32 %v1168, 1.442695
    %v1170 = vpow.pop %v1169
    %v1171 = vadd.f32 %v1170, 1.0
    %v1172 = vrcp.pop %v1171
    %v1173 = vmul.f32 1.0, %v1172
    %v1174 = vmul.f32 %v1166, 0.0
    %v1175 = vmul.f32 %v1166, %v1167
    %1177 = vrot.lane.b32.xlu0 %v1175, 64
    %v1178 = vpop.permute.xlu0 %1177
    %v1180 = vadd.f32 %v1174, %v1178
    %v1181 = vtanh.pop %v1180
    %v1182 = vmul.f32 %v1173, %v1181
    %1184 = vrot.lane.b32.xlu0 %v1182, 64
    %v1185 = vpop.permute.xlu0 %1184
    %v1186 = vsel %vm325, %v1185, 0
    %1188 = vmatprep.subr.mxu0 %v1073
    %1189 = vmatpush1.msra.mxu0 %v1072
    %1190 = vmatprep.subr.mxu0 %v1075
    %1191 = vmatpush1.msra.mxu0 %v1074
    %1192 = vmatprep.subr.mxu0 %v1077
    %1193 = vmatpush1.msra.mxu0 %v1076
    %1194 = vmatprep.subr.mxu0 %v1079
    %1195 = vmatpush1.msra.mxu0 %v1078
    %1196 = vmatprep.subr.mxu0 %v1081
    %1197 = vmatpush1.msra.mxu0 %v1080
    %1198 = vmatprep.subr.mxu0 %v1083
    %1199 = vmatpush1.msra.mxu0 %v1082
    %1200 = vmatprep.subr.mxu0 %v1085
    %1201 = vmatpush1.msra.mxu0 %v1084
    %1202 = vmatprep.subr.mxu0 %v1087
    %1203 = vmatpush1.msra.mxu0 %v1086
    %1204 = vmatprep.subr.mxu0 0.0
    %1205 = vmatpush1.msra.mxu0 0.0
    %1206 = vmatprep.subr.mxu0 0.0
    %1207 = vmatpush1.msra.mxu0 0.0
    %1208 = vmatprep.subr.mxu0 0.0
    %1209 = vmatpush1.msra.mxu0 0.0
    %1210 = vmatprep.subr.mxu0 0.0
    %1211 = vmatpush1.msra.mxu0 0.0
    %1212 = vmatprep.subr.mxu0 0.0
    %1213 = vmatpush1.msra.mxu0 0.0
    %1214 = vmatprep.subr.mxu0 0.0
    %1215 = vmatpush1.msra.mxu0 0.0
    %1216 = vmatprep.subr.mxu0 0.0
    %1217 = vmatpush1.msra.mxu0 0.0
    %1218 = vmatprep.subr.mxu0 0.0
    %1219 = vmatpush1.msra.mxu0 0.0
    %1220 = vmatprep.subr.mxu0 0.0
    %1221 = vmatpush1.msra.mxu0 0.0
    %1222 = vmatprep.subr.mxu0 0.0
    %1223 = vmatpush1.msra.mxu0 0.0
    %1224 = vmatprep.subr.mxu0 0.0
    %1225 = vmatpush1.msra.mxu0 0.0
    %1226 = vmatprep.subr.mxu0 0.0
    %1227 = vmatpush1.msra.mxu0 0.0
    %1228 = vmatprep.subr.mxu0 0.0
    %1229 = vmatpush1.msra.mxu0 0.0
    %1230 = vmatprep.subr.mxu0 0.0
    %1231 = vmatpush1.msra.mxu0 0.0
    %1232 = vmatprep.subr.mxu0 0.0
    %1233 = vmatpush1.msra.mxu0 0.0
    %1234 = vmatprep.subr.mxu0 0.0
    %1235 = vmatpush1.msra.mxu0 0.0
    %1236 = vmatprep.subr.mxu0 0.0
    %1237 = vmatpush1.msra.mxu0 0.0
    %1238 = vmatprep.subr.mxu0 0.0
    %1239 = vmatpush1.msra.mxu0 0.0
    %1240 = vmatprep.subr.mxu0 0.0
    %1241 = vmatpush1.msra.mxu0 0.0
    %1242 = vmatprep.subr.mxu0 0.0
    %1243 = vmatpush1.msra.mxu0 0.0
    %1244 = vmatprep.subr.mxu0 0.0
    %1245 = vmatpush1.msra.mxu0 0.0
    %1246 = vmatprep.subr.mxu0 0.0
    %1247 = vmatpush1.msra.mxu0 0.0
    %1248 = vmatprep.subr.mxu0 0.0
    %1249 = vmatpush1.msra.mxu0 0.0
    %1250 = vmatprep.subr.mxu0 0.0
    %1251 = vmatpush1.msra.mxu0 0.0
    %1252 = vmatprep.mubr.f32.mxu0 0.0
    %1253 = vmatmul.mubr.f32.gmra.mrb[0].mxu0 %v1186
    %v1254 = vpop.f32.mrb[0].mxu0
    %v1255 = vadd.f32 0.0, %v1254
    %v1256 = vpop.f32.mrb[0].mxu0
    %v1257 = vadd.f32 0.0, %v1256
    %1258 = vdwg.mxu0
    %v1259 = vadd.f32 %v984, %v1255
    %v1260 = vadd.f32 %v986, %v1257
    %v1261 = vxor.u32 %v1259, 2147483648
    %v1262 = vmul.f32 %v1261, 1.442695
    %v1263 = vpow.pop %v1262
    %v1264 = vadd.f32 %v1263, 1.0
    %v1265 = vrcp.pop %v1264
    %v1266 = vmul.f32 1.0, %v1265
    %v1267 = vtanh.pop %v1260
    %v1268 = vxor.u32 %v1260, 2147483648
    %v1269 = vmul.f32 %v1268, 1.442695
    %v1270 = vpow.pop %v1269
    %v1271 = vadd.f32 %v1270, 1.0
    %v1272 = vrcp.pop %v1271
    %v1273 = vmul.f32 1.0, %v1272
    %v1274 = vmul.f32 %v1266, %v1180
    %v1275 = vmul.f32 %v1266, %v1267
    %1277 = vrot.lane.b32.xlu0 %v1275, 64
    %v1278 = vpop.permute.xlu0 %1277
    %v1280 = vadd.f32 %v1274, %v1278
    %v1281 = vtanh.pop %v1280
    %v1282 = vmul.f32 %v1273, %v1281
    %1284 = vrot.lane.b32.xlu0 %v1282, 64
    %v1285 = vpop.permute.xlu0 %1284
    %v1286 = vsel %vm325, %v1285, 0
    %1288 = vmatprep.subr.mxu0 %v1073
    %1289 = vmatpush1.msra.mxu0 %v1072
    %1290 = vmatprep.subr.mxu0 %v1075
    %1291 = vmatpush1.msra.mxu0 %v1074
    %1292 = vmatprep.subr.mxu0 %v1077
    %1293 = vmatpush1.msra.mxu0 %v1076
    %1294 = vmatprep.subr.mxu0 %v1079
    %1295 = vmatpush1.msra.mxu0 %v1078
    %1296 = vmatprep.subr.mxu0 %v1081
    %1297 = vmatpush1.msra.mxu0 %v1080
    %1298 = vmatprep.subr.mxu0 %v1083
    %1299 = vmatpush1.msra.mxu0 %v1082
    %1300 = vmatprep.subr.mxu0 %v1085
    %1301 = vmatpush1.msra.mxu0 %v1084
    %1302 = vmatprep.subr.mxu0 %v1087
    %1303 = vmatpush1.msra.mxu0 %v1086
    %1304 = vmatprep.subr.mxu0 0.0
    %1305 = vmatpush1.msra.mxu0 0.0
    %1306 = vmatprep.subr.mxu0 0.0
    %1307 = vmatpush1.msra.mxu0 0.0
    %1308 = vmatprep.subr.mxu0 0.0
    %1309 = vmatpush1.msra.mxu0 0.0
    %1310 = vmatprep.subr.mxu0 0.0
    %1311 = vmatpush1.msra.mxu0 0.0
    %1312 = vmatprep.subr.mxu0 0.0
    %1313 = vmatpush1.msra.mxu0 0.0
    %1314 = vmatprep.subr.mxu0 0.0
    %1315 = vmatpush1.msra.mxu0 0.0
    %1316 = vmatprep.subr.mxu0 0.0
    %1317 = vmatpush1.msra.mxu0 0.0
    %1318 = vmatprep.subr.mxu0 0.0
    %1319 = vmatpush1.msra.mxu0 0.0
    %1320 = vmatprep.subr.mxu0 0.0
    %1321 = vmatpush1.msra.mxu0 0.0
    %1322 = vmatprep.subr.mxu0 0.0
    %1323 = vmatpush1.msra.mxu0 0.0
    %1324 = vmatprep.subr.mxu0 0.0
    %1325 = vmatpush1.msra.mxu0 0.0
    %1326 = vmatprep.subr.mxu0 0.0
    %1327 = vmatpush1.msra.mxu0 0.0
    %1328 = vmatprep.subr.mxu0 0.0
    %1329 = vmatpush1.msra.mxu0 0.0
    %1330 = vmatprep.subr.mxu0 0.0
    %1331 = vmatpush1.msra.mxu0 0.0
    %1332 = vmatprep.subr.mxu0 0.0
    %1333 = vmatpush1.msra.mxu0 0.0
    %1334 = vmatprep.subr.mxu0 0.0
    %1335 = vmatpush1.msra.mxu0 0.0
    %1336 = vmatprep.subr.mxu0 0.0
    %1337 = vmatpush1.msra.mxu0 0.0
    %1338 = vmatprep.subr.mxu0 0.0
    %1339 = vmatpush1.msra.mxu0 0.0
    %1340 = vmatprep.subr.mxu0 0.0
    %1341 = vmatpush1.msra.mxu0 0.0
    %1342 = vmatprep.subr.mxu0 0.0
    %1343 = vmatpush1.msra.mxu0 0.0
    %1344 = vmatprep.subr.mxu0 0.0
    %1345 = vmatpush1.msra.mxu0 0.0
    %1346 = vmatprep.subr.mxu0 0.0
    %1347 = vmatpush1.msra.mxu0 0.0
    %1348 = vmatprep.subr.mxu0 0.0
    %1349 = vmatpush1.msra.mxu0 0.0
    %1350 = vmatprep.subr.mxu0 0.0
    %1351 = vmatpush1.msra.mxu0 0.0
    %1352 = vmatprep.mubr.f32.mxu0 0.0
    %1353 = vmatmul.mubr.f32.gmra.mrb[0].mxu0 %v1286
    %v1354 = vpop.f32.mrb[0].mxu0
    %v1355 = vadd.f32 0.0, %v1354
    %v1356 = vpop.f32.mrb[0].mxu0
    %v1357 = vadd.f32 0.0, %v1356
    %1358 = vdwg.mxu0
    %v1359 = vadd.f32 %v990, %v1355
    %v1360 = vadd.f32 %v992, %v1357
    %v1361 = vxor.u32 %v1359, 2147483648
    %v1362 = vmul.f32 %v1361, 1.442695
    %v1363 = vpow.pop %v1362
    %v1364 = vadd.f32 %v1363, 1.0
    %v1365 = vrcp.pop %v1364
    %v1366 = vmul.f32 1.0, %v1365
    %v1367 = vtanh.pop %v1360
    %v1368 = vxor.u32 %v1360, 2147483648
    %v1369 = vmul.f32 %v1368, 1.442695
    %v1370 = vpow.pop %v1369
    %v1371 = vadd.f32 %v1370, 1.0
    %v1372 = vrcp.pop %v1371
    %v1373 = vmul.f32 1.0, %v1372
    %v1374 = vmul.f32 %v1366, %v1280
    %v1375 = vmul.f32 %v1366, %v1367
    %1377 = vrot.lane.b32.xlu0 %v1375, 64
    %v1378 = vpop.permute.xlu0 %1377
    %v1380 = vadd.f32 %v1374, %v1378
    %v1381 = vtanh.pop %v1380
    %v1382 = vmul.f32 %v1373, %v1381
    %1384 = vrot.lane.b32.xlu0 %v1382, 64
    %v1385 = vpop.permute.xlu0 %1384
    %v1386 = vsel %vm325, %v1385, 0
    %1388 = vmatprep.subr.mxu0 %v1073
    %1389 = vmatpush1.msra.mxu0 %v1072
    %1390 = vmatprep.subr.mxu0 %v1075
    %1391 = vmatpush1.msra.mxu0 %v1074
    %1392 = vmatprep.subr.mxu0 %v1077
    %1393 = vmatpush1.msra.mxu0 %v1076
    %1394 = vmatprep.subr.mxu0 %v1079
    %1395 = vmatpush1.msra.mxu0 %v1078
    %1396 = vmatprep.subr.mxu0 %v1081
    %1397 = vmatpush1.msra.mxu0 %v1080
    %1398 = vmatprep.subr.mxu0 %v1083
    %1399 = vmatpush1.msra.mxu0 %v1082
    %1400 = vmatprep.subr.mxu0 %v1085
    %1401 = vmatpush1.msra.mxu0 %v1084
    %1402 = vmatprep.subr.mxu0 %v1087
    %1403 = vmatpush1.msra.mxu0 %v1086
    %1404 = vmatprep.subr.mxu0 0.0
    %1405 = vmatpush1.msra.mxu0 0.0
    %1406 = vmatprep.subr.mxu0 0.0
    %1407 = vmatpush1.msra.mxu0 0.0
    %1408 = vmatprep.subr.mxu0 0.0
    %1409 = vmatpush1.msra.mxu0 0.0
    %1410 = vmatprep.subr.mxu0 0.0
    %1411 = vmatpush1.msra.mxu0 0.0
    %1412 = vmatprep.subr.mxu0 0.0
    %1413 = vmatpush1.msra.mxu0 0.0
    %1414 = vmatprep.subr.mxu0 0.0
    %1415 = vmatpush1.msra.mxu0 0.0
    %1416 = vmatprep.subr.mxu0 0.0
    %1417 = vmatpush1.msra.mxu0 0.0
    %1418 = vmatprep.subr.mxu0 0.0
    %1419 = vmatpush1.msra.mxu0 0.0
    %1420 = vmatprep.subr.mxu0 0.0
    %1421 = vmatpush1.msra.mxu0 0.0
    %1422 = vmatprep.subr.mxu0 0.0
    %1423 = vmatpush1.msra.mxu0 0.0
    %1424 = vmatprep.subr.mxu0 0.0
    %1425 = vmatpush1.msra.mxu0 0.0
    %1426 = vmatprep.subr.mxu0 0.0
    %1427 = vmatpush1.msra.mxu0 0.0
    %1428 = vmatprep.subr.mxu0 0.0
    %1429 = vmatpush1.msra.mxu0 0.0
    %1430 = vmatprep.subr.mxu0 0.0
    %1431 = vmatpush1.msra.mxu0 0.0
    %1432 = vmatprep.subr.mxu0 0.0
    %1433 = vmatpush1.msra.mxu0 0.0
    %1434 = vmatprep.subr.mxu0 0.0
    %1435 = vmatpush1.msra.mxu0 0.0
    %1436 = vmatprep.subr.mxu0 0.0
    %1437 = vmatpush1.msra.mxu0 0.0
    %1438 = vmatprep.subr.mxu0 0.0
    %1439 = vmatpush1.msra.mxu0 0.0
    %1440 = vmatprep.subr.mxu0 0.0
    %1441 = vmatpush1.msra.mxu0 0.0
    %1442 = vmatprep.subr.mxu0 0.0
    %1443 = vmatpush1.msra.mxu0 0.0
    %1444 = vmatprep.subr.mxu0 0.0
    %1445 = vmatpush1.msra.mxu0 0.0
    %1446 = vmatprep.subr.mxu0 0.0
    %1447 = vmatpush1.msra.mxu0 0.0
    %1448 = vmatprep.subr.mxu0 0.0
    %1449 = vmatpush1.msra.mxu0 0.0
    %1450 = vmatprep.subr.mxu0 0.0
    %1451 = vmatpush1.msra.mxu0 0.0
    %1452 = vmatprep.mubr.f32.mxu0 0.0
    %1453 = vmatmul.mubr.f32.gmra.mrb[0].mxu0 %v1386
    %v1454 = vpop.f32.mrb[0].mxu0
    %v1455 = vadd.f32 0.0, %v1454
    %v1456 = vpop.f32.mrb[0].mxu0
    %v1457 = vadd.f32 0.0, %v1456
    %1458 = vdwg.mxu0
    %v1459 = vadd.f32 %v996, %v1455
    %v1460 = vadd.f32 %v998, %v1457
    %v1461 = vxor.u32 %v1459, 2147483648
    %v1462 = vmul.f32 %v1461, 1.442695
    %v1463 = vpow.pop %v1462
    %v1464 = vadd.f32 %v1463, 1.0
    %v1465 = vrcp.pop %v1464
    %v1466 = vmul.f32 1.0, %v1465
    %v1467 = vtanh.pop %v1460
    %v1468 = vxor.u32 %v1460, 2147483648
    %v1469 = vmul.f32 %v1468, 1.442695
    %v1470 = vpow.pop %v1469
    %v1471 = vadd.f32 %v1470, 1.0
    %v1472 = vrcp.pop %v1471
    %v1473 = vmul.f32 1.0, %v1472
    %v1474 = vmul.f32 %v1466, %v1380
    %v1475 = vmul.f32 %v1466, %v1467
    %1477 = vrot.lane.b32.xlu0 %v1475, 64
    %v1478 = vpop.permute.xlu0 %1477
    %v1480 = vadd.f32 %v1474, %v1478
    %v1481 = vtanh.pop %v1480
    %v1482 = vmul.f32 %v1473, %v1481
    %1484 = vrot.lane.b32.xlu0 %v1482, 64
    %v1485 = vpop.permute.xlu0 %1484
    %v1486 = vsel %vm325, %v1485, 0
    %1488 = vmatprep.subr.mxu0 %v1073
    %1489 = vmatpush1.msra.mxu0 %v1072
    %1490 = vmatprep.subr.mxu0 %v1075
    %1491 = vmatpush1.msra.mxu0 %v1074
    %1492 = vmatprep.subr.mxu0 %v1077
    %1493 = vmatpush1.msra.mxu0 %v1076
    %1494 = vmatprep.subr.mxu0 %v1079
    %1495 = vmatpush1.msra.mxu0 %v1078
    %1496 = vmatprep.subr.mxu0 %v1081
    %1497 = vmatpush1.msra.mxu0 %v1080
    %1498 = vmatprep.subr.mxu0 %v1083
    %1499 = vmatpush1.msra.mxu0 %v1082
    %1500 = vmatprep.subr.mxu0 %v1085
    %1501 = vmatpush1.msra.mxu0 %v1084
    %1502 = vmatprep.subr.mxu0 %v1087
    %1503 = vmatpush1.msra.mxu0 %v1086
    %1504 = vmatprep.subr.mxu0 0.0
    %1505 = vmatpush1.msra.mxu0 0.0
    %1506 = vmatprep.subr.mxu0 0.0
    %1507 = vmatpush1.msra.mxu0 0.0
    %1508 = vmatprep.subr.mxu0 0.0
    %1509 = vmatpush1.msra.mxu0 0.0
    %1510 = vmatprep.subr.mxu0 0.0
    %1511 = vmatpush1.msra.mxu0 0.0
    %1512 = vmatprep.subr.mxu0 0.0
    %1513 = vmatpush1.msra.mxu0 0.0
    %1514 = vmatprep.subr.mxu0 0.0
    %1515 = vmatpush1.msra.mxu0 0.0
    %1516 = vmatprep.subr.mxu0 0.0
    %1517 = vmatpush1.msra.mxu0 0.0
    %1518 = vmatprep.subr.mxu0 0.0
    %1519 = vmatpush1.msra.mxu0 0.0
    %1520 = vmatprep.subr.mxu0 0.0
    %1521 = vmatpush1.msra.mxu0 0.0
    %1522 = vmatprep.subr.mxu0 0.0
    %1523 = vmatpush1.msra.mxu0 0.0
    %1524 = vmatprep.subr.mxu0 0.0
    %1525 = vmatpush1.msra.mxu0 0.0
    %1526 = vmatprep.subr.mxu0 0.0
    %1527 = vmatpush1.msra.mxu0 0.0
    %1528 = vmatprep.subr.mxu0 0.0
    %1529 = vmatpush1.msra.mxu0 0.0
    %1530 = vmatprep.subr.mxu0 0.0
    %1531 = vmatpush1.msra.mxu0 0.0
    %1532 = vmatprep.subr.mxu0 0.0
    %1533 = vmatpush1.msra.mxu0 0.0
    %1534 = vmatprep.subr.mxu0 0.0
    %1535 = vmatpush1.msra.mxu0 0.0
    %1536 = vmatprep.subr.mxu0 0.0
    %1537 = vmatpush1.msra.mxu0 0.0
    %1538 = vmatprep.subr.mxu0 0.0
    %1539 = vmatpush1.msra.mxu0 0.0
    %1540 = vmatprep.subr.mxu0 0.0
    %1541 = vmatpush1.msra.mxu0 0.0
    %1542 = vmatprep.subr.mxu0 0.0
    %1543 = vmatpush1.msra.mxu0 0.0
    %1544 = vmatprep.subr.mxu0 0.0
    %1545 = vmatpush1.msra.mxu0 0.0
    %1546 = vmatprep.subr.mxu0 0.0
    %1547 = vmatpush1.msra.mxu0 0.0
    %1548 = vmatprep.subr.mxu0 0.0
    %1549 = vmatpush1.msra.mxu0 0.0
    %1550 = vmatprep.subr.mxu0 0.0
    %1551 = vmatpush1.msra.mxu0 0.0
    %1552 = vmatprep.mubr.f32.mxu0 0.0
    %1553 = vmatmul.mubr.f32.gmra.mrb[0].mxu0 %v1486
    %v1554 = vpop.f32.mrb[0].mxu0
    %v1555 = vadd.f32 0.0, %v1554
    %v1556 = vpop.f32.mrb[0].mxu0
    %v1557 = vadd.f32 0.0, %v1556
    %1558 = vdwg.mxu0
    %v1559 = vadd.f32 %v1002, %v1555
    %v1560 = vadd.f32 %v1004, %v1557
    %v1561 = vxor.u32 %v1559, 2147483648
    %v1562 = vmul.f32 %v1561, 1.442695
    %v1563 = vpow.pop %v1562
    %v1564 = vadd.f32 %v1563, 1.0
    %v1565 = vrcp.pop %v1564
    %v1566 = vmul.f32 1.0, %v1565
    %v1567 = vtanh.pop %v1560
    %v1568 = vxor.u32 %v1560, 2147483648
    %v1569 = vmul.f32 %v1568, 1.442695
    %v1570 = vpow.pop %v1569
    %v1571 = vadd.f32 %v1570, 1.0
    %v1572 = vrcp.pop %v1571
    %v1573 = vmul.f32 1.0, %v1572
    %v1574 = vmul.f32 %v1566, %v1480
    %v1575 = vmul.f32 %v1566, %v1567
    %1577 = vrot.lane.b32.xlu0 %v1575, 64
    %v1578 = vpop.permute.xlu0 %1577
    %v1580 = vadd.f32 %v1574, %v1578
    %v1581 = vtanh.pop %v1580
    %v1582 = vmul.f32 %v1573, %v1581
    %1584 = vrot.lane.b32.xlu0 %v1582, 64
    %v1585 = vpop.permute.xlu0 %1584
    %v1586 = vsel %vm325, %v1585, 0
    %1588 = vmatprep.subr.mxu0 %v1073
    %1589 = vmatpush1.msra.mxu0 %v1072
    %1590 = vmatprep.subr.mxu0 %v1075
    %1591 = vmatpush1.msra.mxu0 %v1074
    %1592 = vmatprep.subr.mxu0 %v1077
    %1593 = vmatpush1.msra.mxu0 %v1076
    %1594 = vmatprep.subr.mxu0 %v1079
    %1595 = vmatpush1.msra.mxu0 %v1078
    %1596 = vmatprep.subr.mxu0 %v1081
    %1597 = vmatpush1.msra.mxu0 %v1080
    %1598 = vmatprep.subr.mxu0 %v1083
    %1599 = vmatpush1.msra.mxu0 %v1082
    %1600 = vmatprep.subr.mxu0 %v1085
    %1601 = vmatpush1.msra.mxu0 %v1084
    %1602 = vmatprep.subr.mxu0 %v1087
    %1603 = vmatpush1.msra.mxu0 %v1086
    %1604 = vmatprep.subr.mxu0 0.0
    %1605 = vmatpush1.msra.mxu0 0.0
    %1606 = vmatprep.subr.mxu0 0.0
    %1607 = vmatpush1.msra.mxu0 0.0
    %1608 = vmatprep.subr.mxu0 0.0
    %1609 = vmatpush1.msra.mxu0 0.0
    %1610 = vmatprep.subr.mxu0 0.0
    %1611 = vmatpush1.msra.mxu0 0.0
    %1612 = vmatprep.subr.mxu0 0.0
    %1613 = vmatpush1.msra.mxu0 0.0
    %1614 = vmatprep.subr.mxu0 0.0
    %1615 = vmatpush1.msra.mxu0 0.0
    %1616 = vmatprep.subr.mxu0 0.0
    %1617 = vmatpush1.msra.mxu0 0.0
    %1618 = vmatprep.subr.mxu0 0.0
    %1619 = vmatpush1.msra.mxu0 0.0
    %1620 = vmatprep.subr.mxu0 0.0
    %1621 = vmatpush1.msra.mxu0 0.0
    %1622 = vmatprep.subr.mxu0 0.0
    %1623 = vmatpush1.msra.mxu0 0.0
    %1624 = vmatprep.subr.mxu0 0.0
    %1625 = vmatpush1.msra.mxu0 0.0
    %1626 = vmatprep.subr.mxu0 0.0
    %1627 = vmatpush1.msra.mxu0 0.0
    %1628 = vmatprep.subr.mxu0 0.0
    %1629 = vmatpush1.msra.mxu0 0.0
    %1630 = vmatprep.subr.mxu0 0.0
    %1631 = vmatpush1.msra.mxu0 0.0
    %1632 = vmatprep.subr.mxu0 0.0
    %1633 = vmatpush1.msra.mxu0 0.0
    %1634 = vmatprep.subr.mxu0 0.0
    %1635 = vmatpush1.msra.mxu0 0.0
    %1636 = vmatprep.subr.mxu0 0.0
    %1637 = vmatpush1.msra.mxu0 0.0
    %1638 = vmatprep.subr.mxu0 0.0
    %1639 = vmatpush1.msra.mxu0 0.0
    %1640 = vmatprep.subr.mxu0 0.0
    %1641 = vmatpush1.msra.mxu0 0.0
    %1642 = vmatprep.subr.mxu0 0.0
    %1643 = vmatpush1.msra.mxu0 0.0
    %1644 = vmatprep.subr.mxu0 0.0
    %1645 = vmatpush1.msra.mxu0 0.0
    %1646 = vmatprep.subr.mxu0 0.0
    %1647 = vmatpush1.msra.mxu0 0.0
    %1648 = vmatprep.subr.mxu0 0.0
    %1649 = vmatpush1.msra.mxu0 0.0
    %1650 = vmatprep.subr.mxu0 0.0
    %1651 = vmatpush1.msra.mxu0 0.0
    %1652 = vmatprep.mubr.f32.mxu0 0.0
    %1653 = vmatmul.mubr.f32.gmra.mrb[0].mxu0 %v1586
    %v1654 = vpop.f32.mrb[0].mxu0
    %v1655 = vadd.f32 0.0, %v1654
    %v1656 = vpop.f32.mrb[0].mxu0
    %v1657 = vadd.f32 0.0, %v1656
    %1658 = vdwg.mxu0
    %v1659 = vadd.f32 %v1008, %v1655
    %v1660 = vadd.f32 %v1010, %v1657
    %v1661 = vxor.u32 %v1659, 2147483648
    %v1662 = vmul.f32 %v1661, 1.442695
    %v1663 = vpow.pop %v1662
    %v1664 = vadd.f32 %v1663, 1.0
    %v1665 = vrcp.pop %v1664
    %v1666 = vmul.f32 1.0, %v1665
    %v1667 = vtanh.pop %v1660
    %v1668 = vxor.u32 %v1660, 2147483648
    %v1669 = vmul.f32 %v1668, 1.442695
    %v1670 = vpow.pop %v1669
    %v1671 = vadd.f32 %v1670, 1.0
    %v1672 = vrcp.pop %v1671
    %v1673 = vmul.f32 1.0, %v1672
    %v1674 = vmul.f32 %v1666, %v1580
    %v1675 = vmul.f32 %v1666, %v1667
    %1677 = vrot.lane.b32.xlu0 %v1675, 64
    %v1678 = vpop.permute.xlu0 %1677
    %v1680 = vadd.f32 %v1674, %v1678
    %v1681 = vtanh.pop %v1680
    %v1682 = vmul.f32 %v1673, %v1681
    %1684 = vrot.lane.b32.xlu0 %v1682, 64
    %v1685 = vpop.permute.xlu0 %1684
    %v1686 = vsel %vm325, %v1685, 0
    %1688 = vmatprep.subr.mxu0 %v1073
    %1689 = vmatpush1.msra.mxu0 %v1072
    %1690 = vmatprep.subr.mxu0 %v1075
    %1691 = vmatpush1.msra.mxu0 %v1074
    %1692 = vmatprep.subr.mxu0 %v1077
    %1693 = vmatpush1.msra.mxu0 %v1076
    %1694 = vmatprep.subr.mxu0 %v1079
    %1695 = vmatpush1.msra.mxu0 %v1078
    %1696 = vmatprep.subr.mxu0 %v1081
    %1697 = vmatpush1.msra.mxu0 %v1080
    %1698 = vmatprep.subr.mxu0 %v1083
    %1699 = vmatpush1.msra.mxu0 %v1082
    %1700 = vmatprep.subr.mxu0 %v1085
    %1701 = vmatpush1.msra.mxu0 %v1084
    %1702 = vmatprep.subr.mxu0 %v1087
    %1703 = vmatpush1.msra.mxu0 %v1086
    %1704 = vmatprep.subr.mxu0 0.0
    %1705 = vmatpush1.msra.mxu0 0.0
    %1706 = vmatprep.subr.mxu0 0.0
    %1707 = vmatpush1.msra.mxu0 0.0
    %1708 = vmatprep.subr.mxu0 0.0
    %1709 = vmatpush1.msra.mxu0 0.0
    %1710 = vmatprep.subr.mxu0 0.0
    %1711 = vmatpush1.msra.mxu0 0.0
    %1712 = vmatprep.subr.mxu0 0.0
    %1713 = vmatpush1.msra.mxu0 0.0
    %1714 = vmatprep.subr.mxu0 0.0
    %1715 = vmatpush1.msra.mxu0 0.0
    %1716 = vmatprep.subr.mxu0 0.0
    %1717 = vmatpush1.msra.mxu0 0.0
    %1718 = vmatprep.subr.mxu0 0.0
    %1719 = vmatpush1.msra.mxu0 0.0
    %1720 = vmatprep.subr.mxu0 0.0
    %1721 = vmatpush1.msra.mxu0 0.0
    %1722 = vmatprep.subr.mxu0 0.0
    %1723 = vmatpush1.msra.mxu0 0.0
    %1724 = vmatprep.subr.mxu0 0.0
    %1725 = vmatpush1.msra.mxu0 0.0
    %1726 = vmatprep.subr.mxu0 0.0
    %1727 = vmatpush1.msra.mxu0 0.0
    %1728 = vmatprep.subr.mxu0 0.0
    %1729 = vmatpush1.msra.mxu0 0.0
    %1730 = vmatprep.subr.mxu0 0.0
    %1731 = vmatpush1.msra.mxu0 0.0
    %1732 = vmatprep.subr.mxu0 0.0
    %1733 = vmatpush1.msra.mxu0 0.0
    %1734 = vmatprep.subr.mxu0 0.0
    %1735 = vmatpush1.msra.mxu0 0.0
    %1736 = vmatprep.subr.mxu0 0.0
    %1737 = vmatpush1.msra.mxu0 0.0
    %1738 = vmatprep.subr.mxu0 0.0
    %1739 = vmatpush1.msra.mxu0 0.0
    %1740 = vmatprep.subr.mxu0 0.0
    %1741 = vmatpush1.msra.mxu0 0.0
    %1742 = vmatprep.subr.mxu0 0.0
    %1743 = vmatpush1.msra.mxu0 0.0
    %1744 = vmatprep.subr.mxu0 0.0
    %1745 = vmatpush1.msra.mxu0 0.0
    %1746 = vmatprep.subr.mxu0 0.0
    %1747 = vmatpush1.msra.mxu0 0.0
    %1748 = vmatprep.subr.mxu0 0.0
    %1749 = vmatpush1.msra.mxu0 0.0
    %1750 = vmatprep.subr.mxu0 0.0
    %1751 = vmatpush1.msra.mxu0 0.0
    %1752 = vmatprep.mubr.f32.mxu0 0.0
    %1753 = vmatmul.mubr.f32.gmra.mrb[0].mxu0 %v1686
    %v1754 = vpop.f32.mrb[0].mxu0
    %v1755 = vadd.f32 0.0, %v1754
    %v1756 = vpop.f32.mrb[0].mxu0
    %v1757 = vadd.f32 0.0, %v1756
    %1758 = vdwg.mxu0
    %v1759 = vadd.f32 %v1014, %v1755
    %v1760 = vadd.f32 %v1016, %v1757
    %v1761 = vxor.u32 %v1759, 2147483648
    %v1762 = vmul.f32 %v1761, 1.442695
    %v1763 = vpow.pop %v1762
    %v1764 = vadd.f32 %v1763, 1.0
    %v1765 = vrcp.pop %v1764
    %v1766 = vmul.f32 1.0, %v1765
    %v1767 = vtanh.pop %v1760
    %v1768 = vxor.u32 %v1760, 2147483648
    %v1769 = vmul.f32 %v1768, 1.442695
    %v1770 = vpow.pop %v1769
    %v1771 = vadd.f32 %v1770, 1.0
    %v1772 = vrcp.pop %v1771
    %v1773 = vmul.f32 1.0, %v1772
    %v1774 = vmul.f32 %v1766, %v1680
    %v1775 = vmul.f32 %v1766, %v1767
    %1777 = vrot.lane.b32.xlu0 %v1775, 64
    %v1778 = vpop.permute.xlu0 %1777
    %v1780 = vadd.f32 %v1774, %v1778
    %v1781 = vtanh.pop %v1780
    %v1782 = vmul.f32 %v1773, %v1781
    %1784 = vrot.lane.b32.xlu0 %v1782, 64
    %v1785 = vpop.permute.xlu0 %1784
    %v1786 = vsel %vm325, %v1785, 0
    %1788 = vmatprep.subr.mxu0 %v1073
    %1789 = vmatpush1.msra.mxu0 %v1072
    %1790 = vmatprep.subr.mxu0 %v1075
    %1791 = vmatpush1.msra.mxu0 %v1074
    %1792 = vmatprep.subr.mxu0 %v1077
    %1793 = vmatpush1.msra.mxu0 %v1076
    %1794 = vmatprep.subr.mxu0 %v1079
    %1795 = vmatpush1.msra.mxu0 %v1078
    %1796 = vmatprep.subr.mxu0 %v1081
    %1797 = vmatpush1.msra.mxu0 %v1080
    %1798 = vmatprep.subr.mxu0 %v1083
    %1799 = vmatpush1.msra.mxu0 %v1082
    %1800 = vmatprep.subr.mxu0 %v1085
    %1801 = vmatpush1.msra.mxu0 %v1084
    %1802 = vmatprep.subr.mxu0 %v1087
    %1803 = vmatpush1.msra.mxu0 %v1086
    %1804 = vmatprep.subr.mxu0 0.0
    %1805 = vmatpush1.msra.mxu0 0.0
    %1806 = vmatprep.subr.mxu0 0.0
    %1807 = vmatpush1.msra.mxu0 0.0
    %1808 = vmatprep.subr.mxu0 0.0
    %1809 = vmatpush1.msra.mxu0 0.0
    %1810 = vmatprep.subr.mxu0 0.0
    %1811 = vmatpush1.msra.mxu0 0.0
    %1812 = vmatprep.subr.mxu0 0.0
    %1813 = vmatpush1.msra.mxu0 0.0
    %1814 = vmatprep.subr.mxu0 0.0
    %1815 = vmatpush1.msra.mxu0 0.0
    %1816 = vmatprep.subr.mxu0 0.0
    %1817 = vmatpush1.msra.mxu0 0.0
    %1818 = vmatprep.subr.mxu0 0.0
    %1819 = vmatpush1.msra.mxu0 0.0
    %1820 = vmatprep.subr.mxu0 0.0
    %1821 = vmatpush1.msra.mxu0 0.0
    %1822 = vmatprep.subr.mxu0 0.0
    %1823 = vmatpush1.msra.mxu0 0.0
    %1824 = vmatprep.subr.mxu0 0.0
    %1825 = vmatpush1.msra.mxu0 0.0
    %1826 = vmatprep.subr.mxu0 0.0
    %1827 = vmatpush1.msra.mxu0 0.0
    %1828 = vmatprep.subr.mxu0 0.0
    %1829 = vmatpush1.msra.mxu0 0.0
    %1830 = vmatprep.subr.mxu0 0.0
    %1831 = vmatpush1.msra.mxu0 0.0
    %1832 = vmatprep.subr.mxu0 0.0
    %1833 = vmatpush1.msra.mxu0 0.0
    %1834 = vmatprep.subr.mxu0 0.0
    %1835 = vmatpush1.msra.mxu0 0.0
    %1836 = vmatprep.subr.mxu0 0.0
    %1837 = vmatpush1.msra.mxu0 0.0
    %1838 = vmatprep.subr.mxu0 0.0
    %1839 = vmatpush1.msra.mxu0 0.0
    %1840 = vmatprep.subr.mxu0 0.0
    %1841 = vmatpush1.msra.mxu0 0.0
    %1842 = vmatprep.subr.mxu0 0.0
    %1843 = vmatpush1.msra.mxu0 0.0
    %1844 = vmatprep.subr.mxu0 0.0
    %1845 = vmatpush1.msra.mxu0 0.0
    %1846 = vmatprep.subr.mxu0 0.0
    %1847 = vmatpush1.msra.mxu0 0.0
    %1848 = vmatprep.subr.mxu0 0.0
    %1849 = vmatpush1.msra.mxu0 0.0
    %1850 = vmatprep.subr.mxu0 0.0
    %1851 = vmatpush1.msra.mxu0 0.0
    %1852 = vmatprep.mubr.f32.mxu0 0.0
    %1853 = vmatmul.mubr.f32.gmra.mrb[0].mxu0 %v1786
    %v1854 = vpop.f32.mrb[0].mxu0
    %v1855 = vadd.f32 0.0, %v1854
    %v1856 = vpop.f32.mrb[0].mxu0
    %v1857 = vadd.f32 0.0, %v1856
    %1858 = vdwg.mxu0
    %v1859 = vadd.f32 %v1020, %v1855
    %v1860 = vadd.f32 %v1022, %v1857
    %v1861 = vxor.u32 %v1859, 2147483648
    %v1862 = vmul.f32 %v1861, 1.442695
    %v1863 = vpow.pop %v1862
    %v1864 = vadd.f32 %v1863, 1.0
    %v1865 = vrcp.pop %v1864
    %v1866 = vmul.f32 1.0, %v1865
    %v1867 = vtanh.pop %v1860
    %v1868 = vxor.u32 %v1860, 2147483648
    %v1869 = vmul.f32 %v1868, 1.442695
    %v1870 = vpow.pop %v1869
    %v1871 = vadd.f32 %v1870, 1.0
    %v1872 = vrcp.pop %v1871
    %v1873 = vmul.f32 1.0, %v1872
    %v1874 = vmul.f32 %v1866, %v1780
    %v1875 = vmul.f32 %v1866, %v1867
    %1877 = vrot.lane.b32.xlu0 %v1875, 64
    %v1878 = vpop.permute.xlu0 %1877
    %v1880 = vadd.f32 %v1874, %v1878
    %v1881 = vtanh.pop %v1880
    %v1882 = vmul.f32 %v1873, %v1881
    %1884 = vrot.lane.b32.xlu0 %v1882, 64
    %v1885 = vpop.permute.xlu0 %1884
    %v1886 = vsel %vm325, %v1885, 0
    %1888 = vmatprep.subr.mxu0 %v1073
    %1889 = vmatpush1.msra.mxu0 %v1072
    %1890 = vmatprep.subr.mxu0 %v1075
    %1891 = vmatpush1.msra.mxu0 %v1074
    %1892 = vmatprep.subr.mxu0 %v1077
    %1893 = vmatpush1.msra.mxu0 %v1076
    %1894 = vmatprep.subr.mxu0 %v1079
    %1895 = vmatpush1.msra.mxu0 %v1078
    %1896 = vmatprep.subr.mxu0 %v1081
    %1897 = vmatpush1.msra.mxu0 %v1080
    %1898 = vmatprep.subr.mxu0 %v1083
    %1899 = vmatpush1.msra.mxu0 %v1082
    %1900 = vmatprep.subr.mxu0 %v1085
    %1901 = vmatpush1.msra.mxu0 %v1084
    %1902 = vmatprep.subr.mxu0 %v1087
    %1903 = vmatpush1.msra.mxu0 %v1086
    %1904 = vmatprep.subr.mxu0 0.0
    %1905 = vmatpush1.msra.mxu0 0.0
    %1906 = vmatprep.subr.mxu0 0.0
    %1907 = vmatpush1.msra.mxu0 0.0
    %1908 = vmatprep.subr.mxu0 0.0
    %1909 = vmatpush1.msra.mxu0 0.0
    %1910 = vmatprep.subr.mxu0 0.0
    %1911 = vmatpush1.msra.mxu0 0.0
    %1912 = vmatprep.subr.mxu0 0.0
    %1913 = vmatpush1.msra.mxu0 0.0
    %1914 = vmatprep.subr.mxu0 0.0
    %1915 = vmatpush1.msra.mxu0 0.0
    %1916 = vmatprep.subr.mxu0 0.0
    %1917 = vmatpush1.msra.mxu0 0.0
    %1918 = vmatprep.subr.mxu0 0.0
    %1919 = vmatpush1.msra.mxu0 0.0
    %1920 = vmatprep.subr.mxu0 0.0
    %1921 = vmatpush1.msra.mxu0 0.0
    %1922 = vmatprep.subr.mxu0 0.0
    %1923 = vmatpush1.msra.mxu0 0.0
    %1924 = vmatprep.subr.mxu0 0.0
    %1925 = vmatpush1.msra.mxu0 0.0
    %1926 = vmatprep.subr.mxu0 0.0
    %1927 = vmatpush1.msra.mxu0 0.0
    %1928 = vmatprep.subr.mxu0 0.0
    %1929 = vmatpush1.msra.mxu0 0.0
    %1930 = vmatprep.subr.mxu0 0.0
    %1931 = vmatpush1.msra.mxu0 0.0
    %1932 = vmatprep.subr.mxu0 0.0
    %1933 = vmatpush1.msra.mxu0 0.0
    %1934 = vmatprep.subr.mxu0 0.0
    %1935 = vmatpush1.msra.mxu0 0.0
    %1936 = vmatprep.subr.mxu0 0.0
    %1937 = vmatpush1.msra.mxu0 0.0
    %1938 = vmatprep.subr.mxu0 0.0
    %1939 = vmatpush1.msra.mxu0 0.0
    %1940 = vmatprep.subr.mxu0 0.0
    %1941 = vmatpush1.msra.mxu0 0.0
    %1942 = vmatprep.subr.mxu0 0.0
    %1943 = vmatpush1.msra.mxu0 0.0
    %1944 = vmatprep.subr.mxu0 0.0
    %1945 = vmatpush1.msra.mxu0 0.0
    %1946 = vmatprep.subr.mxu0 0.0
    %1947 = vmatpush1.msra.mxu0 0.0
    %1948 = vmatprep.subr.mxu0 0.0
    %1949 = vmatpush1.msra.mxu0 0.0
    %1950 = vmatprep.subr.mxu0 0.0
    %1951 = vmatpush1.msra.mxu0 0.0
    %1952 = vmatprep.mubr.f32.mxu0 0.0
    %1953 = vmatmul.mubr.f32.gmra.mrb[0].mxu0 %v1886
    %v1954 = vpop.f32.mrb[0].mxu0
    %v1955 = vadd.f32 0.0, %v1954
    %v1956 = vpop.f32.mrb[0].mxu0
    %v1957 = vadd.f32 0.0, %v1956
    %1958 = vdwg.mxu0
    %v1959 = vadd.f32 %v1026, %v1955
    %v1960 = vadd.f32 %v1028, %v1957
    %v1961 = vxor.u32 %v1959, 2147483648
    %v1962 = vmul.f32 %v1961, 1.442695
    %v1963 = vpow.pop %v1962
    %v1964 = vadd.f32 %v1963, 1.0
    %v1965 = vrcp.pop %v1964
    %v1966 = vmul.f32 1.0, %v1965
    %v1967 = vtanh.pop %v1960
    %v1968 = vxor.u32 %v1960, 2147483648
    %v1969 = vmul.f32 %v1968, 1.442695
    %v1970 = vpow.pop %v1969
    %v1971 = vadd.f32 %v1970, 1.0
    %v1972 = vrcp.pop %v1971
    %v1973 = vmul.f32 1.0, %v1972
    %v1974 = vmul.f32 %v1966, %v1880
    %v1975 = vmul.f32 %v1966, %v1967
    %1977 = vrot.lane.b32.xlu0 %v1975, 64
    %v1978 = vpop.permute.xlu0 %1977
    %v1980 = vadd.f32 %v1974, %v1978
    %v1981 = vtanh.pop %v1980
    %v1982 = vmul.f32 %v1973, %v1981
    %1984 = vrot.lane.b32.xlu0 %v1982, 64
    %v1985 = vpop.permute.xlu0 %1984
    %v1986 = vsel %vm325, %v1985, 0
    %1988 = vmatprep.subr.mxu0 %v1073
    %1989 = vmatpush1.msra.mxu0 %v1072
    %1990 = vmatprep.subr.mxu0 %v1075
    %1991 = vmatpush1.msra.mxu0 %v1074
    %1992 = vmatprep.subr.mxu0 %v1077
    %1993 = vmatpush1.msra.mxu0 %v1076
    %1994 = vmatprep.subr.mxu0 %v1079
    %1995 = vmatpush1.msra.mxu0 %v1078
    %1996 = vmatprep.subr.mxu0 %v1081
    %1997 = vmatpush1.msra.mxu0 %v1080
    %1998 = vmatprep.subr.mxu0 %v1083
    %1999 = vmatpush1.msra.mxu0 %v1082
    %2000 = vmatprep.subr.mxu0 %v1085
    %2001 = vmatpush1.msra.mxu0 %v1084
    %2002 = vmatprep.subr.mxu0 %v1087
    %2003 = vmatpush1.msra.mxu0 %v1086
    %2004 = vmatprep.subr.mxu0 0.0
    %2005 = vmatpush1.msra.mxu0 0.0
    %2006 = vmatprep.subr.mxu0 0.0
    %2007 = vmatpush1.msra.mxu0 0.0
    %2008 = vmatprep.subr.mxu0 0.0
    %2009 = vmatpush1.msra.mxu0 0.0
    %2010 = vmatprep.subr.mxu0 0.0
    %2011 = vmatpush1.msra.mxu0 0.0
    %2012 = vmatprep.subr.mxu0 0.0
    %2013 = vmatpush1.msra.mxu0 0.0
    %2014 = vmatprep.subr.mxu0 0.0
    %2015 = vmatpush1.msra.mxu0 0.0
    %2016 = vmatprep.subr.mxu0 0.0
    %2017 = vmatpush1.msra.mxu0 0.0
    %2018 = vmatprep.subr.mxu0 0.0
    %2019 = vmatpush1.msra.mxu0 0.0
    %2020 = vmatprep.subr.mxu0 0.0
    %2021 = vmatpush1.msra.mxu0 0.0
    %2022 = vmatprep.subr.mxu0 0.0
    %2023 = vmatpush1.msra.mxu0 0.0
    %2024 = vmatprep.subr.mxu0 0.0
    %2025 = vmatpush1.msra.mxu0 0.0
    %2026 = vmatprep.subr.mxu0 0.0
    %2027 = vmatpush1.msra.mxu0 0.0
    %2028 = vmatprep.subr.mxu0 0.0
    %2029 = vmatpush1.msra.mxu0 0.0
    %2030 = vmatprep.subr.mxu0 0.0
    %2031 = vmatpush1.msra.mxu0 0.0
    %2032 = vmatprep.subr.mxu0 0.0
    %2033 = vmatpush1.msra.mxu0 0.0
    %2034 = vmatprep.subr.mxu0 0.0
    %2035 = vmatpush1.msra.mxu0 0.0
    %2036 = vmatprep.subr.mxu0 0.0
    %2037 = vmatpush1.msra.mxu0 0.0
    %2038 = vmatprep.subr.mxu0 0.0
    %2039 = vmatpush1.msra.mxu0 0.0
    %2040 = vmatprep.subr.mxu0 0.0
    %2041 = vmatpush1.msra.mxu0 0.0
    %2042 = vmatprep.subr.mxu0 0.0
    %2043 = vmatpush1.msra.mxu0 0.0
    %2044 = vmatprep.subr.mxu0 0.0
    %2045 = vmatpush1.msra.mxu0 0.0
    %2046 = vmatprep.subr.mxu0 0.0
    %2047 = vmatpush1.msra.mxu0 0.0
    %2048 = vmatprep.subr.mxu0 0.0
    %2049 = vmatpush1.msra.mxu0 0.0
    %2050 = vmatprep.subr.mxu0 0.0
    %2051 = vmatpush1.msra.mxu0 0.0
    %2052 = vmatprep.mubr.f32.mxu0 0.0
    %2053 = vmatmul.mubr.f32.gmra.mrb[0].mxu0 %v1986
    %v2054 = vpop.f32.mrb[0].mxu0
    %v2055 = vadd.f32 0.0, %v2054
    %v2056 = vpop.f32.mrb[0].mxu0
    %v2057 = vadd.f32 0.0, %v2056
    %2058 = vdwg.mxu0
    %v2059 = vadd.f32 %v1032, %v2055
    %v2060 = vadd.f32 %v1034, %v2057
    %v2061 = vxor.u32 %v2059, 2147483648
    %v2062 = vmul.f32 %v2061, 1.442695
    %v2063 = vpow.pop %v2062
    %v2064 = vadd.f32 %v2063, 1.0
    %v2065 = vrcp.pop %v2064
    %v2066 = vmul.f32 1.0, %v2065
    %v2067 = vtanh.pop %v2060
    %v2068 = vxor.u32 %v2060, 2147483648
    %v2069 = vmul.f32 %v2068, 1.442695
    %v2070 = vpow.pop %v2069
    %v2071 = vadd.f32 %v2070, 1.0
    %v2072 = vrcp.pop %v2071
    %v2073 = vmul.f32 1.0, %v2072
    %v2074 = vmul.f32 %v2066, %v1980
    %v2075 = vmul.f32 %v2066, %v2067
    %2077 = vrot.lane.b32.xlu0 %v2075, 64
    %v2078 = vpop.permute.xlu0 %2077
    %v2080 = vadd.f32 %v2074, %v2078
    %v2081 = vtanh.pop %v2080
    %v2082 = vmul.f32 %v2073, %v2081
    %2084 = vrot.lane.b32.xlu0 %v2082, 64
    %v2085 = vpop.permute.xlu0 %2084
    %v2086 = vsel %vm325, %v2085, 0
    %2088 = vmatprep.subr.mxu0 %v1073
    %2089 = vmatpush1.msra.mxu0 %v1072
    %2090 = vmatprep.subr.mxu0 %v1075
    %2091 = vmatpush1.msra.mxu0 %v1074
    %2092 = vmatprep.subr.mxu0 %v1077
    %2093 = vmatpush1.msra.mxu0 %v1076
    %2094 = vmatprep.subr.mxu0 %v1079
    %2095 = vmatpush1.msra.mxu0 %v1078
    %2096 = vmatprep.subr.mxu0 %v1081
    %2097 = vmatpush1.msra.mxu0 %v1080
    %2098 = vmatprep.subr.mxu0 %v1083
    %2099 = vmatpush1.msra.mxu0 %v1082
    %2100 = vmatprep.subr.mxu0 %v1085
    %2101 = vmatpush1.msra.mxu0 %v1084
    %2102 = vmatprep.subr.mxu0 %v1087
    %2103 = vmatpush1.msra.mxu0 %v1086
    %2104 = vmatprep.subr.mxu0 0.0
    %2105 = vmatpush1.msra.mxu0 0.0
    %2106 = vmatprep.subr.mxu0 0.0
    %2107 = vmatpush1.msra.mxu0 0.0
    %2108 = vmatprep.subr.mxu0 0.0
    %2109 = vmatpush1.msra.mxu0 0.0
    %2110 = vmatprep.subr.mxu0 0.0
    %2111 = vmatpush1.msra.mxu0 0.0
    %2112 = vmatprep.subr.mxu0 0.0
    %2113 = vmatpush1.msra.mxu0 0.0
    %2114 = vmatprep.subr.mxu0 0.0
    %2115 = vmatpush1.msra.mxu0 0.0
    %2116 = vmatprep.subr.mxu0 0.0
    %2117 = vmatpush1.msra.mxu0 0.0
    %2118 = vmatprep.subr.mxu0 0.0
    %2119 = vmatpush1.msra.mxu0 0.0
    %2120 = vmatprep.subr.mxu0 0.0
    %2121 = vmatpush1.msra.mxu0 0.0
    %2122 = vmatprep.subr.mxu0 0.0
    %2123 = vmatpush1.msra.mxu0 0.0
    %2124 = vmatprep.subr.mxu0 0.0
    %2125 = vmatpush1.msra.mxu0 0.0
    %2126 = vmatprep.subr.mxu0 0.0
    %2127 = vmatpush1.msra.mxu0 0.0
    %2128 = vmatprep.subr.mxu0 0.0
    %2129 = vmatpush1.msra.mxu0 0.0
    %2130 = vmatprep.subr.mxu0 0.0
    %2131 = vmatpush1.msra.mxu0 0.0
    %2132 = vmatprep.subr.mxu0 0.0
    %2133 = vmatpush1.msra.mxu0 0.0
    %2134 = vmatprep.subr.mxu0 0.0
    %2135 = vmatpush1.msra.mxu0 0.0
    %2136 = vmatprep.subr.mxu0 0.0
    %2137 = vmatpush1.msra.mxu0 0.0
    %2138 = vmatprep.subr.mxu0 0.0
    %2139 = vmatpush1.msra.mxu0 0.0
    %2140 = vmatprep.subr.mxu0 0.0
    %2141 = vmatpush1.msra.mxu0 0.0
    %2142 = vmatprep.subr.mxu0 0.0
    %2143 = vmatpush1.msra.mxu0 0.0
    %2144 = vmatprep.subr.mxu0 0.0
    %2145 = vmatpush1.msra.mxu0 0.0
    %2146 = vmatprep.subr.mxu0 0.0
    %2147 = vmatpush1.msra.mxu0 0.0
    %2148 = vmatprep.subr.mxu0 0.0
    %2149 = vmatpush1.msra.mxu0 0.0
    %2150 = vmatprep.subr.mxu0 0.0
    %2151 = vmatpush1.msra.mxu0 0.0
    %2152 = vmatprep.mubr.f32.mxu0 0.0
    %2153 = vmatmul.mubr.f32.gmra.mrb[0].mxu0 %v2086
    %v2154 = vpop.f32.mrb[0].mxu0
    %v2155 = vadd.f32 0.0, %v2154
    %v2156 = vpop.f32.mrb[0].mxu0
    %v2157 = vadd.f32 0.0, %v2156
    %2158 = vdwg.mxu0
    %v2159 = vadd.f32 %v1038, %v2155
    %v2160 = vadd.f32 %v1040, %v2157
    %v2161 = vxor.u32 %v2159, 2147483648
    %v2162 = vmul.f32 %v2161, 1.442695
    %v2163 = vpow.pop %v2162
    %v2164 = vadd.f32 %v2163, 1.0
    %v2165 = vrcp.pop %v2164
    %v2166 = vmul.f32 1.0, %v2165
    %v2167 = vtanh.pop %v2160
    %v2168 = vxor.u32 %v2160, 2147483648
    %v2169 = vmul.f32 %v2168, 1.442695
    %v2170 = vpow.pop %v2169
    %v2171 = vadd.f32 %v2170, 1.0
    %v2172 = vrcp.pop %v2171
    %v2173 = vmul.f32 1.0, %v2172
    %v2174 = vmul.f32 %v2166, %v2080
    %v2175 = vmul.f32 %v2166, %v2167
    %2177 = vrot.lane.b32.xlu0 %v2175, 64
    %v2178 = vpop.permute.xlu0 %2177
    %v2180 = vadd.f32 %v2174, %v2178
    %v2181 = vtanh.pop %v2180
    %v2182 = vmul.f32 %v2173, %v2181
    %2184 = vrot.lane.b32.xlu0 %v2182, 64
    %v2185 = vpop.permute.xlu0 %2184
    %v2186 = vsel %vm325, %v2185, 0
    %2188 = vmatprep.subr.mxu0 %v1073
    %2189 = vmatpush1.msra.mxu0 %v1072
    %2190 = vmatprep.subr.mxu0 %v1075
    %2191 = vmatpush1.msra.mxu0 %v1074
    %2192 = vmatprep.subr.mxu0 %v1077
    %2193 = vmatpush1.msra.mxu0 %v1076
    %2194 = vmatprep.subr.mxu0 %v1079
    %2195 = vmatpush1.msra.mxu0 %v1078
    %2196 = vmatprep.subr.mxu0 %v1081
    %2197 = vmatpush1.msra.mxu0 %v1080
    %2198 = vmatprep.subr.mxu0 %v1083
    %2199 = vmatpush1.msra.mxu0 %v1082
    %2200 = vmatprep.subr.mxu0 %v1085
    %2201 = vmatpush1.msra.mxu0 %v1084
    %2202 = vmatprep.subr.mxu0 %v1087
    %2203 = vmatpush1.msra.mxu0 %v1086
    %2204 = vmatprep.subr.mxu0 0.0
    %2205 = vmatpush1.msra.mxu0 0.0
    %2206 = vmatprep.subr.mxu0 0.0
    %2207 = vmatpush1.msra.mxu0 0.0
    %2208 = vmatprep.subr.mxu0 0.0
    %2209 = vmatpush1.msra.mxu0 0.0
    %2210 = vmatprep.subr.mxu0 0.0
    %2211 = vmatpush1.msra.mxu0 0.0
    %2212 = vmatprep.subr.mxu0 0.0
    %2213 = vmatpush1.msra.mxu0 0.0
    %2214 = vmatprep.subr.mxu0 0.0
    %2215 = vmatpush1.msra.mxu0 0.0
    %2216 = vmatprep.subr.mxu0 0.0
    %2217 = vmatpush1.msra.mxu0 0.0
    %2218 = vmatprep.subr.mxu0 0.0
    %2219 = vmatpush1.msra.mxu0 0.0
    %2220 = vmatprep.subr.mxu0 0.0
    %2221 = vmatpush1.msra.mxu0 0.0
    %2222 = vmatprep.subr.mxu0 0.0
    %2223 = vmatpush1.msra.mxu0 0.0
    %2224 = vmatprep.subr.mxu0 0.0
    %2225 = vmatpush1.msra.mxu0 0.0
    %2226 = vmatprep.subr.mxu0 0.0
    %2227 = vmatpush1.msra.mxu0 0.0
    %2228 = vmatprep.subr.mxu0 0.0
    %2229 = vmatpush1.msra.mxu0 0.0
    %2230 = vmatprep.subr.mxu0 0.0
    %2231 = vmatpush1.msra.mxu0 0.0
    %2232 = vmatprep.subr.mxu0 0.0
    %2233 = vmatpush1.msra.mxu0 0.0
    %2234 = vmatprep.subr.mxu0 0.0
    %2235 = vmatpush1.msra.mxu0 0.0
    %2236 = vmatprep.subr.mxu0 0.0
    %2237 = vmatpush1.msra.mxu0 0.0
    %2238 = vmatprep.subr.mxu0 0.0
    %2239 = vmatpush1.msra.mxu0 0.0
    %2240 = vmatprep.subr.mxu0 0.0
    %2241 = vmatpush1.msra.mxu0 0.0
    %2242 = vmatprep.subr.mxu0 0.0
    %2243 = vmatpush1.msra.mxu0 0.0
    %2244 = vmatprep.subr.mxu0 0.0
    %2245 = vmatpush1.msra.mxu0 0.0
    %2246 = vmatprep.subr.mxu0 0.0
    %2247 = vmatpush1.msra.mxu0 0.0
    %2248 = vmatprep.subr.mxu0 0.0
    %2249 = vmatpush1.msra.mxu0 0.0
    %2250 = vmatprep.subr.mxu0 0.0
    %2251 = vmatpush1.msra.mxu0 0.0
    %2252 = vmatprep.mubr.f32.mxu0 0.0
    %2253 = vmatmul.mubr.f32.gmra.mrb[0].mxu0 %v2186
    %v2254 = vpop.f32.mrb[0].mxu0
    %v2255 = vadd.f32 0.0, %v2254
    %v2256 = vpop.f32.mrb[0].mxu0
    %v2257 = vadd.f32 0.0, %v2256
    %2258 = vdwg.mxu0
    %v2259 = vadd.f32 %v1044, %v2255
    %v2260 = vadd.f32 %v1046, %v2257
    %v2261 = vxor.u32 %v2259, 2147483648
    %v2262 = vmul.f32 %v2261, 1.442695
    %v2263 = vpow.pop %v2262
    %v2264 = vadd.f32 %v2263, 1.0
    %v2265 = vrcp.pop %v2264
    %v2266 = vmul.f32 1.0, %v2265
    %v2267 = vtanh.pop %v2260
    %v2268 = vxor.u32 %v2260, 2147483648
    %v2269 = vmul.f32 %v2268, 1.442695
    %v2270 = vpow.pop %v2269
    %v2271 = vadd.f32 %v2270, 1.0
    %v2272 = vrcp.pop %v2271
    %v2273 = vmul.f32 1.0, %v2272
    %v2274 = vmul.f32 %v2266, %v2180
    %v2275 = vmul.f32 %v2266, %v2267
    %2277 = vrot.lane.b32.xlu0 %v2275, 64
    %v2278 = vpop.permute.xlu0 %2277
    %v2280 = vadd.f32 %v2274, %v2278
    %v2281 = vtanh.pop %v2280
    %v2282 = vmul.f32 %v2273, %v2281
    %2284 = vrot.lane.b32.xlu0 %v2282, 64
    %v2285 = vpop.permute.xlu0 %2284
    %v2286 = vsel %vm325, %v2285, 0
    %2288 = vmatprep.subr.mxu0 %v1073
    %2289 = vmatpush1.msra.mxu0 %v1072
    %2290 = vmatprep.subr.mxu0 %v1075
    %2291 = vmatpush1.msra.mxu0 %v1074
    %2292 = vmatprep.subr.mxu0 %v1077
    %2293 = vmatpush1.msra.mxu0 %v1076
    %2294 = vmatprep.subr.mxu0 %v1079
    %2295 = vmatpush1.msra.mxu0 %v1078
    %2296 = vmatprep.subr.mxu0 %v1081
    %2297 = vmatpush1.msra.mxu0 %v1080
    %2298 = vmatprep.subr.mxu0 %v1083
    %2299 = vmatpush1.msra.mxu0 %v1082
    %2300 = vmatprep.subr.mxu0 %v1085
    %2301 = vmatpush1.msra.mxu0 %v1084
    %2302 = vmatprep.subr.mxu0 %v1087
    %2303 = vmatpush1.msra.mxu0 %v1086
    %2304 = vmatprep.subr.mxu0 0.0
    %2305 = vmatpush1.msra.mxu0 0.0
    %2306 = vmatprep.subr.mxu0 0.0
    %2307 = vmatpush1.msra.mxu0 0.0
    %2308 = vmatprep.subr.mxu0 0.0
    %2309 = vmatpush1.msra.mxu0 0.0
    %2310 = vmatprep.subr.mxu0 0.0
    %2311 = vmatpush1.msra.mxu0 0.0
    %2312 = vmatprep.subr.mxu0 0.0
    %2313 = vmatpush1.msra.mxu0 0.0
    %2314 = vmatprep.subr.mxu0 0.0
    %2315 = vmatpush1.msra.mxu0 0.0
    %2316 = vmatprep.subr.mxu0 0.0
    %2317 = vmatpush1.msra.mxu0 0.0
    %2318 = vmatprep.subr.mxu0 0.0
    %2319 = vmatpush1.msra.mxu0 0.0
    %2320 = vmatprep.subr.mxu0 0.0
    %2321 = vmatpush1.msra.mxu0 0.0
    %2322 = vmatprep.subr.mxu0 0.0
    %2323 = vmatpush1.msra.mxu0 0.0
    %2324 = vmatprep.subr.mxu0 0.0
    %2325 = vmatpush1.msra.mxu0 0.0
    %2326 = vmatprep.subr.mxu0 0.0
    %2327 = vmatpush1.msra.mxu0 0.0
    %2328 = vmatprep.subr.mxu0 0.0
    %2329 = vmatpush1.msra.mxu0 0.0
    %2330 = vmatprep.subr.mxu0 0.0
    %2331 = vmatpush1.msra.mxu0 0.0
    %2332 = vmatprep.subr.mxu0 0.0
    %2333 = vmatpush1.msra.mxu0 0.0
    %2334 = vmatprep.subr.mxu0 0.0
    %2335 = vmatpush1.msra.mxu0 0.0
    %2336 = vmatprep.subr.mxu0 0.0
    %2337 = vmatpush1.msra.mxu0 0.0
    %2338 = vmatprep.subr.mxu0 0.0
    %2339 = vmatpush1.msra.mxu0 0.0
    %2340 = vmatprep.subr.mxu0 0.0
    %2341 = vmatpush1.msra.mxu0 0.0
    %2342 = vmatprep.subr.mxu0 0.0
    %2343 = vmatpush1.msra.mxu0 0.0
    %2344 = vmatprep.subr.mxu0 0.0
    %2345 = vmatpush1.msra.mxu0 0.0
    %2346 = vmatprep.subr.mxu0 0.0
    %2347 = vmatpush1.msra.mxu0 0.0
    %2348 = vmatprep.subr.mxu0 0.0
    %2349 = vmatpush1.msra.mxu0 0.0
    %2350 = vmatprep.subr.mxu0 0.0
    %2351 = vmatpush1.msra.mxu0 0.0
    %2352 = vmatprep.mubr.f32.mxu0 0.0
    %2353 = vmatmul.mubr.f32.gmra.mrb[0].mxu0 %v2286
    %v2354 = vpop.f32.mrb[0].mxu0
    %v2355 = vadd.f32 0.0, %v2354
    %v2356 = vpop.f32.mrb[0].mxu0
    %v2357 = vadd.f32 0.0, %v2356
    %2358 = vdwg.mxu0
    %v2359 = vadd.f32 %v1050, %v2355
    %v2360 = vadd.f32 %v1052, %v2357
    %v2361 = vxor.u32 %v2359, 2147483648
    %v2362 = vmul.f32 %v2361, 1.442695
    %v2363 = vpow.pop %v2362
    %v2364 = vadd.f32 %v2363, 1.0
    %v2365 = vrcp.pop %v2364
    %v2366 = vmul.f32 1.0, %v2365
    %v2367 = vtanh.pop %v2360
    %v2368 = vxor.u32 %v2360, 2147483648
    %v2369 = vmul.f32 %v2368, 1.442695
    %v2370 = vpow.pop %v2369
    %v2371 = vadd.f32 %v2370, 1.0
    %v2372 = vrcp.pop %v2371
    %v2373 = vmul.f32 1.0, %v2372
    %v2374 = vmul.f32 %v2366, %v2280
    %v2375 = vmul.f32 %v2366, %v2367
    %2377 = vrot.lane.b32.xlu0 %v2375, 64
    %v2378 = vpop.permute.xlu0 %2377
    %v2380 = vadd.f32 %v2374, %v2378
    %v2381 = vtanh.pop %v2380
    %v2382 = vmul.f32 %v2373, %v2381
    %2384 = vrot.lane.b32.xlu0 %v2382, 64
    %v2385 = vpop.permute.xlu0 %2384
    %v2386 = vsel %vm325, %v2385, 0
    %2388 = vmatprep.subr.mxu0 %v1073
    %2389 = vmatpush1.msra.mxu0 %v1072
    %2390 = vmatprep.subr.mxu0 %v1075
    %2391 = vmatpush1.msra.mxu0 %v1074
    %2392 = vmatprep.subr.mxu0 %v1077
    %2393 = vmatpush1.msra.mxu0 %v1076
    %2394 = vmatprep.subr.mxu0 %v1079
    %2395 = vmatpush1.msra.mxu0 %v1078
    %2396 = vmatprep.subr.mxu0 %v1081
    %2397 = vmatpush1.msra.mxu0 %v1080
    %2398 = vmatprep.subr.mxu0 %v1083
    %2399 = vmatpush1.msra.mxu0 %v1082
    %2400 = vmatprep.subr.mxu0 %v1085
    %2401 = vmatpush1.msra.mxu0 %v1084
    %2402 = vmatprep.subr.mxu0 %v1087
    %2403 = vmatpush1.msra.mxu0 %v1086
    %2404 = vmatprep.subr.mxu0 0.0
    %2405 = vmatpush1.msra.mxu0 0.0
    %2406 = vmatprep.subr.mxu0 0.0
    %2407 = vmatpush1.msra.mxu0 0.0
    %2408 = vmatprep.subr.mxu0 0.0
    %2409 = vmatpush1.msra.mxu0 0.0
    %2410 = vmatprep.subr.mxu0 0.0
    %2411 = vmatpush1.msra.mxu0 0.0
    %2412 = vmatprep.subr.mxu0 0.0
    %2413 = vmatpush1.msra.mxu0 0.0
    %2414 = vmatprep.subr.mxu0 0.0
    %2415 = vmatpush1.msra.mxu0 0.0
    %2416 = vmatprep.subr.mxu0 0.0
    %2417 = vmatpush1.msra.mxu0 0.0
    %2418 = vmatprep.subr.mxu0 0.0
    %2419 = vmatpush1.msra.mxu0 0.0
    %2420 = vmatprep.subr.mxu0 0.0
    %2421 = vmatpush1.msra.mxu0 0.0
    %2422 = vmatprep.subr.mxu0 0.0
    %2423 = vmatpush1.msra.mxu0 0.0
    %2424 = vmatprep.subr.mxu0 0.0
    %2425 = vmatpush1.msra.mxu0 0.0
    %2426 = vmatprep.subr.mxu0 0.0
    %2427 = vmatpush1.msra.mxu0 0.0
    %2428 = vmatprep.subr.mxu0 0.0
    %2429 = vmatpush1.msra.mxu0 0.0
    %2430 = vmatprep.subr.mxu0 0.0
    %2431 = vmatpush1.msra.mxu0 0.0
    %2432 = vmatprep.subr.mxu0 0.0
    %2433 = vmatpush1.msra.mxu0 0.0
    %2434 = vmatprep.subr.mxu0 0.0
    %2435 = vmatpush1.msra.mxu0 0.0
    %2436 = vmatprep.subr.mxu0 0.0
    %2437 = vmatpush1.msra.mxu0 0.0
    %2438 = vmatprep.subr.mxu0 0.0
    %2439 = vmatpush1.msra.mxu0 0.0
    %2440 = vmatprep.subr.mxu0 0.0
    %2441 = vmatpush1.msra.mxu0 0.0
    %2442 = vmatprep.subr.mxu0 0.0
    %2443 = vmatpush1.msra.mxu0 0.0
    %2444 = vmatprep.subr.mxu0 0.0
    %2445 = vmatpush1.msra.mxu0 0.0
    %2446 = vmatprep.subr.mxu0 0.0
    %2447 = vmatpush1.msra.mxu0 0.0
    %2448 = vmatprep.subr.mxu0 0.0
    %2449 = vmatpush1.msra.mxu0 0.0
    %2450 = vmatprep.subr.mxu0 0.0
    %2451 = vmatpush1.msra.mxu0 0.0
    %2452 = vmatprep.mubr.f32.mxu0 0.0
    %2453 = vmatmul.mubr.f32.gmra.mrb[0].mxu0 %v2386
    %v2454 = vpop.f32.mrb[0].mxu0
    %v2455 = vadd.f32 0.0, %v2454
    %v2456 = vpop.f32.mrb[0].mxu0
    %v2457 = vadd.f32 0.0, %v2456
    %2458 = vdwg.mxu0
    %v2459 = vadd.f32 %v1056, %v2455
    %v2460 = vadd.f32 %v1058, %v2457
    %v2461 = vxor.u32 %v2459, 2147483648
    %v2462 = vmul.f32 %v2461, 1.442695
    %v2463 = vpow.pop %v2462
    %v2464 = vadd.f32 %v2463, 1.0
    %v2465 = vrcp.pop %v2464
    %v2466 = vmul.f32 1.0, %v2465
    %v2467 = vtanh.pop %v2460
    %v2468 = vxor.u32 %v2460, 2147483648
    %v2469 = vmul.f32 %v2468, 1.442695
    %v2470 = vpow.pop %v2469
    %v2471 = vadd.f32 %v2470, 1.0
    %v2472 = vrcp.pop %v2471
    %v2473 = vmul.f32 1.0, %v2472
    %v2474 = vmul.f32 %v2466, %v2380
    %v2475 = vmul.f32 %v2466, %v2467
    %2477 = vrot.lane.b32.xlu0 %v2475, 64
    %v2478 = vpop.permute.xlu0 %2477
    %v2480 = vadd.f32 %v2474, %v2478
    %v2481 = vtanh.pop %v2480
    %v2482 = vmul.f32 %v2473, %v2481
    %2484 = vrot.lane.b32.xlu0 %v2482, 64
    %v2485 = vpop.permute.xlu0 %2484
    %v2486 = vsel %vm325, %v2485, 0
    %2488 = vmatprep.subr.mxu0 %v1073
    %2489 = vmatpush1.msra.mxu0 %v1072
    %2490 = vmatprep.subr.mxu0 %v1075
    %2491 = vmatpush1.msra.mxu0 %v1074
    %2492 = vmatprep.subr.mxu0 %v1077
    %2493 = vmatpush1.msra.mxu0 %v1076
    %2494 = vmatprep.subr.mxu0 %v1079
    %2495 = vmatpush1.msra.mxu0 %v1078
    %2496 = vmatprep.subr.mxu0 %v1081
    %2497 = vmatpush1.msra.mxu0 %v1080
    %2498 = vmatprep.subr.mxu0 %v1083
    %2499 = vmatpush1.msra.mxu0 %v1082
    %2500 = vmatprep.subr.mxu0 %v1085
    %2501 = vmatpush1.msra.mxu0 %v1084
    %2502 = vmatprep.subr.mxu0 %v1087
    %2503 = vmatpush1.msra.mxu0 %v1086
    %2504 = vmatprep.subr.mxu0 0.0
    %2505 = vmatpush1.msra.mxu0 0.0
    %2506 = vmatprep.subr.mxu0 0.0
    %2507 = vmatpush1.msra.mxu0 0.0
    %2508 = vmatprep.subr.mxu0 0.0
    %2509 = vmatpush1.msra.mxu0 0.0
    %2510 = vmatprep.subr.mxu0 0.0
    %2511 = vmatpush1.msra.mxu0 0.0
    %2512 = vmatprep.subr.mxu0 0.0
    %2513 = vmatpush1.msra.mxu0 0.0
    %2514 = vmatprep.subr.mxu0 0.0
    %2515 = vmatpush1.msra.mxu0 0.0
    %2516 = vmatprep.subr.mxu0 0.0
    %2517 = vmatpush1.msra.mxu0 0.0
    %2518 = vmatprep.subr.mxu0 0.0
    %2519 = vmatpush1.msra.mxu0 0.0
    %2520 = vmatprep.subr.mxu0 0.0
    %2521 = vmatpush1.msra.mxu0 0.0
    %2522 = vmatprep.subr.mxu0 0.0
    %2523 = vmatpush1.msra.mxu0 0.0
    %2524 = vmatprep.subr.mxu0 0.0
    %2525 = vmatpush1.msra.mxu0 0.0
    %2526 = vmatprep.subr.mxu0 0.0
    %2527 = vmatpush1.msra.mxu0 0.0
    %2528 = vmatprep.subr.mxu0 0.0
    %2529 = vmatpush1.msra.mxu0 0.0
    %2530 = vmatprep.subr.mxu0 0.0
    %2531 = vmatpush1.msra.mxu0 0.0
    %2532 = vmatprep.subr.mxu0 0.0
    %2533 = vmatpush1.msra.mxu0 0.0
    %2534 = vmatprep.subr.mxu0 0.0
    %2535 = vmatpush1.msra.mxu0 0.0
    %2536 = vmatprep.subr.mxu0 0.0
    %2537 = vmatpush1.msra.mxu0 0.0
    %2538 = vmatprep.subr.mxu0 0.0
    %2539 = vmatpush1.msra.mxu0 0.0
    %2540 = vmatprep.subr.mxu0 0.0
    %2541 = vmatpush1.msra.mxu0 0.0
    %2542 = vmatprep.subr.mxu0 0.0
    %2543 = vmatpush1.msra.mxu0 0.0
    %2544 = vmatprep.subr.mxu0 0.0
    %2545 = vmatpush1.msra.mxu0 0.0
    %2546 = vmatprep.subr.mxu0 0.0
    %2547 = vmatpush1.msra.mxu0 0.0
    %2548 = vmatprep.subr.mxu0 0.0
    %2549 = vmatpush1.msra.mxu0 0.0
    %2550 = vmatprep.subr.mxu0 0.0
    %2551 = vmatpush1.msra.mxu0 0.0
    %2552 = vmatprep.mubr.f32.mxu0 0.0
    %2553 = vmatmul.mubr.f32.gmra.mrb[0].mxu0 %v2486
    %v2554 = vpop.f32.mrb[0].mxu0
    %v2555 = vadd.f32 0.0, %v2554
    %v2556 = vpop.f32.mrb[0].mxu0
    %v2557 = vadd.f32 0.0, %v2556
    %2558 = vdwg.mxu0
    %v2559 = vadd.f32 %v1062, %v2555
    %v2560 = vadd.f32 %v1064, %v2557
    %v2561 = vxor.u32 %v2559, 2147483648
    %v2562 = vmul.f32 %v2561, 1.442695
    %v2563 = vpow.pop %v2562
    %v2564 = vadd.f32 %v2563, 1.0
    %v2565 = vrcp.pop %v2564
    %v2566 = vmul.f32 1.0, %v2565
    %v2567 = vtanh.pop %v2560
    %v2568 = vxor.u32 %v2560, 2147483648
    %v2569 = vmul.f32 %v2568, 1.442695
    %v2570 = vpow.pop %v2569
    %v2571 = vadd.f32 %v2570, 1.0
    %v2572 = vrcp.pop %v2571
    %v2573 = vmul.f32 1.0, %v2572
    %v2574 = vmul.f32 %v2566, %v2480
    %v2575 = vmul.f32 %v2566, %v2567
    %2577 = vrot.lane.b32.xlu0 %v2575, 64
    %v2578 = vpop.permute.xlu0 %2577
    %v2580 = vadd.f32 %v2574, %v2578
    %v2581 = vtanh.pop %v2580
    %v2582 = vmul.f32 %v2573, %v2581
    %2584 = vrot.lane.b32.xlu0 %v2582, 64
    %v2585 = vpop.permute.xlu0 %2584
    %v2586 = vsel %vm325, %v2585, 0
    %2588 = vmatprep.subr.mxu0 %v1073
    %2589 = vmatpush1.msra.mxu0 %v1072
    %2590 = vmatprep.subr.mxu0 %v1075
    %2591 = vmatpush1.msra.mxu0 %v1074
    %2592 = vmatprep.subr.mxu0 %v1077
    %2593 = vmatpush1.msra.mxu0 %v1076
    %2594 = vmatprep.subr.mxu0 %v1079
    %2595 = vmatpush1.msra.mxu0 %v1078
    %2596 = vmatprep.subr.mxu0 %v1081
    %2597 = vmatpush1.msra.mxu0 %v1080
    %2598 = vmatprep.subr.mxu0 %v1083
    %2599 = vmatpush1.msra.mxu0 %v1082
    %2600 = vmatprep.subr.mxu0 %v1085
    %2601 = vmatpush1.msra.mxu0 %v1084
    %2602 = vmatprep.subr.mxu0 %v1087
    %2603 = vmatpush1.msra.mxu0 %v1086
    %2604 = vmatprep.subr.mxu0 0.0
    %2605 = vmatpush1.msra.mxu0 0.0
    %2606 = vmatprep.subr.mxu0 0.0
    %2607 = vmatpush1.msra.mxu0 0.0
    %2608 = vmatprep.subr.mxu0 0.0
    %2609 = vmatpush1.msra.mxu0 0.0
    %2610 = vmatprep.subr.mxu0 0.0
    %2611 = vmatpush1.msra.mxu0 0.0
    %2612 = vmatprep.subr.mxu0 0.0
    %2613 = vmatpush1.msra.mxu0 0.0
    %2614 = vmatprep.subr.mxu0 0.0
    %2615 = vmatpush1.msra.mxu0 0.0
    %2616 = vmatprep.subr.mxu0 0.0
    %2617 = vmatpush1.msra.mxu0 0.0
    %2618 = vmatprep.subr.mxu0 0.0
    %2619 = vmatpush1.msra.mxu0 0.0
    %2620 = vmatprep.subr.mxu0 0.0
    %2621 = vmatpush1.msra.mxu0 0.0
    %2622 = vmatprep.subr.mxu0 0.0
    %2623 = vmatpush1.msra.mxu0 0.0
    %2624 = vmatprep.subr.mxu0 0.0
    %2625 = vmatpush1.msra.mxu0 0.0
    %2626 = vmatprep.subr.mxu0 0.0
    %2627 = vmatpush1.msra.mxu0 0.0
    %2628 = vmatprep.subr.mxu0 0.0
    %2629 = vmatpush1.msra.mxu0 0.0
    %2630 = vmatprep.subr.mxu0 0.0
    %2631 = vmatpush1.msra.mxu0 0.0
    %2632 = vmatprep.subr.mxu0 0.0
    %2633 = vmatpush1.msra.mxu0 0.0
    %2634 = vmatprep.subr.mxu0 0.0
    %2635 = vmatpush1.msra.mxu0 0.0
    %2636 = vmatprep.subr.mxu0 0.0
    %2637 = vmatpush1.msra.mxu0 0.0
    %2638 = vmatprep.subr.mxu0 0.0
    %2639 = vmatpush1.msra.mxu0 0.0
    %2640 = vmatprep.subr.mxu0 0.0
    %2641 = vmatpush1.msra.mxu0 0.0
    %2642 = vmatprep.subr.mxu0 0.0
    %2643 = vmatpush1.msra.mxu0 0.0
    %2644 = vmatprep.subr.mxu0 0.0
    %2645 = vmatpush1.msra.mxu0 0.0
    %2646 = vmatprep.subr.mxu0 0.0
    %2647 = vmatpush1.msra.mxu0 0.0
    %2648 = vmatprep.subr.mxu0 0.0
    %2649 = vmatpush1.msra.mxu0 0.0
    %2650 = vmatprep.subr.mxu0 0.0
    %2651 = vmatpush1.msra.mxu0 0.0
    %2652 = vmatprep.mubr.f32.mxu0 0.0
    %2653 = vmatmul.mubr.f32.gmra.mrb[0].mxu0 %v2586
    %v2654 = vpop.f32.mrb[0].mxu0
    %v2655 = vadd.f32 0.0, %v2654
    %v2656 = vpop.f32.mrb[0].mxu0
    %v2657 = vadd.f32 0.0, %v2656
    %2658 = vdwg.mxu0
    %v2659 = vadd.f32 %v1068, %v2655
    %v2660 = vadd.f32 %v1070, %v2657
    %v2661 = vxor.u32 %v2659, 2147483648
    %v2662 = vmul.f32 %v2661, 1.442695
    %v2663 = vpow.pop %v2662
    %v2664 = vadd.f32 %v2663, 1.0
    %v2665 = vrcp.pop %v2664
    %v2666 = vmul.f32 1.0, %v2665
    %v2667 = vtanh.pop %v2660
    %v2668 = vxor.u32 %v2660, 2147483648
    %v2669 = vmul.f32 %v2668, 1.442695
    %v2670 = vpow.pop %v2669
    %v2671 = vadd.f32 %v2670, 1.0
    %v2672 = vrcp.pop %v2671
    %v2673 = vmul.f32 1.0, %v2672
    %v2674 = vmul.f32 %v2666, %v2580
    %v2675 = vmul.f32 %v2666, %v2667
    %2677 = vrot.lane.b32.xlu0 %v2675, 64
    %v2678 = vpop.permute.xlu0 %2677
    %v2680 = vadd.f32 %v2674, %v2678
    %v2681 = vtanh.pop %v2680
    %v2682 = vmul.f32 %v2673, %v2681
    %v2683 = vld [vmem:[%s8] sm:$0xff]
    %v2684 = vld [vmem:[%s8 + $0x8] sm:$0xff]
    %v2685 = vld [vmem:[%s8 + $0x10] sm:$0xff]
    %v2686 = vld [vmem:[%s8 + $0x18] sm:$0xff]
    %v2687 = vld [vmem:[%s8 + $0x20] sm:$0xff]
    %v2688 = vld [vmem:[%s8 + $0x28] sm:$0xff]
    %v2689 = vld [vmem:[%s8 + $0x30] sm:$0xff]
    %v2690 = vld [vmem:[%s8 + $0x38] sm:$0xff]
    %v2691 = vld [vmem:[%s9] sm:$0x1]
    %v2693 = vlaneseq
    %v2694 = vshrl.u32 %v2693, 7
    %v2695 = vsub.s32 0, %v2694
    %v2696 = vrot.slane %v2691, %v2695
    %2699 = vrot.lane.b32.xlu0 %v2682, 64
    %v2700 = vpop.permute.xlu0 %2699
    %v2701 = vsel %vm325, %v2700, 0
    %2703 = vmatprep.subr.mxu0 0.0
    %2704 = vmatpush1.msra.mxu0 %v2683
    %2705 = vmatprep.subr.mxu0 0.0
    %2706 = vmatpush1.msra.mxu0 %v2684
    %2707 = vmatprep.subr.mxu0 0.0
    %2708 = vmatpush1.msra.mxu0 %v2685
    %2709 = vmatprep.subr.mxu0 0.0
    %2710 = vmatpush1.msra.mxu0 %v2686
    %2711 = vmatprep.subr.mxu0 0.0
    %2712 = vmatpush1.msra.mxu0 %v2687
    %2713 = vmatprep.subr.mxu0 0.0
    %2714 = vmatpush1.msra.mxu0 %v2688
    %2715 = vmatprep.subr.mxu0 0.0
    %2716 = vmatpush1.msra.mxu0 %v2689
    %2717 = vmatprep.subr.mxu0 0.0
    %2718 = vmatpush1.msra.mxu0 %v2690
    %2719 = vmatprep.subr.mxu0 0.0
    %2720 = vmatpush1.msra.mxu0 0.0
    %2721 = vmatprep.subr.mxu0 0.0
    %2722 = vmatpush1.msra.mxu0 0.0
    %2723 = vmatprep.subr.mxu0 0.0
    %2724 = vmatpush1.msra.mxu0 0.0
    %2725 = vmatprep.subr.mxu0 0.0
    %2726 = vmatpush1.msra.mxu0 0.0
    %2727 = vmatprep.subr.mxu0 0.0
    %2728 = vmatpush1.msra.mxu0 0.0
    %2729 = vmatprep.subr.mxu0 0.0
    %2730 = vmatpush1.msra.mxu0 0.0
    %2731 = vmatprep.subr.mxu0 0.0
    %2732 = vmatpush1.msra.mxu0 0.0
    %2733 = vmatprep.subr.mxu0 0.0
    %2734 = vmatpush1.msra.mxu0 0.0
    %2735 = vmatprep.subr.mxu0 0.0
    %2736 = vmatpush1.msra.mxu0 0.0
    %2737 = vmatprep.subr.mxu0 0.0
    %2738 = vmatpush1.msra.mxu0 0.0
    %2739 = vmatprep.subr.mxu0 0.0
    %2740 = vmatpush1.msra.mxu0 0.0
    %2741 = vmatprep.subr.mxu0 0.0
    %2742 = vmatpush1.msra.mxu0 0.0
    %2743 = vmatprep.subr.mxu0 0.0
    %2744 = vmatpush1.msra.mxu0 0.0
    %2745 = vmatprep.subr.mxu0 0.0
    %2746 = vmatpush1.msra.mxu0 0.0
    %2747 = vmatprep.subr.mxu0 0.0
    %2748 = vmatpush1.msra.mxu0 0.0
    %2749 = vmatprep.subr.mxu0 0.0
    %2750 = vmatpush1.msra.mxu0 0.0
    %2751 = vmatprep.subr.mxu0 0.0
    %2752 = vmatpush1.msra.mxu0 0.0
    %2753 = vmatprep.subr.mxu0 0.0
    %2754 = vmatpush1.msra.mxu0 0.0
    %2755 = vmatprep.subr.mxu0 0.0
    %2756 = vmatpush1.msra.mxu0 0.0
    %2757 = vmatprep.subr.mxu0 0.0
    %2758 = vmatpush1.msra.mxu0 0.0
    %2759 = vmatprep.subr.mxu0 0.0
    %2760 = vmatpush1.msra.mxu0 0.0
    %2761 = vmatprep.subr.mxu0 0.0
    %2762 = vmatpush1.msra.mxu0 0.0
    %2763 = vmatprep.subr.mxu0 0.0
    %2764 = vmatpush1.msra.mxu0 0.0
    %2765 = vmatprep.subr.mxu0 0.0
    %2766 = vmatpush1.msra.mxu0 0.0
    %2767 = vmatprep.mubr.f32.mxu0 0.0
    %2768 = vmatmul.mubr.f32.gmra.mrb[0].mxu0 %v2701
    %v2769 = vpop.f32.mrb[0].mxu0
    %v2770 = vadd.f32 %v2696, %v2769
    %v2771 = vpop.f32.mrb[0].mxu0
    %2772 = vdwg.mxu0
    %2773 = vst.msk [vmem:[%s10] sm:$0xff] %vm87, %v2770
    // Predicated region
    $region50: #{tpu_custom_call.1} parent=1 // pred_check
      _
    $region51: #{tpu_custom_call.1} parent=1 // pred_check_branch
      %2775 = sbr.rel (0) target = $region53
    $region52: #{tpu_custom_call.1} parent=1 // pred_region
      _
    $region53: #{tpu_custom_call.1} parent=1 // pred_fallthru
      _
    // Predicated region
    $region54: #{tpu_custom_call.1} parent=1 // pred_check
      _
    $region55: #{tpu_custom_call.1} parent=1 // pred_check_branch
      %2777 = sbr.rel (0) target = $region57
    $region56: #{tpu_custom_call.1} parent=1 // pred_region
      _
    $region57: #{tpu_custom_call.1} parent=1 // pred_fallthru
      _
    %2778 = vsyncpa [#allocation3], 1
    %2779 = vsyncpa [#allocation5], 1

</llo_original>
